<compile_context>
chip_gen: v6e
topology: v6e:2x2x1
jax: 0.10.0
libtpu: 0.0.40
codegen_flags: <defaults>
</compile_context>

<pallas_src>
import functools

import jax
import jax.numpy as jnp
from jax import lax
from jax.experimental import pallas as pl
from jax.experimental.pallas import tpu as pltpu


def lstm_fused_kernel(x_ref, wih0_ref, whh0_ref, b0_ref,
                      wih_r_ref, whh_r_ref, b_r_ref,
                      out_ref, *, num_layers, hidden):
    """Whole stacked-LSTM forward in one kernel invocation (no grid)."""
    T = x_ref.shape[0]
    B = x_ref.shape[1]
    H = hidden

    # Weights are tiny at these sizes; load once, reuse across all timesteps.
    wih0 = wih0_ref[...]          # (D_in, 4H)
    whh0 = whh0_ref[...]          # (H,    4H)
    b0 = b0_ref[...]              # (1,    4H)
    wih_r = wih_r_ref[...]        # (max(L-1,1), H, 4H)
    whh_r = whh_r_ref[...]        # (max(L-1,1), H, 4H)
    b_r = b_r_ref[...]            # (max(L-1,1), 1, 4H)

    def cell(x, h, c, wih, whh, b):
        # Two fused MXU dots -> (B, 4H) pre-activations, f32 accumulation.
        gates = (jnp.dot(x, wih, preferred_element_type=jnp.float32)
                 + jnp.dot(h, whh, preferred_element_type=jnp.float32)
                 + b)
        ingate     = jax.nn.sigmoid(gates[:, 0 * H:1 * H])
        forgetgate = jax.nn.sigmoid(gates[:, 1 * H:2 * H])
        cellgate   = jnp.tanh(gates[:, 2 * H:3 * H])
        outgate    = jax.nn.sigmoid(gates[:, 3 * H:4 * H])
        c_new = forgetgate * c + ingate * cellgate
        h_new = outgate * jnp.tanh(c_new)
        return h_new, c_new

    def step(t, carry):
        hs, cs = carry
        cur = x_ref[t]                       # (B, D_in)
        new_hs, new_cs = [], []
        # Layer stack is statically unrolled (num_layers is a trace-time int),
        # matching the PyTorch t-outer / layer-inner loop order exactly.
        for j in range(num_layers):
            if j == 0:
                h_new, c_new = cell(cur, hs[j], cs[j], wih0, whh0, b0)
            else:
                h_new, c_new = cell(cur, hs[j], cs[j],
                                    wih_r[j - 1], whh_r[j - 1], b_r[j - 1])
            new_hs.append(h_new)
            new_cs.append(c_new)
            cur = h_new
        return tuple(new_hs), tuple(new_cs)

    zeros = jnp.zeros((B, H), jnp.float32)
    init = (tuple(zeros for _ in range(num_layers)),
            tuple(zeros for _ in range(num_layers)))
    hs, _ = lax.fori_loop(0, T, step, init, unroll=True)

    # Single writeback: only the last layer's final hidden state is needed.
    out_ref[...] = hs[num_layers - 1]


@functools.partial(jax.jit, static_argnames=("num_layers",))
def lstm_forward(inputs, params, num_layers):
    """Stacked LSTM forward. Returns final hidden state of last layer [B, H]."""
    T, B, _ = inputs.shape
    H = params[0][0].shape[2]
    G = 4 * H

    def fuse(wih, whh, bih, bhh):
        d = wih.shape[1]
        # (4, D, H) -> (D, 4, H) -> (D, 4H): gate g occupies columns [gH, (g+1)H)
        wih_f = jnp.transpose(wih, (1, 0, 2)).reshape(d, G)
        whh_f = jnp.transpose(whh, (1, 0, 2)).reshape(H, G)
        b_f = (bih + bhh).reshape(1, G)
        return wih_f, whh_f, b_f

    wih0, whh0, b0 = fuse(*params[0])
    if num_layers > 1:
        rest = [fuse(*params[j]) for j in range(1, num_layers)]
        wih_r = jnp.stack([r[0] for r in rest])
        whh_r = jnp.stack([r[1] for r in rest])
        b_r = jnp.stack([r[2] for r in rest])
    else:
        # Dummy (never read — the static layer loop skips it); avoids 0-sized arrays.
        wih_r = jnp.zeros((1, H, G), jnp.float32)
        whh_r = jnp.zeros((1, H, G), jnp.float32)
        b_r = jnp.zeros((1, 1, G), jnp.float32)

    vmem_spec = pl.BlockSpec(memory_space=pltpu.MemorySpace.VMEM)
    return pl.pallas_call(
        functools.partial(lstm_fused_kernel, num_layers=num_layers, hidden=H),
        out_shape=jax.ShapeDtypeStruct((B, H), jnp.float32),
        in_specs=[vmem_spec] * 7,
        out_specs=vmem_spec,
    )(inputs, wih0, whh0, b0, wih_r, whh_r, b_r)


def lstm_forward_ref(inputs, params, num_layers):
    """Pure-JAX reference matching the PyTorch forward exactly."""
    T, B, _ = inputs.shape
    H = params[0][0].shape[2]
    h = [jnp.zeros((B, H), jnp.float32) for _ in range(num_layers)]
    c = [jnp.zeros((B, H), jnp.float32) for _ in range(num_layers)]
    for t in range(T):
        cur = inputs[t]
        for j in range(num_layers):
            wih, whh, bih, bhh = params[j]
            ih = jnp.einsum('bd,gdh->gbh', cur, wih)
            hh = jnp.einsum('bh,ghk->gbk', h[j], whh)
            ingate     = jax.nn.sigmoid(ih[0] + bih[0] + hh[0] + bhh[0])
            forgetgate = jax.nn.sigmoid(ih[1] + bih[1] + hh[1] + bhh[1])
            cellgate   = jnp.tanh(ih[2] + bih[2] + hh[2] + bhh[2])
            outgate    = jax.nn.sigmoid(ih[3] + bih[3] + hh[3] + bhh[3])
            c[j] = forgetgate * c[j] + ingate * cellgate
            h[j] = outgate * jnp.tanh(c[j])
            cur = h[j]
    return h[num_layers - 1]


def xavier_uniform(key, shape):
    fan_in, fan_out = shape[-2], shape[-1]
    bound = (6.0 / (fan_in + fan_out)) ** 0.5
    return jax.random.uniform(key, shape, jnp.float32, -bound, bound)


def make_params(key, input_size, hidden_size, num_layers):
    params = []
    for j in range(num_layers):
        d_in = input_size if j == 0 else hidden_size
        key, k1, k2, k3, k4 = jax.random.split(key, 5)
        wih = xavier_uniform(k1, (4, d_in, hidden_size))
        whh = xavier_uniform(k2, (4, hidden_size, hidden_size))
        bih = jax.random.normal(k3, (4, hidden_size), jnp.float32)
        bhh = jax.random.normal(k4, (4, hidden_size), jnp.float32)
        params.append((wih, whh, bih, bhh))
    return params


if __name__ == "__main__":
    SEQ, BATCH, INPUT, HIDDEN, NUM_LAYERS = 8, 2, 16, 32, 3

    key = jax.random.PRNGKey(0)
    key, kx, kp = jax.random.split(key, 3)
    inputs = jax.random.normal(kx, (SEQ, BATCH, INPUT), jnp.float32)
    params = make_params(kp, INPUT, HIDDEN, NUM_LAYERS)

    out = lstm_forward(inputs, params, NUM_LAYERS)
    out = jax.block_until_ready(out)

    ref = lstm_forward_ref(inputs, params, NUM_LAYERS)
    assert out.shape == (BATCH, HIDDEN)
    max_err = jnp.max(jnp.abs(out - ref))
    assert jnp.allclose(out, ref, atol=1e-5, rtol=1e-5), \
        f"mismatch: max abs err {max_err}"

    print("KERNEL_OK")
</pallas_src>

<mosaic_0001>
module attributes {stable_mosaic.version = 11 : i64} {
  func.func @lstm_fused_kernel(%arg0: memref<8x2x16xf32, #tpu.memory_space<vmem>>, %arg1: memref<16x128xf32, #tpu.memory_space<vmem>>, %arg2: memref<32x128xf32, #tpu.memory_space<vmem>>, %arg3: memref<1x128xf32, #tpu.memory_space<vmem>>, %arg4: memref<2x32x128xf32, #tpu.memory_space<vmem>>, %arg5: memref<2x32x128xf32, #tpu.memory_space<vmem>>, %arg6: memref<2x1x128xf32, #tpu.memory_space<vmem>>, %arg7: memref<2x32xf32, #tpu.memory_space<vmem>>) attributes {dimension_semantics = [], scalar_prefetch = 0 : i64, scratch_operands = 0 : i64, tpu.core_type = #tpu.core_type<tc>} {
    %c0 = arith.constant 0 : index
    %c0_0 = arith.constant 0 : index
    %0 = vector.load %arg1[%c0, %c0_0] : memref<16x128xf32, #tpu.memory_space<vmem>>, vector<16x128xf32>
    %c0_1 = arith.constant 0 : index
    %c0_2 = arith.constant 0 : index
    %1 = vector.load %arg2[%c0_1, %c0_2] : memref<32x128xf32, #tpu.memory_space<vmem>>, vector<32x128xf32>
    %c0_3 = arith.constant 0 : index
    %c0_4 = arith.constant 0 : index
    %2 = vector.load %arg3[%c0_3, %c0_4] : memref<1x128xf32, #tpu.memory_space<vmem>>, vector<1x128xf32>
    %c0_5 = arith.constant 0 : index
    %c0_6 = arith.constant 0 : index
    %c0_7 = arith.constant 0 : index
    %3 = vector.load %arg4[%c0_5, %c0_6, %c0_7] : memref<2x32x128xf32, #tpu.memory_space<vmem>>, vector<2x32x128xf32>
    %c0_8 = arith.constant 0 : index
    %c0_9 = arith.constant 0 : index
    %c0_10 = arith.constant 0 : index
    %4 = vector.load %arg5[%c0_8, %c0_9, %c0_10] : memref<2x32x128xf32, #tpu.memory_space<vmem>>, vector<2x32x128xf32>
    %c0_11 = arith.constant 0 : index
    %c0_12 = arith.constant 0 : index
    %c0_13 = arith.constant 0 : index
    %5 = vector.load %arg6[%c0_11, %c0_12, %c0_13] : memref<2x1x128xf32, #tpu.memory_space<vmem>>, vector<2x1x128xf32>
    %cst = arith.constant 0.000000e+00 : f32
    %6 = vector.broadcast %cst : f32 to vector<2x32xf32>
    %c0_i32 = arith.constant 0 : i32
    %7 = arith.index_cast %c0_i32 : i32 to index
    %c0_14 = arith.constant 0 : index
    %c0_15 = arith.constant 0 : index
    %8 = vector.load %arg0[%7, %c0_14, %c0_15] : memref<8x2x16xf32, #tpu.memory_space<vmem>>, vector<1x2x16xf32>
    %9 = vector.shape_cast %8 : vector<1x2x16xf32> to vector<2x16xf32>
    %cst_16 = arith.constant dense<0.000000e+00> : vector<2x128xf32>
    %10 = tpu.matmul %9, %0, %cst_16 {dimension_numbers = #tpu.dot_dimension_numbers<[1], [0], [0], [1], [0, 0, 1, 1], [], []>} : vector<2x16xf32>, vector<16x128xf32>, vector<2x128xf32> -> vector<2x128xf32>
    %cst_17 = arith.constant dense<0.000000e+00> : vector<2x128xf32>
    %11 = tpu.matmul %6, %1, %cst_17 {dimension_numbers = #tpu.dot_dimension_numbers<[1], [0], [0], [1], [0, 0, 1, 1], [], []>} : vector<2x32xf32>, vector<32x128xf32>, vector<2x128xf32> -> vector<2x128xf32>
    %12 = arith.addf %10, %11 : vector<2x128xf32>
    %13 = vector.broadcast %2 : vector<1x128xf32> to vector<2x128xf32>
    %14 = arith.addf %12, %13 : vector<2x128xf32>
    %15 = vector.extract_strided_slice %14 {offsets = [0, 0], sizes = [2, 32], strides = [1, 1]} : vector<2x128xf32> to vector<2x32xf32>
    %16 = arith.negf %15 : vector<2x32xf32>
    %17 = math.exp %16 : vector<2x32xf32>
    %cst_18 = arith.constant 1.000000e+00 : f32
    %18 = vector.broadcast %cst_18 : f32 to vector<2x32xf32>
    %19 = arith.addf %18, %17 : vector<2x32xf32>
    %20 = arith.divf %18, %19 : vector<2x32xf32>
    %21 = vector.extract_strided_slice %14 {offsets = [0, 32], sizes = [2, 32], strides = [1, 1]} : vector<2x128xf32> to vector<2x32xf32>
    %22 = arith.negf %21 : vector<2x32xf32>
    %23 = math.exp %22 : vector<2x32xf32>
    %cst_19 = arith.constant 1.000000e+00 : f32
    %24 = vector.broadcast %cst_19 : f32 to vector<2x32xf32>
    %25 = arith.addf %24, %23 : vector<2x32xf32>
    %26 = arith.divf %24, %25 : vector<2x32xf32>
    %27 = vector.extract_strided_slice %14 {offsets = [0, 64], sizes = [2, 32], strides = [1, 1]} : vector<2x128xf32> to vector<2x32xf32>
    %28 = math.tanh %27 : vector<2x32xf32>
    %29 = vector.extract_strided_slice %14 {offsets = [0, 96], sizes = [2, 32], strides = [1, 1]} : vector<2x128xf32> to vector<2x32xf32>
    %30 = arith.negf %29 : vector<2x32xf32>
    %31 = math.exp %30 : vector<2x32xf32>
    %cst_20 = arith.constant 1.000000e+00 : f32
    %32 = vector.broadcast %cst_20 : f32 to vector<2x32xf32>
    %33 = arith.addf %32, %31 : vector<2x32xf32>
    %34 = arith.divf %32, %33 : vector<2x32xf32>
    %35 = arith.mulf %26, %6 : vector<2x32xf32>
    %36 = arith.mulf %20, %28 : vector<2x32xf32>
    %37 = arith.addf %35, %36 : vector<2x32xf32>
    %38 = math.tanh %37 : vector<2x32xf32>
    %39 = arith.mulf %34, %38 : vector<2x32xf32>
    %40 = vector.extract_strided_slice %3 {offsets = [0, 0, 0], sizes = [1, 32, 128], strides = [1, 1, 1]} : vector<2x32x128xf32> to vector<1x32x128xf32>
    %41 = vector.shape_cast %40 : vector<1x32x128xf32> to vector<32x128xf32>
    %42 = vector.extract_strided_slice %4 {offsets = [0, 0, 0], sizes = [1, 32, 128], strides = [1, 1, 1]} : vector<2x32x128xf32> to vector<1x32x128xf32>
    %43 = vector.shape_cast %42 : vector<1x32x128xf32> to vector<32x128xf32>
    %44 = vector.extract_strided_slice %5 {offsets = [0, 0, 0], sizes = [1, 1, 128], strides = [1, 1, 1]} : vector<2x1x128xf32> to vector<1x1x128xf32>
    %45 = vector.shape_cast %44 : vector<1x1x128xf32> to vector<1x128xf32>
    %cst_21 = arith.constant dense<0.000000e+00> : vector<2x128xf32>
    %46 = tpu.matmul %39, %41, %cst_21 {dimension_numbers = #tpu.dot_dimension_numbers<[1], [0], [0], [1], [0, 0, 1, 1], [], []>} : vector<2x32xf32>, vector<32x128xf32>, vector<2x128xf32> -> vector<2x128xf32>
    %cst_22 = arith.constant dense<0.000000e+00> : vector<2x128xf32>
    %47 = tpu.matmul %6, %43, %cst_22 {dimension_numbers = #tpu.dot_dimension_numbers<[1], [0], [0], [1], [0, 0, 1, 1], [], []>} : vector<2x32xf32>, vector<32x128xf32>, vector<2x128xf32> -> vector<2x128xf32>
    %48 = arith.addf %46, %47 : vector<2x128xf32>
    %49 = vector.broadcast %45 : vector<1x128xf32> to vector<2x128xf32>
    %50 = arith.addf %48, %49 : vector<2x128xf32>
    %51 = vector.extract_strided_slice %50 {offsets = [0, 0], sizes = [2, 32], strides = [1, 1]} : vector<2x128xf32> to vector<2x32xf32>
    %52 = arith.negf %51 : vector<2x32xf32>
    %53 = math.exp %52 : vector<2x32xf32>
    %cst_23 = arith.constant 1.000000e+00 : f32
    %54 = vector.broadcast %cst_23 : f32 to vector<2x32xf32>
    %55 = arith.addf %54, %53 : vector<2x32xf32>
    %56 = arith.divf %54, %55 : vector<2x32xf32>
    %57 = vector.extract_strided_slice %50 {offsets = [0, 32], sizes = [2, 32], strides = [1, 1]} : vector<2x128xf32> to vector<2x32xf32>
    %58 = arith.negf %57 : vector<2x32xf32>
    %59 = math.exp %58 : vector<2x32xf32>
    %cst_24 = arith.constant 1.000000e+00 : f32
    %60 = vector.broadcast %cst_24 : f32 to vector<2x32xf32>
    %61 = arith.addf %60, %59 : vector<2x32xf32>
    %62 = arith.divf %60, %61 : vector<2x32xf32>
    %63 = vector.extract_strided_slice %50 {offsets = [0, 64], sizes = [2, 32], strides = [1, 1]} : vector<2x128xf32> to vector<2x32xf32>
    %64 = math.tanh %63 : vector<2x32xf32>
    %65 = vector.extract_strided_slice %50 {offsets = [0, 96], sizes = [2, 32], strides = [1, 1]} : vector<2x128xf32> to vector<2x32xf32>
    %66 = arith.negf %65 : vector<2x32xf32>
    %67 = math.exp %66 : vector<2x32xf32>
    %cst_25 = arith.constant 1.000000e+00 : f32
    %68 = vector.broadcast %cst_25 : f32 to vector<2x32xf32>
    %69 = arith.addf %68, %67 : vector<2x32xf32>
    %70 = arith.divf %68, %69 : vector<2x32xf32>
    %71 = arith.mulf %62, %6 : vector<2x32xf32>
    %72 = arith.mulf %56, %64 : vector<2x32xf32>
    %73 = arith.addf %71, %72 : vector<2x32xf32>
    %74 = math.tanh %73 : vector<2x32xf32>
    %75 = arith.mulf %70, %74 : vector<2x32xf32>
    %76 = vector.extract_strided_slice %3 {offsets = [1, 0, 0], sizes = [1, 32, 128], strides = [1, 1, 1]} : vector<2x32x128xf32> to vector<1x32x128xf32>
    %77 = vector.shape_cast %76 : vector<1x32x128xf32> to vector<32x128xf32>
    %78 = vector.extract_strided_slice %4 {offsets = [1, 0, 0], sizes = [1, 32, 128], strides = [1, 1, 1]} : vector<2x32x128xf32> to vector<1x32x128xf32>
    %79 = vector.shape_cast %78 : vector<1x32x128xf32> to vector<32x128xf32>
    %80 = vector.extract_strided_slice %5 {offsets = [1, 0, 0], sizes = [1, 1, 128], strides = [1, 1, 1]} : vector<2x1x128xf32> to vector<1x1x128xf32>
    %81 = vector.shape_cast %80 : vector<1x1x128xf32> to vector<1x128xf32>
    %cst_26 = arith.constant dense<0.000000e+00> : vector<2x128xf32>
    %82 = tpu.matmul %75, %77, %cst_26 {dimension_numbers = #tpu.dot_dimension_numbers<[1], [0], [0], [1], [0, 0, 1, 1], [], []>} : vector<2x32xf32>, vector<32x128xf32>, vector<2x128xf32> -> vector<2x128xf32>
    %cst_27 = arith.constant dense<0.000000e+00> : vector<2x128xf32>
    %83 = tpu.matmul %6, %79, %cst_27 {dimension_numbers = #tpu.dot_dimension_numbers<[1], [0], [0], [1], [0, 0, 1, 1], [], []>} : vector<2x32xf32>, vector<32x128xf32>, vector<2x128xf32> -> vector<2x128xf32>
    %84 = arith.addf %82, %83 : vector<2x128xf32>
    %85 = vector.broadcast %81 : vector<1x128xf32> to vector<2x128xf32>
    %86 = arith.addf %84, %85 : vector<2x128xf32>
    %87 = vector.extract_strided_slice %86 {offsets = [0, 0], sizes = [2, 32], strides = [1, 1]} : vector<2x128xf32> to vector<2x32xf32>
    %88 = arith.negf %87 : vector<2x32xf32>
    %89 = math.exp %88 : vector<2x32xf32>
    %cst_28 = arith.constant 1.000000e+00 : f32
    %90 = vector.broadcast %cst_28 : f32 to vector<2x32xf32>
    %91 = arith.addf %90, %89 : vector<2x32xf32>
    %92 = arith.divf %90, %91 : vector<2x32xf32>
    %93 = vector.extract_strided_slice %86 {offsets = [0, 32], sizes = [2, 32], strides = [1, 1]} : vector<2x128xf32> to vector<2x32xf32>
    %94 = arith.negf %93 : vector<2x32xf32>
    %95 = math.exp %94 : vector<2x32xf32>
    %cst_29 = arith.constant 1.000000e+00 : f32
    %96 = vector.broadcast %cst_29 : f32 to vector<2x32xf32>
    %97 = arith.addf %96, %95 : vector<2x32xf32>
    %98 = arith.divf %96, %97 : vector<2x32xf32>
    %99 = vector.extract_strided_slice %86 {offsets = [0, 64], sizes = [2, 32], strides = [1, 1]} : vector<2x128xf32> to vector<2x32xf32>
    %100 = math.tanh %99 : vector<2x32xf32>
    %101 = vector.extract_strided_slice %86 {offsets = [0, 96], sizes = [2, 32], strides = [1, 1]} : vector<2x128xf32> to vector<2x32xf32>
    %102 = arith.negf %101 : vector<2x32xf32>
    %103 = math.exp %102 : vector<2x32xf32>
    %cst_30 = arith.constant 1.000000e+00 : f32
    %104 = vector.broadcast %cst_30 : f32 to vector<2x32xf32>
    %105 = arith.addf %104, %103 : vector<2x32xf32>
    %106 = arith.divf %104, %105 : vector<2x32xf32>
    %107 = arith.mulf %98, %6 : vector<2x32xf32>
    %108 = arith.mulf %92, %100 : vector<2x32xf32>
    %109 = arith.addf %107, %108 : vector<2x32xf32>
    %110 = math.tanh %109 : vector<2x32xf32>
    %111 = arith.mulf %106, %110 : vector<2x32xf32>
    %c1_i32 = arith.constant 1 : i32
    %112 = arith.index_cast %c1_i32 : i32 to index
    %c0_31 = arith.constant 0 : index
    %c0_32 = arith.constant 0 : index
    %113 = vector.load %arg0[%112, %c0_31, %c0_32] : memref<8x2x16xf32, #tpu.memory_space<vmem>>, vector<1x2x16xf32>
    %114 = vector.shape_cast %113 : vector<1x2x16xf32> to vector<2x16xf32>
    %cst_33 = arith.constant dense<0.000000e+00> : vector<2x128xf32>
    %115 = tpu.matmul %114, %0, %cst_33 {dimension_numbers = #tpu.dot_dimension_numbers<[1], [0], [0], [1], [0, 0, 1, 1], [], []>} : vector<2x16xf32>, vector<16x128xf32>, vector<2x128xf32> -> vector<2x128xf32>
    %cst_34 = arith.constant dense<0.000000e+00> : vector<2x128xf32>
    %116 = tpu.matmul %39, %1, %cst_34 {dimension_numbers = #tpu.dot_dimension_numbers<[1], [0], [0], [1], [0, 0, 1, 1], [], []>} : vector<2x32xf32>, vector<32x128xf32>, vector<2x128xf32> -> vector<2x128xf32>
    %117 = arith.addf %115, %116 : vector<2x128xf32>
    %118 = vector.broadcast %2 : vector<1x128xf32> to vector<2x128xf32>
    %119 = arith.addf %117, %118 : vector<2x128xf32>
    %120 = vector.extract_strided_slice %119 {offsets = [0, 0], sizes = [2, 32], strides = [1, 1]} : vector<2x128xf32> to vector<2x32xf32>
    %121 = arith.negf %120 : vector<2x32xf32>
    %122 = math.exp %121 : vector<2x32xf32>
    %cst_35 = arith.constant 1.000000e+00 : f32
    %123 = vector.broadcast %cst_35 : f32 to vector<2x32xf32>
    %124 = arith.addf %123, %122 : vector<2x32xf32>
    %125 = arith.divf %123, %124 : vector<2x32xf32>
    %126 = vector.extract_strided_slice %119 {offsets = [0, 32], sizes = [2, 32], strides = [1, 1]} : vector<2x128xf32> to vector<2x32xf32>
    %127 = arith.negf %126 : vector<2x32xf32>
    %128 = math.exp %127 : vector<2x32xf32>
    %cst_36 = arith.constant 1.000000e+00 : f32
    %129 = vector.broadcast %cst_36 : f32 to vector<2x32xf32>
    %130 = arith.addf %129, %128 : vector<2x32xf32>
    %131 = arith.divf %129, %130 : vector<2x32xf32>
    %132 = vector.extract_strided_slice %119 {offsets = [0, 64], sizes = [2, 32], strides = [1, 1]} : vector<2x128xf32> to vector<2x32xf32>
    %133 = math.tanh %132 : vector<2x32xf32>
    %134 = vector.extract_strided_slice %119 {offsets = [0, 96], sizes = [2, 32], strides = [1, 1]} : vector<2x128xf32> to vector<2x32xf32>
    %135 = arith.negf %134 : vector<2x32xf32>
    %136 = math.exp %135 : vector<2x32xf32>
    %cst_37 = arith.constant 1.000000e+00 : f32
    %137 = vector.broadcast %cst_37 : f32 to vector<2x32xf32>
    %138 = arith.addf %137, %136 : vector<2x32xf32>
    %139 = arith.divf %137, %138 : vector<2x32xf32>
    %140 = arith.mulf %131, %37 : vector<2x32xf32>
    %141 = arith.mulf %125, %133 : vector<2x32xf32>
    %142 = arith.addf %140, %141 : vector<2x32xf32>
    %143 = math.tanh %142 : vector<2x32xf32>
    %144 = arith.mulf %139, %143 : vector<2x32xf32>
    %145 = vector.extract_strided_slice %3 {offsets = [0, 0, 0], sizes = [1, 32, 128], strides = [1, 1, 1]} : vector<2x32x128xf32> to vector<1x32x128xf32>
    %146 = vector.shape_cast %145 : vector<1x32x128xf32> to vector<32x128xf32>
    %147 = vector.extract_strided_slice %4 {offsets = [0, 0, 0], sizes = [1, 32, 128], strides = [1, 1, 1]} : vector<2x32x128xf32> to vector<1x32x128xf32>
    %148 = vector.shape_cast %147 : vector<1x32x128xf32> to vector<32x128xf32>
    %149 = vector.extract_strided_slice %5 {offsets = [0, 0, 0], sizes = [1, 1, 128], strides = [1, 1, 1]} : vector<2x1x128xf32> to vector<1x1x128xf32>
    %150 = vector.shape_cast %149 : vector<1x1x128xf32> to vector<1x128xf32>
    %cst_38 = arith.constant dense<0.000000e+00> : vector<2x128xf32>
    %151 = tpu.matmul %144, %146, %cst_38 {dimension_numbers = #tpu.dot_dimension_numbers<[1], [0], [0], [1], [0, 0, 1, 1], [], []>} : vector<2x32xf32>, vector<32x128xf32>, vector<2x128xf32> -> vector<2x128xf32>
    %cst_39 = arith.constant dense<0.000000e+00> : vector<2x128xf32>
    %152 = tpu.matmul %75, %148, %cst_39 {dimension_numbers = #tpu.dot_dimension_numbers<[1], [0], [0], [1], [0, 0, 1, 1], [], []>} : vector<2x32xf32>, vector<32x128xf32>, vector<2x128xf32> -> vector<2x128xf32>
    %153 = arith.addf %151, %152 : vector<2x128xf32>
    %154 = vector.broadcast %150 : vector<1x128xf32> to vector<2x128xf32>
    %155 = arith.addf %153, %154 : vector<2x128xf32>
    %156 = vector.extract_strided_slice %155 {offsets = [0, 0], sizes = [2, 32], strides = [1, 1]} : vector<2x128xf32> to vector<2x32xf32>
    %157 = arith.negf %156 : vector<2x32xf32>
    %158 = math.exp %157 : vector<2x32xf32>
    %cst_40 = arith.constant 1.000000e+00 : f32
    %159 = vector.broadcast %cst_40 : f32 to vector<2x32xf32>
    %160 = arith.addf %159, %158 : vector<2x32xf32>
    %161 = arith.divf %159, %160 : vector<2x32xf32>
    %162 = vector.extract_strided_slice %155 {offsets = [0, 32], sizes = [2, 32], strides = [1, 1]} : vector<2x128xf32> to vector<2x32xf32>
    %163 = arith.negf %162 : vector<2x32xf32>
    %164 = math.exp %163 : vector<2x32xf32>
    %cst_41 = arith.constant 1.000000e+00 : f32
    %165 = vector.broadcast %cst_41 : f32 to vector<2x32xf32>
    %166 = arith.addf %165, %164 : vector<2x32xf32>
    %167 = arith.divf %165, %166 : vector<2x32xf32>
    %168 = vector.extract_strided_slice %155 {offsets = [0, 64], sizes = [2, 32], strides = [1, 1]} : vector<2x128xf32> to vector<2x32xf32>
    %169 = math.tanh %168 : vector<2x32xf32>
    %170 = vector.extract_strided_slice %155 {offsets = [0, 96], sizes = [2, 32], strides = [1, 1]} : vector<2x128xf32> to vector<2x32xf32>
    %171 = arith.negf %170 : vector<2x32xf32>
    %172 = math.exp %171 : vector<2x32xf32>
    %cst_42 = arith.constant 1.000000e+00 : f32
    %173 = vector.broadcast %cst_42 : f32 to vector<2x32xf32>
    %174 = arith.addf %173, %172 : vector<2x32xf32>
    %175 = arith.divf %173, %174 : vector<2x32xf32>
    %176 = arith.mulf %167, %73 : vector<2x32xf32>
    %177 = arith.mulf %161, %169 : vector<2x32xf32>
    %178 = arith.addf %176, %177 : vector<2x32xf32>
    %179 = math.tanh %178 : vector<2x32xf32>
    %180 = arith.mulf %175, %179 : vector<2x32xf32>
    %181 = vector.extract_strided_slice %3 {offsets = [1, 0, 0], sizes = [1, 32, 128], strides = [1, 1, 1]} : vector<2x32x128xf32> to vector<1x32x128xf32>
    %182 = vector.shape_cast %181 : vector<1x32x128xf32> to vector<32x128xf32>
    %183 = vector.extract_strided_slice %4 {offsets = [1, 0, 0], sizes = [1, 32, 128], strides = [1, 1, 1]} : vector<2x32x128xf32> to vector<1x32x128xf32>
    %184 = vector.shape_cast %183 : vector<1x32x128xf32> to vector<32x128xf32>
    %185 = vector.extract_strided_slice %5 {offsets = [1, 0, 0], sizes = [1, 1, 128], strides = [1, 1, 1]} : vector<2x1x128xf32> to vector<1x1x128xf32>
    %186 = vector.shape_cast %185 : vector<1x1x128xf32> to vector<1x128xf32>
    %cst_43 = arith.constant dense<0.000000e+00> : vector<2x128xf32>
    %187 = tpu.matmul %180, %182, %cst_43 {dimension_numbers = #tpu.dot_dimension_numbers<[1], [0], [0], [1], [0, 0, 1, 1], [], []>} : vector<2x32xf32>, vector<32x128xf32>, vector<2x128xf32> -> vector<2x128xf32>
    %cst_44 = arith.constant dense<0.000000e+00> : vector<2x128xf32>
    %188 = tpu.matmul %111, %184, %cst_44 {dimension_numbers = #tpu.dot_dimension_numbers<[1], [0], [0], [1], [0, 0, 1, 1], [], []>} : vector<2x32xf32>, vector<32x128xf32>, vector<2x128xf32> -> vector<2x128xf32>
    %189 = arith.addf %187, %188 : vector<2x128xf32>
    %190 = vector.broadcast %186 : vector<1x128xf32> to vector<2x128xf32>
    %191 = arith.addf %189, %190 : vector<2x128xf32>
    %192 = vector.extract_strided_slice %191 {offsets = [0, 0], sizes = [2, 32], strides = [1, 1]} : vector<2x128xf32> to vector<2x32xf32>
    %193 = arith.negf %192 : vector<2x32xf32>
    %194 = math.exp %193 : vector<2x32xf32>
    %cst_45 = arith.constant 1.000000e+00 : f32
    %195 = vector.broadcast %cst_45 : f32 to vector<2x32xf32>
    %196 = arith.addf %195, %194 : vector<2x32xf32>
    %197 = arith.divf %195, %196 : vector<2x32xf32>
    %198 = vector.extract_strided_slice %191 {offsets = [0, 32], sizes = [2, 32], strides = [1, 1]} : vector<2x128xf32> to vector<2x32xf32>
    %199 = arith.negf %198 : vector<2x32xf32>
    %200 = math.exp %199 : vector<2x32xf32>
    %cst_46 = arith.constant 1.000000e+00 : f32
    %201 = vector.broadcast %cst_46 : f32 to vector<2x32xf32>
    %202 = arith.addf %201, %200 : vector<2x32xf32>
    %203 = arith.divf %201, %202 : vector<2x32xf32>
    %204 = vector.extract_strided_slice %191 {offsets = [0, 64], sizes = [2, 32], strides = [1, 1]} : vector<2x128xf32> to vector<2x32xf32>
    %205 = math.tanh %204 : vector<2x32xf32>
    %206 = vector.extract_strided_slice %191 {offsets = [0, 96], sizes = [2, 32], strides = [1, 1]} : vector<2x128xf32> to vector<2x32xf32>
    %207 = arith.negf %206 : vector<2x32xf32>
    %208 = math.exp %207 : vector<2x32xf32>
    %cst_47 = arith.constant 1.000000e+00 : f32
    %209 = vector.broadcast %cst_47 : f32 to vector<2x32xf32>
    %210 = arith.addf %209, %208 : vector<2x32xf32>
    %211 = arith.divf %209, %210 : vector<2x32xf32>
    %212 = arith.mulf %203, %109 : vector<2x32xf32>
    %213 = arith.mulf %197, %205 : vector<2x32xf32>
    %214 = arith.addf %212, %213 : vector<2x32xf32>
    %215 = math.tanh %214 : vector<2x32xf32>
    %216 = arith.mulf %211, %215 : vector<2x32xf32>
    %c2_i32 = arith.constant 2 : i32
    %217 = arith.index_cast %c2_i32 : i32 to index
    %c0_48 = arith.constant 0 : index
    %c0_49 = arith.constant 0 : index
    %218 = vector.load %arg0[%217, %c0_48, %c0_49] : memref<8x2x16xf32, #tpu.memory_space<vmem>>, vector<1x2x16xf32>
    %219 = vector.shape_cast %218 : vector<1x2x16xf32> to vector<2x16xf32>
    %cst_50 = arith.constant dense<0.000000e+00> : vector<2x128xf32>
    %220 = tpu.matmul %219, %0, %cst_50 {dimension_numbers = #tpu.dot_dimension_numbers<[1], [0], [0], [1], [0, 0, 1, 1], [], []>} : vector<2x16xf32>, vector<16x128xf32>, vector<2x128xf32> -> vector<2x128xf32>
    %cst_51 = arith.constant dense<0.000000e+00> : vector<2x128xf32>
    %221 = tpu.matmul %144, %1, %cst_51 {dimension_numbers = #tpu.dot_dimension_numbers<[1], [0], [0], [1], [0, 0, 1, 1], [], []>} : vector<2x32xf32>, vector<32x128xf32>, vector<2x128xf32> -> vector<2x128xf32>
    %222 = arith.addf %220, %221 : vector<2x128xf32>
    %223 = vector.broadcast %2 : vector<1x128xf32> to vector<2x128xf32>
    %224 = arith.addf %222, %223 : vector<2x128xf32>
    %225 = vector.extract_strided_slice %224 {offsets = [0, 0], sizes = [2, 32], strides = [1, 1]} : vector<2x128xf32> to vector<2x32xf32>
    %226 = arith.negf %225 : vector<2x32xf32>
    %227 = math.exp %226 : vector<2x32xf32>
    %cst_52 = arith.constant 1.000000e+00 : f32
    %228 = vector.broadcast %cst_52 : f32 to vector<2x32xf32>
    %229 = arith.addf %228, %227 : vector<2x32xf32>
    %230 = arith.divf %228, %229 : vector<2x32xf32>
    %231 = vector.extract_strided_slice %224 {offsets = [0, 32], sizes = [2, 32], strides = [1, 1]} : vector<2x128xf32> to vector<2x32xf32>
    %232 = arith.negf %231 : vector<2x32xf32>
    %233 = math.exp %232 : vector<2x32xf32>
    %cst_53 = arith.constant 1.000000e+00 : f32
    %234 = vector.broadcast %cst_53 : f32 to vector<2x32xf32>
    %235 = arith.addf %234, %233 : vector<2x32xf32>
    %236 = arith.divf %234, %235 : vector<2x32xf32>
    %237 = vector.extract_strided_slice %224 {offsets = [0, 64], sizes = [2, 32], strides = [1, 1]} : vector<2x128xf32> to vector<2x32xf32>
    %238 = math.tanh %237 : vector<2x32xf32>
    %239 = vector.extract_strided_slice %224 {offsets = [0, 96], sizes = [2, 32], strides = [1, 1]} : vector<2x128xf32> to vector<2x32xf32>
    %240 = arith.negf %239 : vector<2x32xf32>
    %241 = math.exp %240 : vector<2x32xf32>
    %cst_54 = arith.constant 1.000000e+00 : f32
    %242 = vector.broadcast %cst_54 : f32 to vector<2x32xf32>
    %243 = arith.addf %242, %241 : vector<2x32xf32>
    %244 = arith.divf %242, %243 : vector<2x32xf32>
    %245 = arith.mulf %236, %142 : vector<2x32xf32>
    %246 = arith.mulf %230, %238 : vector<2x32xf32>
    %247 = arith.addf %245, %246 : vector<2x32xf32>
    %248 = math.tanh %247 : vector<2x32xf32>
    %249 = arith.mulf %244, %248 : vector<2x32xf32>
    %250 = vector.extract_strided_slice %3 {offsets = [0, 0, 0], sizes = [1, 32, 128], strides = [1, 1, 1]} : vector<2x32x128xf32> to vector<1x32x128xf32>
    %251 = vector.shape_cast %250 : vector<1x32x128xf32> to vector<32x128xf32>
    %252 = vector.extract_strided_slice %4 {offsets = [0, 0, 0], sizes = [1, 32, 128], strides = [1, 1, 1]} : vector<2x32x128xf32> to vector<1x32x128xf32>
    %253 = vector.shape_cast %252 : vector<1x32x128xf32> to vector<32x128xf32>
    %254 = vector.extract_strided_slice %5 {offsets = [0, 0, 0], sizes = [1, 1, 128], strides = [1, 1, 1]} : vector<2x1x128xf32> to vector<1x1x128xf32>
    %255 = vector.shape_cast %254 : vector<1x1x128xf32> to vector<1x128xf32>
    %cst_55 = arith.constant dense<0.000000e+00> : vector<2x128xf32>
    %256 = tpu.matmul %249, %251, %cst_55 {dimension_numbers = #tpu.dot_dimension_numbers<[1], [0], [0], [1], [0, 0, 1, 1], [], []>} : vector<2x32xf32>, vector<32x128xf32>, vector<2x128xf32> -> vector<2x128xf32>
    %cst_56 = arith.constant dense<0.000000e+00> : vector<2x128xf32>
    %257 = tpu.matmul %180, %253, %cst_56 {dimension_numbers = #tpu.dot_dimension_numbers<[1], [0], [0], [1], [0, 0, 1, 1], [], []>} : vector<2x32xf32>, vector<32x128xf32>, vector<2x128xf32> -> vector<2x128xf32>
    %258 = arith.addf %256, %257 : vector<2x128xf32>
    %259 = vector.broadcast %255 : vector<1x128xf32> to vector<2x128xf32>
    %260 = arith.addf %258, %259 : vector<2x128xf32>
    %261 = vector.extract_strided_slice %260 {offsets = [0, 0], sizes = [2, 32], strides = [1, 1]} : vector<2x128xf32> to vector<2x32xf32>
    %262 = arith.negf %261 : vector<2x32xf32>
    %263 = math.exp %262 : vector<2x32xf32>
    %cst_57 = arith.constant 1.000000e+00 : f32
    %264 = vector.broadcast %cst_57 : f32 to vector<2x32xf32>
    %265 = arith.addf %264, %263 : vector<2x32xf32>
    %266 = arith.divf %264, %265 : vector<2x32xf32>
    %267 = vector.extract_strided_slice %260 {offsets = [0, 32], sizes = [2, 32], strides = [1, 1]} : vector<2x128xf32> to vector<2x32xf32>
    %268 = arith.negf %267 : vector<2x32xf32>
    %269 = math.exp %268 : vector<2x32xf32>
    %cst_58 = arith.constant 1.000000e+00 : f32
    %270 = vector.broadcast %cst_58 : f32 to vector<2x32xf32>
    %271 = arith.addf %270, %269 : vector<2x32xf32>
    %272 = arith.divf %270, %271 : vector<2x32xf32>
    %273 = vector.extract_strided_slice %260 {offsets = [0, 64], sizes = [2, 32], strides = [1, 1]} : vector<2x128xf32> to vector<2x32xf32>
    %274 = math.tanh %273 : vector<2x32xf32>
    %275 = vector.extract_strided_slice %260 {offsets = [0, 96], sizes = [2, 32], strides = [1, 1]} : vector<2x128xf32> to vector<2x32xf32>
    %276 = arith.negf %275 : vector<2x32xf32>
    %277 = math.exp %276 : vector<2x32xf32>
    %cst_59 = arith.constant 1.000000e+00 : f32
    %278 = vector.broadcast %cst_59 : f32 to vector<2x32xf32>
    %279 = arith.addf %278, %277 : vector<2x32xf32>
    %280 = arith.divf %278, %279 : vector<2x32xf32>
    %281 = arith.mulf %272, %178 : vector<2x32xf32>
    %282 = arith.mulf %266, %274 : vector<2x32xf32>
    %283 = arith.addf %281, %282 : vector<2x32xf32>
    %284 = math.tanh %283 : vector<2x32xf32>
    %285 = arith.mulf %280, %284 : vector<2x32xf32>
    %286 = vector.extract_strided_slice %3 {offsets = [1, 0, 0], sizes = [1, 32, 128], strides = [1, 1, 1]} : vector<2x32x128xf32> to vector<1x32x128xf32>
    %287 = vector.shape_cast %286 : vector<1x32x128xf32> to vector<32x128xf32>
    %288 = vector.extract_strided_slice %4 {offsets = [1, 0, 0], sizes = [1, 32, 128], strides = [1, 1, 1]} : vector<2x32x128xf32> to vector<1x32x128xf32>
    %289 = vector.shape_cast %288 : vector<1x32x128xf32> to vector<32x128xf32>
    %290 = vector.extract_strided_slice %5 {offsets = [1, 0, 0], sizes = [1, 1, 128], strides = [1, 1, 1]} : vector<2x1x128xf32> to vector<1x1x128xf32>
    %291 = vector.shape_cast %290 : vector<1x1x128xf32> to vector<1x128xf32>
    %cst_60 = arith.constant dense<0.000000e+00> : vector<2x128xf32>
    %292 = tpu.matmul %285, %287, %cst_60 {dimension_numbers = #tpu.dot_dimension_numbers<[1], [0], [0], [1], [0, 0, 1, 1], [], []>} : vector<2x32xf32>, vector<32x128xf32>, vector<2x128xf32> -> vector<2x128xf32>
    %cst_61 = arith.constant dense<0.000000e+00> : vector<2x128xf32>
    %293 = tpu.matmul %216, %289, %cst_61 {dimension_numbers = #tpu.dot_dimension_numbers<[1], [0], [0], [1], [0, 0, 1, 1], [], []>} : vector<2x32xf32>, vector<32x128xf32>, vector<2x128xf32> -> vector<2x128xf32>
    %294 = arith.addf %292, %293 : vector<2x128xf32>
    %295 = vector.broadcast %291 : vector<1x128xf32> to vector<2x128xf32>
    %296 = arith.addf %294, %295 : vector<2x128xf32>
    %297 = vector.extract_strided_slice %296 {offsets = [0, 0], sizes = [2, 32], strides = [1, 1]} : vector<2x128xf32> to vector<2x32xf32>
    %298 = arith.negf %297 : vector<2x32xf32>
    %299 = math.exp %298 : vector<2x32xf32>
    %cst_62 = arith.constant 1.000000e+00 : f32
    %300 = vector.broadcast %cst_62 : f32 to vector<2x32xf32>
    %301 = arith.addf %300, %299 : vector<2x32xf32>
    %302 = arith.divf %300, %301 : vector<2x32xf32>
    %303 = vector.extract_strided_slice %296 {offsets = [0, 32], sizes = [2, 32], strides = [1, 1]} : vector<2x128xf32> to vector<2x32xf32>
    %304 = arith.negf %303 : vector<2x32xf32>
    %305 = math.exp %304 : vector<2x32xf32>
    %cst_63 = arith.constant 1.000000e+00 : f32
    %306 = vector.broadcast %cst_63 : f32 to vector<2x32xf32>
    %307 = arith.addf %306, %305 : vector<2x32xf32>
    %308 = arith.divf %306, %307 : vector<2x32xf32>
    %309 = vector.extract_strided_slice %296 {offsets = [0, 64], sizes = [2, 32], strides = [1, 1]} : vector<2x128xf32> to vector<2x32xf32>
    %310 = math.tanh %309 : vector<2x32xf32>
    %311 = vector.extract_strided_slice %296 {offsets = [0, 96], sizes = [2, 32], strides = [1, 1]} : vector<2x128xf32> to vector<2x32xf32>
    %312 = arith.negf %311 : vector<2x32xf32>
    %313 = math.exp %312 : vector<2x32xf32>
    %cst_64 = arith.constant 1.000000e+00 : f32
    %314 = vector.broadcast %cst_64 : f32 to vector<2x32xf32>
    %315 = arith.addf %314, %313 : vector<2x32xf32>
    %316 = arith.divf %314, %315 : vector<2x32xf32>
    %317 = arith.mulf %308, %214 : vector<2x32xf32>
    %318 = arith.mulf %302, %310 : vector<2x32xf32>
    %319 = arith.addf %317, %318 : vector<2x32xf32>
    %320 = math.tanh %319 : vector<2x32xf32>
    %321 = arith.mulf %316, %320 : vector<2x32xf32>
    %c3_i32 = arith.constant 3 : i32
    %322 = arith.index_cast %c3_i32 : i32 to index
    %c0_65 = arith.constant 0 : index
    %c0_66 = arith.constant 0 : index
    %323 = vector.load %arg0[%322, %c0_65, %c0_66] : memref<8x2x16xf32, #tpu.memory_space<vmem>>, vector<1x2x16xf32>
    %324 = vector.shape_cast %323 : vector<1x2x16xf32> to vector<2x16xf32>
    %cst_67 = arith.constant dense<0.000000e+00> : vector<2x128xf32>
    %325 = tpu.matmul %324, %0, %cst_67 {dimension_numbers = #tpu.dot_dimension_numbers<[1], [0], [0], [1], [0, 0, 1, 1], [], []>} : vector<2x16xf32>, vector<16x128xf32>, vector<2x128xf32> -> vector<2x128xf32>
    %cst_68 = arith.constant dense<0.000000e+00> : vector<2x128xf32>
    %326 = tpu.matmul %249, %1, %cst_68 {dimension_numbers = #tpu.dot_dimension_numbers<[1], [0], [0], [1], [0, 0, 1, 1], [], []>} : vector<2x32xf32>, vector<32x128xf32>, vector<2x128xf32> -> vector<2x128xf32>
    %327 = arith.addf %325, %326 : vector<2x128xf32>
    %328 = vector.broadcast %2 : vector<1x128xf32> to vector<2x128xf32>
    %329 = arith.addf %327, %328 : vector<2x128xf32>
    %330 = vector.extract_strided_slice %329 {offsets = [0, 0], sizes = [2, 32], strides = [1, 1]} : vector<2x128xf32> to vector<2x32xf32>
    %331 = arith.negf %330 : vector<2x32xf32>
    %332 = math.exp %331 : vector<2x32xf32>
    %cst_69 = arith.constant 1.000000e+00 : f32
    %333 = vector.broadcast %cst_69 : f32 to vector<2x32xf32>
    %334 = arith.addf %333, %332 : vector<2x32xf32>
    %335 = arith.divf %333, %334 : vector<2x32xf32>
    %336 = vector.extract_strided_slice %329 {offsets = [0, 32], sizes = [2, 32], strides = [1, 1]} : vector<2x128xf32> to vector<2x32xf32>
    %337 = arith.negf %336 : vector<2x32xf32>
    %338 = math.exp %337 : vector<2x32xf32>
    %cst_70 = arith.constant 1.000000e+00 : f32
    %339 = vector.broadcast %cst_70 : f32 to vector<2x32xf32>
    %340 = arith.addf %339, %338 : vector<2x32xf32>
    %341 = arith.divf %339, %340 : vector<2x32xf32>
    %342 = vector.extract_strided_slice %329 {offsets = [0, 64], sizes = [2, 32], strides = [1, 1]} : vector<2x128xf32> to vector<2x32xf32>
    %343 = math.tanh %342 : vector<2x32xf32>
    %344 = vector.extract_strided_slice %329 {offsets = [0, 96], sizes = [2, 32], strides = [1, 1]} : vector<2x128xf32> to vector<2x32xf32>
    %345 = arith.negf %344 : vector<2x32xf32>
    %346 = math.exp %345 : vector<2x32xf32>
    %cst_71 = arith.constant 1.000000e+00 : f32
    %347 = vector.broadcast %cst_71 : f32 to vector<2x32xf32>
    %348 = arith.addf %347, %346 : vector<2x32xf32>
    %349 = arith.divf %347, %348 : vector<2x32xf32>
    %350 = arith.mulf %341, %247 : vector<2x32xf32>
    %351 = arith.mulf %335, %343 : vector<2x32xf32>
    %352 = arith.addf %350, %351 : vector<2x32xf32>
    %353 = math.tanh %352 : vector<2x32xf32>
    %354 = arith.mulf %349, %353 : vector<2x32xf32>
    %355 = vector.extract_strided_slice %3 {offsets = [0, 0, 0], sizes = [1, 32, 128], strides = [1, 1, 1]} : vector<2x32x128xf32> to vector<1x32x128xf32>
    %356 = vector.shape_cast %355 : vector<1x32x128xf32> to vector<32x128xf32>
    %357 = vector.extract_strided_slice %4 {offsets = [0, 0, 0], sizes = [1, 32, 128], strides = [1, 1, 1]} : vector<2x32x128xf32> to vector<1x32x128xf32>
    %358 = vector.shape_cast %357 : vector<1x32x128xf32> to vector<32x128xf32>
    %359 = vector.extract_strided_slice %5 {offsets = [0, 0, 0], sizes = [1, 1, 128], strides = [1, 1, 1]} : vector<2x1x128xf32> to vector<1x1x128xf32>
    %360 = vector.shape_cast %359 : vector<1x1x128xf32> to vector<1x128xf32>
    %cst_72 = arith.constant dense<0.000000e+00> : vector<2x128xf32>
    %361 = tpu.matmul %354, %356, %cst_72 {dimension_numbers = #tpu.dot_dimension_numbers<[1], [0], [0], [1], [0, 0, 1, 1], [], []>} : vector<2x32xf32>, vector<32x128xf32>, vector<2x128xf32> -> vector<2x128xf32>
    %cst_73 = arith.constant dense<0.000000e+00> : vector<2x128xf32>
    %362 = tpu.matmul %285, %358, %cst_73 {dimension_numbers = #tpu.dot_dimension_numbers<[1], [0], [0], [1], [0, 0, 1, 1], [], []>} : vector<2x32xf32>, vector<32x128xf32>, vector<2x128xf32> -> vector<2x128xf32>
    %363 = arith.addf %361, %362 : vector<2x128xf32>
    %364 = vector.broadcast %360 : vector<1x128xf32> to vector<2x128xf32>
    %365 = arith.addf %363, %364 : vector<2x128xf32>
    %366 = vector.extract_strided_slice %365 {offsets = [0, 0], sizes = [2, 32], strides = [1, 1]} : vector<2x128xf32> to vector<2x32xf32>
    %367 = arith.negf %366 : vector<2x32xf32>
    %368 = math.exp %367 : vector<2x32xf32>
    %cst_74 = arith.constant 1.000000e+00 : f32
    %369 = vector.broadcast %cst_74 : f32 to vector<2x32xf32>
    %370 = arith.addf %369, %368 : vector<2x32xf32>
    %371 = arith.divf %369, %370 : vector<2x32xf32>
    %372 = vector.extract_strided_slice %365 {offsets = [0, 32], sizes = [2, 32], strides = [1, 1]} : vector<2x128xf32> to vector<2x32xf32>
    %373 = arith.negf %372 : vector<2x32xf32>
    %374 = math.exp %373 : vector<2x32xf32>
    %cst_75 = arith.constant 1.000000e+00 : f32
    %375 = vector.broadcast %cst_75 : f32 to vector<2x32xf32>
    %376 = arith.addf %375, %374 : vector<2x32xf32>
    %377 = arith.divf %375, %376 : vector<2x32xf32>
    %378 = vector.extract_strided_slice %365 {offsets = [0, 64], sizes = [2, 32], strides = [1, 1]} : vector<2x128xf32> to vector<2x32xf32>
    %379 = math.tanh %378 : vector<2x32xf32>
    %380 = vector.extract_strided_slice %365 {offsets = [0, 96], sizes = [2, 32], strides = [1, 1]} : vector<2x128xf32> to vector<2x32xf32>
    %381 = arith.negf %380 : vector<2x32xf32>
    %382 = math.exp %381 : vector<2x32xf32>
    %cst_76 = arith.constant 1.000000e+00 : f32
    %383 = vector.broadcast %cst_76 : f32 to vector<2x32xf32>
    %384 = arith.addf %383, %382 : vector<2x32xf32>
    %385 = arith.divf %383, %384 : vector<2x32xf32>
    %386 = arith.mulf %377, %283 : vector<2x32xf32>
    %387 = arith.mulf %371, %379 : vector<2x32xf32>
    %388 = arith.addf %386, %387 : vector<2x32xf32>
    %389 = math.tanh %388 : vector<2x32xf32>
    %390 = arith.mulf %385, %389 : vector<2x32xf32>
    %391 = vector.extract_strided_slice %3 {offsets = [1, 0, 0], sizes = [1, 32, 128], strides = [1, 1, 1]} : vector<2x32x128xf32> to vector<1x32x128xf32>
    %392 = vector.shape_cast %391 : vector<1x32x128xf32> to vector<32x128xf32>
    %393 = vector.extract_strided_slice %4 {offsets = [1, 0, 0], sizes = [1, 32, 128], strides = [1, 1, 1]} : vector<2x32x128xf32> to vector<1x32x128xf32>
    %394 = vector.shape_cast %393 : vector<1x32x128xf32> to vector<32x128xf32>
    %395 = vector.extract_strided_slice %5 {offsets = [1, 0, 0], sizes = [1, 1, 128], strides = [1, 1, 1]} : vector<2x1x128xf32> to vector<1x1x128xf32>
    %396 = vector.shape_cast %395 : vector<1x1x128xf32> to vector<1x128xf32>
    %cst_77 = arith.constant dense<0.000000e+00> : vector<2x128xf32>
    %397 = tpu.matmul %390, %392, %cst_77 {dimension_numbers = #tpu.dot_dimension_numbers<[1], [0], [0], [1], [0, 0, 1, 1], [], []>} : vector<2x32xf32>, vector<32x128xf32>, vector<2x128xf32> -> vector<2x128xf32>
    %cst_78 = arith.constant dense<0.000000e+00> : vector<2x128xf32>
    %398 = tpu.matmul %321, %394, %cst_78 {dimension_numbers = #tpu.dot_dimension_numbers<[1], [0], [0], [1], [0, 0, 1, 1], [], []>} : vector<2x32xf32>, vector<32x128xf32>, vector<2x128xf32> -> vector<2x128xf32>
    %399 = arith.addf %397, %398 : vector<2x128xf32>
    %400 = vector.broadcast %396 : vector<1x128xf32> to vector<2x128xf32>
    %401 = arith.addf %399, %400 : vector<2x128xf32>
    %402 = vector.extract_strided_slice %401 {offsets = [0, 0], sizes = [2, 32], strides = [1, 1]} : vector<2x128xf32> to vector<2x32xf32>
    %403 = arith.negf %402 : vector<2x32xf32>
    %404 = math.exp %403 : vector<2x32xf32>
    %cst_79 = arith.constant 1.000000e+00 : f32
    %405 = vector.broadcast %cst_79 : f32 to vector<2x32xf32>
    %406 = arith.addf %405, %404 : vector<2x32xf32>
    %407 = arith.divf %405, %406 : vector<2x32xf32>
    %408 = vector.extract_strided_slice %401 {offsets = [0, 32], sizes = [2, 32], strides = [1, 1]} : vector<2x128xf32> to vector<2x32xf32>
    %409 = arith.negf %408 : vector<2x32xf32>
    %410 = math.exp %409 : vector<2x32xf32>
    %cst_80 = arith.constant 1.000000e+00 : f32
    %411 = vector.broadcast %cst_80 : f32 to vector<2x32xf32>
    %412 = arith.addf %411, %410 : vector<2x32xf32>
    %413 = arith.divf %411, %412 : vector<2x32xf32>
    %414 = vector.extract_strided_slice %401 {offsets = [0, 64], sizes = [2, 32], strides = [1, 1]} : vector<2x128xf32> to vector<2x32xf32>
    %415 = math.tanh %414 : vector<2x32xf32>
    %416 = vector.extract_strided_slice %401 {offsets = [0, 96], sizes = [2, 32], strides = [1, 1]} : vector<2x128xf32> to vector<2x32xf32>
    %417 = arith.negf %416 : vector<2x32xf32>
    %418 = math.exp %417 : vector<2x32xf32>
    %cst_81 = arith.constant 1.000000e+00 : f32
    %419 = vector.broadcast %cst_81 : f32 to vector<2x32xf32>
    %420 = arith.addf %419, %418 : vector<2x32xf32>
    %421 = arith.divf %419, %420 : vector<2x32xf32>
    %422 = arith.mulf %413, %319 : vector<2x32xf32>
    %423 = arith.mulf %407, %415 : vector<2x32xf32>
    %424 = arith.addf %422, %423 : vector<2x32xf32>
    %425 = math.tanh %424 : vector<2x32xf32>
    %426 = arith.mulf %421, %425 : vector<2x32xf32>
    %c4_i32 = arith.constant 4 : i32
    %427 = arith.index_cast %c4_i32 : i32 to index
    %c0_82 = arith.constant 0 : index
    %c0_83 = arith.constant 0 : index
    %428 = vector.load %arg0[%427, %c0_82, %c0_83] : memref<8x2x16xf32, #tpu.memory_space<vmem>>, vector<1x2x16xf32>
    %429 = vector.shape_cast %428 : vector<1x2x16xf32> to vector<2x16xf32>
    %cst_84 = arith.constant dense<0.000000e+00> : vector<2x128xf32>
    %430 = tpu.matmul %429, %0, %cst_84 {dimension_numbers = #tpu.dot_dimension_numbers<[1], [0], [0], [1], [0, 0, 1, 1], [], []>} : vector<2x16xf32>, vector<16x128xf32>, vector<2x128xf32> -> vector<2x128xf32>
    %cst_85 = arith.constant dense<0.000000e+00> : vector<2x128xf32>
    %431 = tpu.matmul %354, %1, %cst_85 {dimension_numbers = #tpu.dot_dimension_numbers<[1], [0], [0], [1], [0, 0, 1, 1], [], []>} : vector<2x32xf32>, vector<32x128xf32>, vector<2x128xf32> -> vector<2x128xf32>
    %432 = arith.addf %430, %431 : vector<2x128xf32>
    %433 = vector.broadcast %2 : vector<1x128xf32> to vector<2x128xf32>
    %434 = arith.addf %432, %433 : vector<2x128xf32>
    %435 = vector.extract_strided_slice %434 {offsets = [0, 0], sizes = [2, 32], strides = [1, 1]} : vector<2x128xf32> to vector<2x32xf32>
    %436 = arith.negf %435 : vector<2x32xf32>
    %437 = math.exp %436 : vector<2x32xf32>
    %cst_86 = arith.constant 1.000000e+00 : f32
    %438 = vector.broadcast %cst_86 : f32 to vector<2x32xf32>
    %439 = arith.addf %438, %437 : vector<2x32xf32>
    %440 = arith.divf %438, %439 : vector<2x32xf32>
    %441 = vector.extract_strided_slice %434 {offsets = [0, 32], sizes = [2, 32], strides = [1, 1]} : vector<2x128xf32> to vector<2x32xf32>
    %442 = arith.negf %441 : vector<2x32xf32>
    %443 = math.exp %442 : vector<2x32xf32>
    %cst_87 = arith.constant 1.000000e+00 : f32
    %444 = vector.broadcast %cst_87 : f32 to vector<2x32xf32>
    %445 = arith.addf %444, %443 : vector<2x32xf32>
    %446 = arith.divf %444, %445 : vector<2x32xf32>
    %447 = vector.extract_strided_slice %434 {offsets = [0, 64], sizes = [2, 32], strides = [1, 1]} : vector<2x128xf32> to vector<2x32xf32>
    %448 = math.tanh %447 : vector<2x32xf32>
    %449 = vector.extract_strided_slice %434 {offsets = [0, 96], sizes = [2, 32], strides = [1, 1]} : vector<2x128xf32> to vector<2x32xf32>
    %450 = arith.negf %449 : vector<2x32xf32>
    %451 = math.exp %450 : vector<2x32xf32>
    %cst_88 = arith.constant 1.000000e+00 : f32
    %452 = vector.broadcast %cst_88 : f32 to vector<2x32xf32>
    %453 = arith.addf %452, %451 : vector<2x32xf32>
    %454 = arith.divf %452, %453 : vector<2x32xf32>
    %455 = arith.mulf %446, %352 : vector<2x32xf32>
    %456 = arith.mulf %440, %448 : vector<2x32xf32>
    %457 = arith.addf %455, %456 : vector<2x32xf32>
    %458 = math.tanh %457 : vector<2x32xf32>
    %459 = arith.mulf %454, %458 : vector<2x32xf32>
    %460 = vector.extract_strided_slice %3 {offsets = [0, 0, 0], sizes = [1, 32, 128], strides = [1, 1, 1]} : vector<2x32x128xf32> to vector<1x32x128xf32>
    %461 = vector.shape_cast %460 : vector<1x32x128xf32> to vector<32x128xf32>
    %462 = vector.extract_strided_slice %4 {offsets = [0, 0, 0], sizes = [1, 32, 128], strides = [1, 1, 1]} : vector<2x32x128xf32> to vector<1x32x128xf32>
    %463 = vector.shape_cast %462 : vector<1x32x128xf32> to vector<32x128xf32>
    %464 = vector.extract_strided_slice %5 {offsets = [0, 0, 0], sizes = [1, 1, 128], strides = [1, 1, 1]} : vector<2x1x128xf32> to vector<1x1x128xf32>
    %465 = vector.shape_cast %464 : vector<1x1x128xf32> to vector<1x128xf32>
    %cst_89 = arith.constant dense<0.000000e+00> : vector<2x128xf32>
    %466 = tpu.matmul %459, %461, %cst_89 {dimension_numbers = #tpu.dot_dimension_numbers<[1], [0], [0], [1], [0, 0, 1, 1], [], []>} : vector<2x32xf32>, vector<32x128xf32>, vector<2x128xf32> -> vector<2x128xf32>
    %cst_90 = arith.constant dense<0.000000e+00> : vector<2x128xf32>
    %467 = tpu.matmul %390, %463, %cst_90 {dimension_numbers = #tpu.dot_dimension_numbers<[1], [0], [0], [1], [0, 0, 1, 1], [], []>} : vector<2x32xf32>, vector<32x128xf32>, vector<2x128xf32> -> vector<2x128xf32>
    %468 = arith.addf %466, %467 : vector<2x128xf32>
    %469 = vector.broadcast %465 : vector<1x128xf32> to vector<2x128xf32>
    %470 = arith.addf %468, %469 : vector<2x128xf32>
    %471 = vector.extract_strided_slice %470 {offsets = [0, 0], sizes = [2, 32], strides = [1, 1]} : vector<2x128xf32> to vector<2x32xf32>
    %472 = arith.negf %471 : vector<2x32xf32>
    %473 = math.exp %472 : vector<2x32xf32>
    %cst_91 = arith.constant 1.000000e+00 : f32
    %474 = vector.broadcast %cst_91 : f32 to vector<2x32xf32>
    %475 = arith.addf %474, %473 : vector<2x32xf32>
    %476 = arith.divf %474, %475 : vector<2x32xf32>
    %477 = vector.extract_strided_slice %470 {offsets = [0, 32], sizes = [2, 32], strides = [1, 1]} : vector<2x128xf32> to vector<2x32xf32>
    %478 = arith.negf %477 : vector<2x32xf32>
    %479 = math.exp %478 : vector<2x32xf32>
    %cst_92 = arith.constant 1.000000e+00 : f32
    %480 = vector.broadcast %cst_92 : f32 to vector<2x32xf32>
    %481 = arith.addf %480, %479 : vector<2x32xf32>
    %482 = arith.divf %480, %481 : vector<2x32xf32>
    %483 = vector.extract_strided_slice %470 {offsets = [0, 64], sizes = [2, 32], strides = [1, 1]} : vector<2x128xf32> to vector<2x32xf32>
    %484 = math.tanh %483 : vector<2x32xf32>
    %485 = vector.extract_strided_slice %470 {offsets = [0, 96], sizes = [2, 32], strides = [1, 1]} : vector<2x128xf32> to vector<2x32xf32>
    %486 = arith.negf %485 : vector<2x32xf32>
    %487 = math.exp %486 : vector<2x32xf32>
    %cst_93 = arith.constant 1.000000e+00 : f32
    %488 = vector.broadcast %cst_93 : f32 to vector<2x32xf32>
    %489 = arith.addf %488, %487 : vector<2x32xf32>
    %490 = arith.divf %488, %489 : vector<2x32xf32>
    %491 = arith.mulf %482, %388 : vector<2x32xf32>
    %492 = arith.mulf %476, %484 : vector<2x32xf32>
    %493 = arith.addf %491, %492 : vector<2x32xf32>
    %494 = math.tanh %493 : vector<2x32xf32>
    %495 = arith.mulf %490, %494 : vector<2x32xf32>
    %496 = vector.extract_strided_slice %3 {offsets = [1, 0, 0], sizes = [1, 32, 128], strides = [1, 1, 1]} : vector<2x32x128xf32> to vector<1x32x128xf32>
    %497 = vector.shape_cast %496 : vector<1x32x128xf32> to vector<32x128xf32>
    %498 = vector.extract_strided_slice %4 {offsets = [1, 0, 0], sizes = [1, 32, 128], strides = [1, 1, 1]} : vector<2x32x128xf32> to vector<1x32x128xf32>
    %499 = vector.shape_cast %498 : vector<1x32x128xf32> to vector<32x128xf32>
    %500 = vector.extract_strided_slice %5 {offsets = [1, 0, 0], sizes = [1, 1, 128], strides = [1, 1, 1]} : vector<2x1x128xf32> to vector<1x1x128xf32>
    %501 = vector.shape_cast %500 : vector<1x1x128xf32> to vector<1x128xf32>
    %cst_94 = arith.constant dense<0.000000e+00> : vector<2x128xf32>
    %502 = tpu.matmul %495, %497, %cst_94 {dimension_numbers = #tpu.dot_dimension_numbers<[1], [0], [0], [1], [0, 0, 1, 1], [], []>} : vector<2x32xf32>, vector<32x128xf32>, vector<2x128xf32> -> vector<2x128xf32>
    %cst_95 = arith.constant dense<0.000000e+00> : vector<2x128xf32>
    %503 = tpu.matmul %426, %499, %cst_95 {dimension_numbers = #tpu.dot_dimension_numbers<[1], [0], [0], [1], [0, 0, 1, 1], [], []>} : vector<2x32xf32>, vector<32x128xf32>, vector<2x128xf32> -> vector<2x128xf32>
    %504 = arith.addf %502, %503 : vector<2x128xf32>
    %505 = vector.broadcast %501 : vector<1x128xf32> to vector<2x128xf32>
    %506 = arith.addf %504, %505 : vector<2x128xf32>
    %507 = vector.extract_strided_slice %506 {offsets = [0, 0], sizes = [2, 32], strides = [1, 1]} : vector<2x128xf32> to vector<2x32xf32>
    %508 = arith.negf %507 : vector<2x32xf32>
    %509 = math.exp %508 : vector<2x32xf32>
    %cst_96 = arith.constant 1.000000e+00 : f32
    %510 = vector.broadcast %cst_96 : f32 to vector<2x32xf32>
    %511 = arith.addf %510, %509 : vector<2x32xf32>
    %512 = arith.divf %510, %511 : vector<2x32xf32>
    %513 = vector.extract_strided_slice %506 {offsets = [0, 32], sizes = [2, 32], strides = [1, 1]} : vector<2x128xf32> to vector<2x32xf32>
    %514 = arith.negf %513 : vector<2x32xf32>
    %515 = math.exp %514 : vector<2x32xf32>
    %cst_97 = arith.constant 1.000000e+00 : f32
    %516 = vector.broadcast %cst_97 : f32 to vector<2x32xf32>
    %517 = arith.addf %516, %515 : vector<2x32xf32>
    %518 = arith.divf %516, %517 : vector<2x32xf32>
    %519 = vector.extract_strided_slice %506 {offsets = [0, 64], sizes = [2, 32], strides = [1, 1]} : vector<2x128xf32> to vector<2x32xf32>
    %520 = math.tanh %519 : vector<2x32xf32>
    %521 = vector.extract_strided_slice %506 {offsets = [0, 96], sizes = [2, 32], strides = [1, 1]} : vector<2x128xf32> to vector<2x32xf32>
    %522 = arith.negf %521 : vector<2x32xf32>
    %523 = math.exp %522 : vector<2x32xf32>
    %cst_98 = arith.constant 1.000000e+00 : f32
    %524 = vector.broadcast %cst_98 : f32 to vector<2x32xf32>
    %525 = arith.addf %524, %523 : vector<2x32xf32>
    %526 = arith.divf %524, %525 : vector<2x32xf32>
    %527 = arith.mulf %518, %424 : vector<2x32xf32>
    %528 = arith.mulf %512, %520 : vector<2x32xf32>
    %529 = arith.addf %527, %528 : vector<2x32xf32>
    %530 = math.tanh %529 : vector<2x32xf32>
    %531 = arith.mulf %526, %530 : vector<2x32xf32>
    %c5_i32 = arith.constant 5 : i32
    %532 = arith.index_cast %c5_i32 : i32 to index
    %c0_99 = arith.constant 0 : index
    %c0_100 = arith.constant 0 : index
    %533 = vector.load %arg0[%532, %c0_99, %c0_100] : memref<8x2x16xf32, #tpu.memory_space<vmem>>, vector<1x2x16xf32>
    %534 = vector.shape_cast %533 : vector<1x2x16xf32> to vector<2x16xf32>
    %cst_101 = arith.constant dense<0.000000e+00> : vector<2x128xf32>
    %535 = tpu.matmul %534, %0, %cst_101 {dimension_numbers = #tpu.dot_dimension_numbers<[1], [0], [0], [1], [0, 0, 1, 1], [], []>} : vector<2x16xf32>, vector<16x128xf32>, vector<2x128xf32> -> vector<2x128xf32>
    %cst_102 = arith.constant dense<0.000000e+00> : vector<2x128xf32>
    %536 = tpu.matmul %459, %1, %cst_102 {dimension_numbers = #tpu.dot_dimension_numbers<[1], [0], [0], [1], [0, 0, 1, 1], [], []>} : vector<2x32xf32>, vector<32x128xf32>, vector<2x128xf32> -> vector<2x128xf32>
    %537 = arith.addf %535, %536 : vector<2x128xf32>
    %538 = vector.broadcast %2 : vector<1x128xf32> to vector<2x128xf32>
    %539 = arith.addf %537, %538 : vector<2x128xf32>
    %540 = vector.extract_strided_slice %539 {offsets = [0, 0], sizes = [2, 32], strides = [1, 1]} : vector<2x128xf32> to vector<2x32xf32>
    %541 = arith.negf %540 : vector<2x32xf32>
    %542 = math.exp %541 : vector<2x32xf32>
    %cst_103 = arith.constant 1.000000e+00 : f32
    %543 = vector.broadcast %cst_103 : f32 to vector<2x32xf32>
    %544 = arith.addf %543, %542 : vector<2x32xf32>
    %545 = arith.divf %543, %544 : vector<2x32xf32>
    %546 = vector.extract_strided_slice %539 {offsets = [0, 32], sizes = [2, 32], strides = [1, 1]} : vector<2x128xf32> to vector<2x32xf32>
    %547 = arith.negf %546 : vector<2x32xf32>
    %548 = math.exp %547 : vector<2x32xf32>
    %cst_104 = arith.constant 1.000000e+00 : f32
    %549 = vector.broadcast %cst_104 : f32 to vector<2x32xf32>
    %550 = arith.addf %549, %548 : vector<2x32xf32>
    %551 = arith.divf %549, %550 : vector<2x32xf32>
    %552 = vector.extract_strided_slice %539 {offsets = [0, 64], sizes = [2, 32], strides = [1, 1]} : vector<2x128xf32> to vector<2x32xf32>
    %553 = math.tanh %552 : vector<2x32xf32>
    %554 = vector.extract_strided_slice %539 {offsets = [0, 96], sizes = [2, 32], strides = [1, 1]} : vector<2x128xf32> to vector<2x32xf32>
    %555 = arith.negf %554 : vector<2x32xf32>
    %556 = math.exp %555 : vector<2x32xf32>
    %cst_105 = arith.constant 1.000000e+00 : f32
    %557 = vector.broadcast %cst_105 : f32 to vector<2x32xf32>
    %558 = arith.addf %557, %556 : vector<2x32xf32>
    %559 = arith.divf %557, %558 : vector<2x32xf32>
    %560 = arith.mulf %551, %457 : vector<2x32xf32>
    %561 = arith.mulf %545, %553 : vector<2x32xf32>
    %562 = arith.addf %560, %561 : vector<2x32xf32>
    %563 = math.tanh %562 : vector<2x32xf32>
    %564 = arith.mulf %559, %563 : vector<2x32xf32>
    %565 = vector.extract_strided_slice %3 {offsets = [0, 0, 0], sizes = [1, 32, 128], strides = [1, 1, 1]} : vector<2x32x128xf32> to vector<1x32x128xf32>
    %566 = vector.shape_cast %565 : vector<1x32x128xf32> to vector<32x128xf32>
    %567 = vector.extract_strided_slice %4 {offsets = [0, 0, 0], sizes = [1, 32, 128], strides = [1, 1, 1]} : vector<2x32x128xf32> to vector<1x32x128xf32>
    %568 = vector.shape_cast %567 : vector<1x32x128xf32> to vector<32x128xf32>
    %569 = vector.extract_strided_slice %5 {offsets = [0, 0, 0], sizes = [1, 1, 128], strides = [1, 1, 1]} : vector<2x1x128xf32> to vector<1x1x128xf32>
    %570 = vector.shape_cast %569 : vector<1x1x128xf32> to vector<1x128xf32>
    %cst_106 = arith.constant dense<0.000000e+00> : vector<2x128xf32>
    %571 = tpu.matmul %564, %566, %cst_106 {dimension_numbers = #tpu.dot_dimension_numbers<[1], [0], [0], [1], [0, 0, 1, 1], [], []>} : vector<2x32xf32>, vector<32x128xf32>, vector<2x128xf32> -> vector<2x128xf32>
    %cst_107 = arith.constant dense<0.000000e+00> : vector<2x128xf32>
    %572 = tpu.matmul %495, %568, %cst_107 {dimension_numbers = #tpu.dot_dimension_numbers<[1], [0], [0], [1], [0, 0, 1, 1], [], []>} : vector<2x32xf32>, vector<32x128xf32>, vector<2x128xf32> -> vector<2x128xf32>
    %573 = arith.addf %571, %572 : vector<2x128xf32>
    %574 = vector.broadcast %570 : vector<1x128xf32> to vector<2x128xf32>
    %575 = arith.addf %573, %574 : vector<2x128xf32>
    %576 = vector.extract_strided_slice %575 {offsets = [0, 0], sizes = [2, 32], strides = [1, 1]} : vector<2x128xf32> to vector<2x32xf32>
    %577 = arith.negf %576 : vector<2x32xf32>
    %578 = math.exp %577 : vector<2x32xf32>
    %cst_108 = arith.constant 1.000000e+00 : f32
    %579 = vector.broadcast %cst_108 : f32 to vector<2x32xf32>
    %580 = arith.addf %579, %578 : vector<2x32xf32>
    %581 = arith.divf %579, %580 : vector<2x32xf32>
    %582 = vector.extract_strided_slice %575 {offsets = [0, 32], sizes = [2, 32], strides = [1, 1]} : vector<2x128xf32> to vector<2x32xf32>
    %583 = arith.negf %582 : vector<2x32xf32>
    %584 = math.exp %583 : vector<2x32xf32>
    %cst_109 = arith.constant 1.000000e+00 : f32
    %585 = vector.broadcast %cst_109 : f32 to vector<2x32xf32>
    %586 = arith.addf %585, %584 : vector<2x32xf32>
    %587 = arith.divf %585, %586 : vector<2x32xf32>
    %588 = vector.extract_strided_slice %575 {offsets = [0, 64], sizes = [2, 32], strides = [1, 1]} : vector<2x128xf32> to vector<2x32xf32>
    %589 = math.tanh %588 : vector<2x32xf32>
    %590 = vector.extract_strided_slice %575 {offsets = [0, 96], sizes = [2, 32], strides = [1, 1]} : vector<2x128xf32> to vector<2x32xf32>
    %591 = arith.negf %590 : vector<2x32xf32>
    %592 = math.exp %591 : vector<2x32xf32>
    %cst_110 = arith.constant 1.000000e+00 : f32
    %593 = vector.broadcast %cst_110 : f32 to vector<2x32xf32>
    %594 = arith.addf %593, %592 : vector<2x32xf32>
    %595 = arith.divf %593, %594 : vector<2x32xf32>
    %596 = arith.mulf %587, %493 : vector<2x32xf32>
    %597 = arith.mulf %581, %589 : vector<2x32xf32>
    %598 = arith.addf %596, %597 : vector<2x32xf32>
    %599 = math.tanh %598 : vector<2x32xf32>
    %600 = arith.mulf %595, %599 : vector<2x32xf32>
    %601 = vector.extract_strided_slice %3 {offsets = [1, 0, 0], sizes = [1, 32, 128], strides = [1, 1, 1]} : vector<2x32x128xf32> to vector<1x32x128xf32>
    %602 = vector.shape_cast %601 : vector<1x32x128xf32> to vector<32x128xf32>
    %603 = vector.extract_strided_slice %4 {offsets = [1, 0, 0], sizes = [1, 32, 128], strides = [1, 1, 1]} : vector<2x32x128xf32> to vector<1x32x128xf32>
    %604 = vector.shape_cast %603 : vector<1x32x128xf32> to vector<32x128xf32>
    %605 = vector.extract_strided_slice %5 {offsets = [1, 0, 0], sizes = [1, 1, 128], strides = [1, 1, 1]} : vector<2x1x128xf32> to vector<1x1x128xf32>
    %606 = vector.shape_cast %605 : vector<1x1x128xf32> to vector<1x128xf32>
    %cst_111 = arith.constant dense<0.000000e+00> : vector<2x128xf32>
    %607 = tpu.matmul %600, %602, %cst_111 {dimension_numbers = #tpu.dot_dimension_numbers<[1], [0], [0], [1], [0, 0, 1, 1], [], []>} : vector<2x32xf32>, vector<32x128xf32>, vector<2x128xf32> -> vector<2x128xf32>
    %cst_112 = arith.constant dense<0.000000e+00> : vector<2x128xf32>
    %608 = tpu.matmul %531, %604, %cst_112 {dimension_numbers = #tpu.dot_dimension_numbers<[1], [0], [0], [1], [0, 0, 1, 1], [], []>} : vector<2x32xf32>, vector<32x128xf32>, vector<2x128xf32> -> vector<2x128xf32>
    %609 = arith.addf %607, %608 : vector<2x128xf32>
    %610 = vector.broadcast %606 : vector<1x128xf32> to vector<2x128xf32>
    %611 = arith.addf %609, %610 : vector<2x128xf32>
    %612 = vector.extract_strided_slice %611 {offsets = [0, 0], sizes = [2, 32], strides = [1, 1]} : vector<2x128xf32> to vector<2x32xf32>
    %613 = arith.negf %612 : vector<2x32xf32>
    %614 = math.exp %613 : vector<2x32xf32>
    %cst_113 = arith.constant 1.000000e+00 : f32
    %615 = vector.broadcast %cst_113 : f32 to vector<2x32xf32>
    %616 = arith.addf %615, %614 : vector<2x32xf32>
    %617 = arith.divf %615, %616 : vector<2x32xf32>
    %618 = vector.extract_strided_slice %611 {offsets = [0, 32], sizes = [2, 32], strides = [1, 1]} : vector<2x128xf32> to vector<2x32xf32>
    %619 = arith.negf %618 : vector<2x32xf32>
    %620 = math.exp %619 : vector<2x32xf32>
    %cst_114 = arith.constant 1.000000e+00 : f32
    %621 = vector.broadcast %cst_114 : f32 to vector<2x32xf32>
    %622 = arith.addf %621, %620 : vector<2x32xf32>
    %623 = arith.divf %621, %622 : vector<2x32xf32>
    %624 = vector.extract_strided_slice %611 {offsets = [0, 64], sizes = [2, 32], strides = [1, 1]} : vector<2x128xf32> to vector<2x32xf32>
    %625 = math.tanh %624 : vector<2x32xf32>
    %626 = vector.extract_strided_slice %611 {offsets = [0, 96], sizes = [2, 32], strides = [1, 1]} : vector<2x128xf32> to vector<2x32xf32>
    %627 = arith.negf %626 : vector<2x32xf32>
    %628 = math.exp %627 : vector<2x32xf32>
    %cst_115 = arith.constant 1.000000e+00 : f32
    %629 = vector.broadcast %cst_115 : f32 to vector<2x32xf32>
    %630 = arith.addf %629, %628 : vector<2x32xf32>
    %631 = arith.divf %629, %630 : vector<2x32xf32>
    %632 = arith.mulf %623, %529 : vector<2x32xf32>
    %633 = arith.mulf %617, %625 : vector<2x32xf32>
    %634 = arith.addf %632, %633 : vector<2x32xf32>
    %635 = math.tanh %634 : vector<2x32xf32>
    %636 = arith.mulf %631, %635 : vector<2x32xf32>
    %c6_i32 = arith.constant 6 : i32
    %637 = arith.index_cast %c6_i32 : i32 to index
    %c0_116 = arith.constant 0 : index
    %c0_117 = arith.constant 0 : index
    %638 = vector.load %arg0[%637, %c0_116, %c0_117] : memref<8x2x16xf32, #tpu.memory_space<vmem>>, vector<1x2x16xf32>
    %639 = vector.shape_cast %638 : vector<1x2x16xf32> to vector<2x16xf32>
    %cst_118 = arith.constant dense<0.000000e+00> : vector<2x128xf32>
    %640 = tpu.matmul %639, %0, %cst_118 {dimension_numbers = #tpu.dot_dimension_numbers<[1], [0], [0], [1], [0, 0, 1, 1], [], []>} : vector<2x16xf32>, vector<16x128xf32>, vector<2x128xf32> -> vector<2x128xf32>
    %cst_119 = arith.constant dense<0.000000e+00> : vector<2x128xf32>
    %641 = tpu.matmul %564, %1, %cst_119 {dimension_numbers = #tpu.dot_dimension_numbers<[1], [0], [0], [1], [0, 0, 1, 1], [], []>} : vector<2x32xf32>, vector<32x128xf32>, vector<2x128xf32> -> vector<2x128xf32>
    %642 = arith.addf %640, %641 : vector<2x128xf32>
    %643 = vector.broadcast %2 : vector<1x128xf32> to vector<2x128xf32>
    %644 = arith.addf %642, %643 : vector<2x128xf32>
    %645 = vector.extract_strided_slice %644 {offsets = [0, 0], sizes = [2, 32], strides = [1, 1]} : vector<2x128xf32> to vector<2x32xf32>
    %646 = arith.negf %645 : vector<2x32xf32>
    %647 = math.exp %646 : vector<2x32xf32>
    %cst_120 = arith.constant 1.000000e+00 : f32
    %648 = vector.broadcast %cst_120 : f32 to vector<2x32xf32>
    %649 = arith.addf %648, %647 : vector<2x32xf32>
    %650 = arith.divf %648, %649 : vector<2x32xf32>
    %651 = vector.extract_strided_slice %644 {offsets = [0, 32], sizes = [2, 32], strides = [1, 1]} : vector<2x128xf32> to vector<2x32xf32>
    %652 = arith.negf %651 : vector<2x32xf32>
    %653 = math.exp %652 : vector<2x32xf32>
    %cst_121 = arith.constant 1.000000e+00 : f32
    %654 = vector.broadcast %cst_121 : f32 to vector<2x32xf32>
    %655 = arith.addf %654, %653 : vector<2x32xf32>
    %656 = arith.divf %654, %655 : vector<2x32xf32>
    %657 = vector.extract_strided_slice %644 {offsets = [0, 64], sizes = [2, 32], strides = [1, 1]} : vector<2x128xf32> to vector<2x32xf32>
    %658 = math.tanh %657 : vector<2x32xf32>
    %659 = vector.extract_strided_slice %644 {offsets = [0, 96], sizes = [2, 32], strides = [1, 1]} : vector<2x128xf32> to vector<2x32xf32>
    %660 = arith.negf %659 : vector<2x32xf32>
    %661 = math.exp %660 : vector<2x32xf32>
    %cst_122 = arith.constant 1.000000e+00 : f32
    %662 = vector.broadcast %cst_122 : f32 to vector<2x32xf32>
    %663 = arith.addf %662, %661 : vector<2x32xf32>
    %664 = arith.divf %662, %663 : vector<2x32xf32>
    %665 = arith.mulf %656, %562 : vector<2x32xf32>
    %666 = arith.mulf %650, %658 : vector<2x32xf32>
    %667 = arith.addf %665, %666 : vector<2x32xf32>
    %668 = math.tanh %667 : vector<2x32xf32>
    %669 = arith.mulf %664, %668 : vector<2x32xf32>
    %670 = vector.extract_strided_slice %3 {offsets = [0, 0, 0], sizes = [1, 32, 128], strides = [1, 1, 1]} : vector<2x32x128xf32> to vector<1x32x128xf32>
    %671 = vector.shape_cast %670 : vector<1x32x128xf32> to vector<32x128xf32>
    %672 = vector.extract_strided_slice %4 {offsets = [0, 0, 0], sizes = [1, 32, 128], strides = [1, 1, 1]} : vector<2x32x128xf32> to vector<1x32x128xf32>
    %673 = vector.shape_cast %672 : vector<1x32x128xf32> to vector<32x128xf32>
    %674 = vector.extract_strided_slice %5 {offsets = [0, 0, 0], sizes = [1, 1, 128], strides = [1, 1, 1]} : vector<2x1x128xf32> to vector<1x1x128xf32>
    %675 = vector.shape_cast %674 : vector<1x1x128xf32> to vector<1x128xf32>
    %cst_123 = arith.constant dense<0.000000e+00> : vector<2x128xf32>
    %676 = tpu.matmul %669, %671, %cst_123 {dimension_numbers = #tpu.dot_dimension_numbers<[1], [0], [0], [1], [0, 0, 1, 1], [], []>} : vector<2x32xf32>, vector<32x128xf32>, vector<2x128xf32> -> vector<2x128xf32>
    %cst_124 = arith.constant dense<0.000000e+00> : vector<2x128xf32>
    %677 = tpu.matmul %600, %673, %cst_124 {dimension_numbers = #tpu.dot_dimension_numbers<[1], [0], [0], [1], [0, 0, 1, 1], [], []>} : vector<2x32xf32>, vector<32x128xf32>, vector<2x128xf32> -> vector<2x128xf32>
    %678 = arith.addf %676, %677 : vector<2x128xf32>
    %679 = vector.broadcast %675 : vector<1x128xf32> to vector<2x128xf32>
    %680 = arith.addf %678, %679 : vector<2x128xf32>
    %681 = vector.extract_strided_slice %680 {offsets = [0, 0], sizes = [2, 32], strides = [1, 1]} : vector<2x128xf32> to vector<2x32xf32>
    %682 = arith.negf %681 : vector<2x32xf32>
    %683 = math.exp %682 : vector<2x32xf32>
    %cst_125 = arith.constant 1.000000e+00 : f32
    %684 = vector.broadcast %cst_125 : f32 to vector<2x32xf32>
    %685 = arith.addf %684, %683 : vector<2x32xf32>
    %686 = arith.divf %684, %685 : vector<2x32xf32>
    %687 = vector.extract_strided_slice %680 {offsets = [0, 32], sizes = [2, 32], strides = [1, 1]} : vector<2x128xf32> to vector<2x32xf32>
    %688 = arith.negf %687 : vector<2x32xf32>
    %689 = math.exp %688 : vector<2x32xf32>
    %cst_126 = arith.constant 1.000000e+00 : f32
    %690 = vector.broadcast %cst_126 : f32 to vector<2x32xf32>
    %691 = arith.addf %690, %689 : vector<2x32xf32>
    %692 = arith.divf %690, %691 : vector<2x32xf32>
    %693 = vector.extract_strided_slice %680 {offsets = [0, 64], sizes = [2, 32], strides = [1, 1]} : vector<2x128xf32> to vector<2x32xf32>
    %694 = math.tanh %693 : vector<2x32xf32>
    %695 = vector.extract_strided_slice %680 {offsets = [0, 96], sizes = [2, 32], strides = [1, 1]} : vector<2x128xf32> to vector<2x32xf32>
    %696 = arith.negf %695 : vector<2x32xf32>
    %697 = math.exp %696 : vector<2x32xf32>
    %cst_127 = arith.constant 1.000000e+00 : f32
    %698 = vector.broadcast %cst_127 : f32 to vector<2x32xf32>
    %699 = arith.addf %698, %697 : vector<2x32xf32>
    %700 = arith.divf %698, %699 : vector<2x32xf32>
    %701 = arith.mulf %692, %598 : vector<2x32xf32>
    %702 = arith.mulf %686, %694 : vector<2x32xf32>
    %703 = arith.addf %701, %702 : vector<2x32xf32>
    %704 = math.tanh %703 : vector<2x32xf32>
    %705 = arith.mulf %700, %704 : vector<2x32xf32>
    %706 = vector.extract_strided_slice %3 {offsets = [1, 0, 0], sizes = [1, 32, 128], strides = [1, 1, 1]} : vector<2x32x128xf32> to vector<1x32x128xf32>
    %707 = vector.shape_cast %706 : vector<1x32x128xf32> to vector<32x128xf32>
    %708 = vector.extract_strided_slice %4 {offsets = [1, 0, 0], sizes = [1, 32, 128], strides = [1, 1, 1]} : vector<2x32x128xf32> to vector<1x32x128xf32>
    %709 = vector.shape_cast %708 : vector<1x32x128xf32> to vector<32x128xf32>
    %710 = vector.extract_strided_slice %5 {offsets = [1, 0, 0], sizes = [1, 1, 128], strides = [1, 1, 1]} : vector<2x1x128xf32> to vector<1x1x128xf32>
    %711 = vector.shape_cast %710 : vector<1x1x128xf32> to vector<1x128xf32>
    %cst_128 = arith.constant dense<0.000000e+00> : vector<2x128xf32>
    %712 = tpu.matmul %705, %707, %cst_128 {dimension_numbers = #tpu.dot_dimension_numbers<[1], [0], [0], [1], [0, 0, 1, 1], [], []>} : vector<2x32xf32>, vector<32x128xf32>, vector<2x128xf32> -> vector<2x128xf32>
    %cst_129 = arith.constant dense<0.000000e+00> : vector<2x128xf32>
    %713 = tpu.matmul %636, %709, %cst_129 {dimension_numbers = #tpu.dot_dimension_numbers<[1], [0], [0], [1], [0, 0, 1, 1], [], []>} : vector<2x32xf32>, vector<32x128xf32>, vector<2x128xf32> -> vector<2x128xf32>
    %714 = arith.addf %712, %713 : vector<2x128xf32>
    %715 = vector.broadcast %711 : vector<1x128xf32> to vector<2x128xf32>
    %716 = arith.addf %714, %715 : vector<2x128xf32>
    %717 = vector.extract_strided_slice %716 {offsets = [0, 0], sizes = [2, 32], strides = [1, 1]} : vector<2x128xf32> to vector<2x32xf32>
    %718 = arith.negf %717 : vector<2x32xf32>
    %719 = math.exp %718 : vector<2x32xf32>
    %cst_130 = arith.constant 1.000000e+00 : f32
    %720 = vector.broadcast %cst_130 : f32 to vector<2x32xf32>
    %721 = arith.addf %720, %719 : vector<2x32xf32>
    %722 = arith.divf %720, %721 : vector<2x32xf32>
    %723 = vector.extract_strided_slice %716 {offsets = [0, 32], sizes = [2, 32], strides = [1, 1]} : vector<2x128xf32> to vector<2x32xf32>
    %724 = arith.negf %723 : vector<2x32xf32>
    %725 = math.exp %724 : vector<2x32xf32>
    %cst_131 = arith.constant 1.000000e+00 : f32
    %726 = vector.broadcast %cst_131 : f32 to vector<2x32xf32>
    %727 = arith.addf %726, %725 : vector<2x32xf32>
    %728 = arith.divf %726, %727 : vector<2x32xf32>
    %729 = vector.extract_strided_slice %716 {offsets = [0, 64], sizes = [2, 32], strides = [1, 1]} : vector<2x128xf32> to vector<2x32xf32>
    %730 = math.tanh %729 : vector<2x32xf32>
    %731 = vector.extract_strided_slice %716 {offsets = [0, 96], sizes = [2, 32], strides = [1, 1]} : vector<2x128xf32> to vector<2x32xf32>
    %732 = arith.negf %731 : vector<2x32xf32>
    %733 = math.exp %732 : vector<2x32xf32>
    %cst_132 = arith.constant 1.000000e+00 : f32
    %734 = vector.broadcast %cst_132 : f32 to vector<2x32xf32>
    %735 = arith.addf %734, %733 : vector<2x32xf32>
    %736 = arith.divf %734, %735 : vector<2x32xf32>
    %737 = arith.mulf %728, %634 : vector<2x32xf32>
    %738 = arith.mulf %722, %730 : vector<2x32xf32>
    %739 = arith.addf %737, %738 : vector<2x32xf32>
    %740 = math.tanh %739 : vector<2x32xf32>
    %741 = arith.mulf %736, %740 : vector<2x32xf32>
    %c7_i32 = arith.constant 7 : i32
    %742 = arith.index_cast %c7_i32 : i32 to index
    %c0_133 = arith.constant 0 : index
    %c0_134 = arith.constant 0 : index
    %743 = vector.load %arg0[%742, %c0_133, %c0_134] : memref<8x2x16xf32, #tpu.memory_space<vmem>>, vector<1x2x16xf32>
    %744 = vector.shape_cast %743 : vector<1x2x16xf32> to vector<2x16xf32>
    %cst_135 = arith.constant dense<0.000000e+00> : vector<2x128xf32>
    %745 = tpu.matmul %744, %0, %cst_135 {dimension_numbers = #tpu.dot_dimension_numbers<[1], [0], [0], [1], [0, 0, 1, 1], [], []>} : vector<2x16xf32>, vector<16x128xf32>, vector<2x128xf32> -> vector<2x128xf32>
    %cst_136 = arith.constant dense<0.000000e+00> : vector<2x128xf32>
    %746 = tpu.matmul %669, %1, %cst_136 {dimension_numbers = #tpu.dot_dimension_numbers<[1], [0], [0], [1], [0, 0, 1, 1], [], []>} : vector<2x32xf32>, vector<32x128xf32>, vector<2x128xf32> -> vector<2x128xf32>
    %747 = arith.addf %745, %746 : vector<2x128xf32>
    %748 = vector.broadcast %2 : vector<1x128xf32> to vector<2x128xf32>
    %749 = arith.addf %747, %748 : vector<2x128xf32>
    %750 = vector.extract_strided_slice %749 {offsets = [0, 0], sizes = [2, 32], strides = [1, 1]} : vector<2x128xf32> to vector<2x32xf32>
    %751 = arith.negf %750 : vector<2x32xf32>
    %752 = math.exp %751 : vector<2x32xf32>
    %cst_137 = arith.constant 1.000000e+00 : f32
    %753 = vector.broadcast %cst_137 : f32 to vector<2x32xf32>
    %754 = arith.addf %753, %752 : vector<2x32xf32>
    %755 = arith.divf %753, %754 : vector<2x32xf32>
    %756 = vector.extract_strided_slice %749 {offsets = [0, 32], sizes = [2, 32], strides = [1, 1]} : vector<2x128xf32> to vector<2x32xf32>
    %757 = arith.negf %756 : vector<2x32xf32>
    %758 = math.exp %757 : vector<2x32xf32>
    %cst_138 = arith.constant 1.000000e+00 : f32
    %759 = vector.broadcast %cst_138 : f32 to vector<2x32xf32>
    %760 = arith.addf %759, %758 : vector<2x32xf32>
    %761 = arith.divf %759, %760 : vector<2x32xf32>
    %762 = vector.extract_strided_slice %749 {offsets = [0, 64], sizes = [2, 32], strides = [1, 1]} : vector<2x128xf32> to vector<2x32xf32>
    %763 = math.tanh %762 : vector<2x32xf32>
    %764 = vector.extract_strided_slice %749 {offsets = [0, 96], sizes = [2, 32], strides = [1, 1]} : vector<2x128xf32> to vector<2x32xf32>
    %765 = arith.negf %764 : vector<2x32xf32>
    %766 = math.exp %765 : vector<2x32xf32>
    %cst_139 = arith.constant 1.000000e+00 : f32
    %767 = vector.broadcast %cst_139 : f32 to vector<2x32xf32>
    %768 = arith.addf %767, %766 : vector<2x32xf32>
    %769 = arith.divf %767, %768 : vector<2x32xf32>
    %770 = arith.mulf %761, %667 : vector<2x32xf32>
    %771 = arith.mulf %755, %763 : vector<2x32xf32>
    %772 = arith.addf %770, %771 : vector<2x32xf32>
    %773 = math.tanh %772 : vector<2x32xf32>
    %774 = arith.mulf %769, %773 : vector<2x32xf32>
    %775 = vector.extract_strided_slice %3 {offsets = [0, 0, 0], sizes = [1, 32, 128], strides = [1, 1, 1]} : vector<2x32x128xf32> to vector<1x32x128xf32>
    %776 = vector.shape_cast %775 : vector<1x32x128xf32> to vector<32x128xf32>
    %777 = vector.extract_strided_slice %4 {offsets = [0, 0, 0], sizes = [1, 32, 128], strides = [1, 1, 1]} : vector<2x32x128xf32> to vector<1x32x128xf32>
    %778 = vector.shape_cast %777 : vector<1x32x128xf32> to vector<32x128xf32>
    %779 = vector.extract_strided_slice %5 {offsets = [0, 0, 0], sizes = [1, 1, 128], strides = [1, 1, 1]} : vector<2x1x128xf32> to vector<1x1x128xf32>
    %780 = vector.shape_cast %779 : vector<1x1x128xf32> to vector<1x128xf32>
    %cst_140 = arith.constant dense<0.000000e+00> : vector<2x128xf32>
    %781 = tpu.matmul %774, %776, %cst_140 {dimension_numbers = #tpu.dot_dimension_numbers<[1], [0], [0], [1], [0, 0, 1, 1], [], []>} : vector<2x32xf32>, vector<32x128xf32>, vector<2x128xf32> -> vector<2x128xf32>
    %cst_141 = arith.constant dense<0.000000e+00> : vector<2x128xf32>
    %782 = tpu.matmul %705, %778, %cst_141 {dimension_numbers = #tpu.dot_dimension_numbers<[1], [0], [0], [1], [0, 0, 1, 1], [], []>} : vector<2x32xf32>, vector<32x128xf32>, vector<2x128xf32> -> vector<2x128xf32>
    %783 = arith.addf %781, %782 : vector<2x128xf32>
    %784 = vector.broadcast %780 : vector<1x128xf32> to vector<2x128xf32>
    %785 = arith.addf %783, %784 : vector<2x128xf32>
    %786 = vector.extract_strided_slice %785 {offsets = [0, 0], sizes = [2, 32], strides = [1, 1]} : vector<2x128xf32> to vector<2x32xf32>
    %787 = arith.negf %786 : vector<2x32xf32>
    %788 = math.exp %787 : vector<2x32xf32>
    %cst_142 = arith.constant 1.000000e+00 : f32
    %789 = vector.broadcast %cst_142 : f32 to vector<2x32xf32>
    %790 = arith.addf %789, %788 : vector<2x32xf32>
    %791 = arith.divf %789, %790 : vector<2x32xf32>
    %792 = vector.extract_strided_slice %785 {offsets = [0, 32], sizes = [2, 32], strides = [1, 1]} : vector<2x128xf32> to vector<2x32xf32>
    %793 = arith.negf %792 : vector<2x32xf32>
    %794 = math.exp %793 : vector<2x32xf32>
    %cst_143 = arith.constant 1.000000e+00 : f32
    %795 = vector.broadcast %cst_143 : f32 to vector<2x32xf32>
    %796 = arith.addf %795, %794 : vector<2x32xf32>
    %797 = arith.divf %795, %796 : vector<2x32xf32>
    %798 = vector.extract_strided_slice %785 {offsets = [0, 64], sizes = [2, 32], strides = [1, 1]} : vector<2x128xf32> to vector<2x32xf32>
    %799 = math.tanh %798 : vector<2x32xf32>
    %800 = vector.extract_strided_slice %785 {offsets = [0, 96], sizes = [2, 32], strides = [1, 1]} : vector<2x128xf32> to vector<2x32xf32>
    %801 = arith.negf %800 : vector<2x32xf32>
    %802 = math.exp %801 : vector<2x32xf32>
    %cst_144 = arith.constant 1.000000e+00 : f32
    %803 = vector.broadcast %cst_144 : f32 to vector<2x32xf32>
    %804 = arith.addf %803, %802 : vector<2x32xf32>
    %805 = arith.divf %803, %804 : vector<2x32xf32>
    %806 = arith.mulf %797, %703 : vector<2x32xf32>
    %807 = arith.mulf %791, %799 : vector<2x32xf32>
    %808 = arith.addf %806, %807 : vector<2x32xf32>
    %809 = math.tanh %808 : vector<2x32xf32>
    %810 = arith.mulf %805, %809 : vector<2x32xf32>
    %811 = vector.extract_strided_slice %3 {offsets = [1, 0, 0], sizes = [1, 32, 128], strides = [1, 1, 1]} : vector<2x32x128xf32> to vector<1x32x128xf32>
    %812 = vector.shape_cast %811 : vector<1x32x128xf32> to vector<32x128xf32>
    %813 = vector.extract_strided_slice %4 {offsets = [1, 0, 0], sizes = [1, 32, 128], strides = [1, 1, 1]} : vector<2x32x128xf32> to vector<1x32x128xf32>
    %814 = vector.shape_cast %813 : vector<1x32x128xf32> to vector<32x128xf32>
    %815 = vector.extract_strided_slice %5 {offsets = [1, 0, 0], sizes = [1, 1, 128], strides = [1, 1, 1]} : vector<2x1x128xf32> to vector<1x1x128xf32>
    %816 = vector.shape_cast %815 : vector<1x1x128xf32> to vector<1x128xf32>
    %cst_145 = arith.constant dense<0.000000e+00> : vector<2x128xf32>
    %817 = tpu.matmul %810, %812, %cst_145 {dimension_numbers = #tpu.dot_dimension_numbers<[1], [0], [0], [1], [0, 0, 1, 1], [], []>} : vector<2x32xf32>, vector<32x128xf32>, vector<2x128xf32> -> vector<2x128xf32>
    %cst_146 = arith.constant dense<0.000000e+00> : vector<2x128xf32>
    %818 = tpu.matmul %741, %814, %cst_146 {dimension_numbers = #tpu.dot_dimension_numbers<[1], [0], [0], [1], [0, 0, 1, 1], [], []>} : vector<2x32xf32>, vector<32x128xf32>, vector<2x128xf32> -> vector<2x128xf32>
    %819 = arith.addf %817, %818 : vector<2x128xf32>
    %820 = vector.broadcast %816 : vector<1x128xf32> to vector<2x128xf32>
    %821 = arith.addf %819, %820 : vector<2x128xf32>
    %822 = vector.extract_strided_slice %821 {offsets = [0, 0], sizes = [2, 32], strides = [1, 1]} : vector<2x128xf32> to vector<2x32xf32>
    %823 = arith.negf %822 : vector<2x32xf32>
    %824 = math.exp %823 : vector<2x32xf32>
    %cst_147 = arith.constant 1.000000e+00 : f32
    %825 = vector.broadcast %cst_147 : f32 to vector<2x32xf32>
    %826 = arith.addf %825, %824 : vector<2x32xf32>
    %827 = arith.divf %825, %826 : vector<2x32xf32>
    %828 = vector.extract_strided_slice %821 {offsets = [0, 32], sizes = [2, 32], strides = [1, 1]} : vector<2x128xf32> to vector<2x32xf32>
    %829 = arith.negf %828 : vector<2x32xf32>
    %830 = math.exp %829 : vector<2x32xf32>
    %cst_148 = arith.constant 1.000000e+00 : f32
    %831 = vector.broadcast %cst_148 : f32 to vector<2x32xf32>
    %832 = arith.addf %831, %830 : vector<2x32xf32>
    %833 = arith.divf %831, %832 : vector<2x32xf32>
    %834 = vector.extract_strided_slice %821 {offsets = [0, 64], sizes = [2, 32], strides = [1, 1]} : vector<2x128xf32> to vector<2x32xf32>
    %835 = math.tanh %834 : vector<2x32xf32>
    %836 = vector.extract_strided_slice %821 {offsets = [0, 96], sizes = [2, 32], strides = [1, 1]} : vector<2x128xf32> to vector<2x32xf32>
    %837 = arith.negf %836 : vector<2x32xf32>
    %838 = math.exp %837 : vector<2x32xf32>
    %cst_149 = arith.constant 1.000000e+00 : f32
    %839 = vector.broadcast %cst_149 : f32 to vector<2x32xf32>
    %840 = arith.addf %839, %838 : vector<2x32xf32>
    %841 = arith.divf %839, %840 : vector<2x32xf32>
    %842 = arith.mulf %833, %739 : vector<2x32xf32>
    %843 = arith.mulf %827, %835 : vector<2x32xf32>
    %844 = arith.addf %842, %843 : vector<2x32xf32>
    %845 = math.tanh %844 : vector<2x32xf32>
    %846 = arith.mulf %841, %845 : vector<2x32xf32>
    %c8_i32 = arith.constant 8 : i32
    %c0_150 = arith.constant 0 : index
    %c0_151 = arith.constant 0 : index
    %847 = vector.load %arg7[%c0_150, %c0_151] : memref<2x32xf32, #tpu.memory_space<vmem>>, vector<2x32xf32>
    tpu.vector_store %arg7[%c0_150, %c0_151], %846 {strides = array<i32>} : memref<2x32xf32, #tpu.memory_space<vmem>>, vector<2x32xf32>,
    return
  }
}

</mosaic_0001>

<llo_original>
// kernel: lstm_forward.1
$region0: #{lstm_forward.1}
  #allocation0 [shape = 'u32[]', space=smem, size = 0x4, offset = 0x4, fixed_abs, tag = 'smem constant byte address 0x4 - core index']
  #allocation1 [shape = 'u32[144,128]{1,0:T(1,128)}', space=vmem, size = 0x12000, scoped, tag = 'internal scratch']
  %s0 = inlined_call_operand.vmem [shape: f32[8,2,16], index: 0, kind: input, shape index: {}]
  %s1 = inlined_call_operand.vmem [shape: f32[16,128], index: 1, kind: input, shape index: {}]
  %s2 = inlined_call_operand.vmem [shape: f32[32,128], index: 2, kind: input, shape index: {}]
  %s3 = inlined_call_operand.vmem [shape: f32[1,128], index: 3, kind: input, shape index: {}]
  %s4 = inlined_call_operand.vmem [shape: f32[2,32,128], index: 4, kind: input, shape index: {}]
  %s5 = inlined_call_operand.vmem [shape: f32[2,32,128], index: 5, kind: input, shape index: {}]
  %s6 = inlined_call_operand.vmem [shape: f32[2,1,128], index: 6, kind: input, shape index: {}]
  %s7 = inlined_call_operand.hbm [shape: f32[2,32], index: 7, kind: output, shape index: {}]
  %s8 = sld [smem:[#allocation0]]
  $region38: #{lstm_forward.1} parent=0
    _
  %s10 = ssub.s32 1, %s8
  %s11 = scalar_select 0, %s10, %s8
  $region1: #{lstm_forward.1} parent=0
    #allocation2 [shape = 'u8[1024]{0}', space=vmem, size = 0x400, scoped, tag = 'output window, operand 0, single buffered']
    #allocation3 [shape = 's32[1]{0}', space=sflag, size = 0x4, scoped, tag = 'scoped memory for lstm_forward.1']
    %12 = vsyncpa [#allocation3], 0
    // Predicated region
    $region2: #{lstm_forward.1} parent=1 // pred_check
      _
    $region3: #{lstm_forward.1} parent=1 // pred_check_branch
      %14 = sbr.rel (0) target = $region5
    $region4: #{lstm_forward.1} parent=1 // pred_region
      _
    $region5: #{lstm_forward.1} parent=1 // pred_fallthru
      _
    // Predicated region
    $region6: #{lstm_forward.1} parent=1 // pred_check
      _
    $region7: #{lstm_forward.1} parent=1 // pred_check_branch
      %16 = sbr.rel (0) target = $region9
    $region8: #{lstm_forward.1} parent=1 // pred_region
      _
    $region9: #{lstm_forward.1} parent=1 // pred_fallthru
      _
    // Predicated region
    $region10: #{lstm_forward.1} parent=1 // pred_check
      _
    $region11: #{lstm_forward.1} parent=1 // pred_check_branch
      %18 = sbr.rel (0) target = $region13
    $region12: #{lstm_forward.1} parent=1 // pred_region
      _
    $region13: #{lstm_forward.1} parent=1 // pred_fallthru
      _
    // Predicated region
    $region14: #{lstm_forward.1} parent=1 // pred_check
      _
    $region15: #{lstm_forward.1} parent=1 // pred_check_branch
      %20 = sbr.rel (0) target = $region17
    $region16: #{lstm_forward.1} parent=1 // pred_region
      _
    $region17: #{lstm_forward.1} parent=1 // pred_fallthru
      _
    // Predicated region
    $region18: #{lstm_forward.1} parent=1 // pred_check
      _
    $region19: #{lstm_forward.1} parent=1 // pred_check_branch
      %22 = sbr.rel (0) target = $region21
    $region20: #{lstm_forward.1} parent=1 // pred_region
      _
    $region21: #{lstm_forward.1} parent=1 // pred_fallthru
      _
    // Predicated region
    $region22: #{lstm_forward.1} parent=1 // pred_check
      _
    $region23: #{lstm_forward.1} parent=1 // pred_check_branch
      %24 = sbr.rel (0) target = $region25
    $region24: #{lstm_forward.1} parent=1 // pred_region
      _
    $region25: #{lstm_forward.1} parent=1 // pred_fallthru
      _
    // Predicated region
    $region26: #{lstm_forward.1} parent=1 // pred_check
      _
    $region27: #{lstm_forward.1} parent=1 // pred_check_branch
      %26 = sbr.rel (0) target = $region29
    $region28: #{lstm_forward.1} parent=1 // pred_region
      _
    $region29: #{lstm_forward.1} parent=1 // pred_fallthru
      _
    %v27 = vld [vmem:[%s1] sm:$0xff]
    %v28 = vld [vmem:[%s1 + $0x8] sm:$0xff]
    %v29 = vld [vmem:[%s2] sm:$0xff]
    %v30 = vld [vmem:[%s2 + $0x8] sm:$0xff]
    %v31 = vld [vmem:[%s2 + $0x10] sm:$0xff]
    %v32 = vld [vmem:[%s2 + $0x18] sm:$0xff]
    %v33 = vld [vmem:[%s3] sm:$0x1]
    %v34 = vld [vmem:[%s4] sm:$0xff]
    %v35 = vld [vmem:[%s4 + $0x8] sm:$0xff]
    %v36 = vld [vmem:[%s4 + $0x10] sm:$0xff]
    %v37 = vld [vmem:[%s4 + $0x18] sm:$0xff]
    %v38 = vld [vmem:[%s4 + $0x20] sm:$0xff]
    %v39 = vld [vmem:[%s4 + $0x28] sm:$0xff]
    %v40 = vld [vmem:[%s4 + $0x30] sm:$0xff]
    %v41 = vld [vmem:[%s4 + $0x38] sm:$0xff]
    %v42 = vld [vmem:[%s5] sm:$0xff]
    %v43 = vld [vmem:[%s5 + $0x8] sm:$0xff]
    %v44 = vld [vmem:[%s5 + $0x10] sm:$0xff]
    %v45 = vld [vmem:[%s5 + $0x18] sm:$0xff]
    %v46 = vld [vmem:[%s5 + $0x20] sm:$0xff]
    %v47 = vld [vmem:[%s5 + $0x28] sm:$0xff]
    %v48 = vld [vmem:[%s5 + $0x30] sm:$0xff]
    %v49 = vld [vmem:[%s5 + $0x38] sm:$0xff]
    %v50 = vld [vmem:[%s6] sm:$0x1]
    %v51 = vld [vmem:[%s6 + $0x1] sm:$0x1]
    %v52 = vld [vmem:[%s0] sm:$0x3]
    %vm53 = vcmask 261120
    %v55 = vsel %vm53, 0.0, 0
    %57 = vmatprep.subr.mxu0 0.0
    %58 = vmatpush1.msra.mxu0 0.0
    %59 = vmatprep.subr.mxu0 0.0
    %60 = vmatpush1.msra.mxu0 0.0
    %61 = vmatprep.subr.mxu0 0.0
    %62 = vmatpush1.msra.mxu0 0.0
    %63 = vmatprep.subr.mxu0 0.0
    %64 = vmatpush1.msra.mxu0 0.0
    %65 = vmatprep.subr.mxu0 0.0
    %66 = vmatpush1.msra.mxu0 0.0
    %67 = vmatprep.subr.mxu0 0.0
    %68 = vmatpush1.msra.mxu0 0.0
    %69 = vmatprep.subr.mxu0 0.0
    %70 = vmatpush1.msra.mxu0 0.0
    %71 = vmatprep.subr.mxu0 0.0
    %72 = vmatpush1.msra.mxu0 0.0
    %73 = vmatprep.subr.mxu0 0.0
    %74 = vmatpush1.msra.mxu0 0.0
    %75 = vmatprep.subr.mxu0 0.0
    %76 = vmatpush1.msra.mxu0 0.0
    %77 = vmatprep.subr.mxu0 0.0
    %78 = vmatpush1.msra.mxu0 0.0
    %79 = vmatprep.subr.mxu0 0.0
    %80 = vmatpush1.msra.mxu0 0.0
    %81 = vmatprep.subr.mxu0 0.0
    %82 = vmatpush1.msra.mxu0 %v32
    %83 = vmatprep.subr.mxu0 0.0
    %84 = vmatpush1.msra.mxu0 %v31
    %85 = vmatprep.subr.mxu0 0.0
    %86 = vmatpush1.msra.mxu0 %v30
    %87 = vmatprep.subr.mxu0 0.0
    %88 = vmatpush1.msra.mxu0 %v29
    %89 = vmatprep.subr.mxu0 0.0
    %90 = vmatpush2.msra.mxu0 0.0
    %91 = vmatprep.subr.mxu0 0.0
    %92 = vmatpush2.msra.mxu0 0.0
    %93 = vmatprep.subr.mxu0 0.0
    %94 = vmatpush2.msra.mxu0 0.0
    %95 = vmatprep.subr.mxu0 0.0
    %96 = vmatpush2.msra.mxu0 0.0
    %97 = vmatprep.subr.mxu0 0.0
    %98 = vmatpush2.msra.mxu0 0.0
    %99 = vmatprep.subr.mxu0 0.0
    %100 = vmatpush2.msra.mxu0 0.0
    %101 = vmatprep.subr.mxu0 0.0
    %102 = vmatpush2.msra.mxu0 0.0
    %103 = vmatprep.subr.mxu0 0.0
    %104 = vmatpush2.msra.mxu0 0.0
    %105 = vmatprep.subr.mxu0 0.0
    %106 = vmatpush2.msra.mxu0 0.0
    %107 = vmatprep.subr.mxu0 0.0
    %108 = vmatpush2.msra.mxu0 0.0
    %109 = vmatprep.subr.mxu0 0.0
    %110 = vmatpush2.msra.mxu0 0.0
    %111 = vmatprep.subr.mxu0 0.0
    %112 = vmatpush2.msra.mxu0 0.0
    %113 = vmatprep.subr.mxu0 0.0
    %114 = vmatpush2.msra.mxu0 0.0
    %115 = vmatprep.subr.mxu0 0.0
    %116 = vmatpush2.msra.mxu0 0.0
    %117 = vmatprep.subr.mxu0 0.0
    %118 = vmatpush2.msra.mxu0 0.0
    %119 = vmatprep.subr.mxu0 0.0
    %120 = vmatpush2.msra.mxu0 0.0
    %121 = vmatprep.mubr.f32.mxu0 0.0
    %122 = vmatmul.mubr.f32.gmra.mxu0 %v55
    %v123 = vpop.f32.mrf.mxu0
    %v124 = vadd.f32 0.0, %v123
    %v125 = vpop.f32.mrf.mxu0
    %126 = vdwg.mxu0
    %vm127 = vcmask 130048
    %v129 = vsel %vm127, %v52, 0
    %131 = vmatprep.subr.mxu0 0.0
    %132 = vmatpush1.msra.mxu0 0.0
    %133 = vmatprep.subr.mxu0 0.0
    %134 = vmatpush1.msra.mxu0 0.0
    %135 = vmatprep.subr.mxu0 0.0
    %136 = vmatpush1.msra.mxu0 0.0
    %137 = vmatprep.subr.mxu0 0.0
    %138 = vmatpush1.msra.mxu0 0.0
    %139 = vmatprep.subr.mxu0 0.0
    %140 = vmatpush1.msra.mxu0 0.0
    %141 = vmatprep.subr.mxu0 0.0
    %142 = vmatpush1.msra.mxu0 0.0
    %143 = vmatprep.subr.mxu0 0.0
    %144 = vmatpush1.msra.mxu0 0.0
    %145 = vmatprep.subr.mxu0 0.0
    %146 = vmatpush1.msra.mxu0 0.0
    %147 = vmatprep.subr.mxu0 0.0
    %148 = vmatpush1.msra.mxu0 0.0
    %149 = vmatprep.subr.mxu0 0.0
    %150 = vmatpush1.msra.mxu0 0.0
    %151 = vmatprep.subr.mxu0 0.0
    %152 = vmatpush1.msra.mxu0 0.0
    %153 = vmatprep.subr.mxu0 0.0
    %154 = vmatpush1.msra.mxu0 0.0
    %155 = vmatprep.subr.mxu0 0.0
    %156 = vmatpush1.msra.mxu0 0.0
    %157 = vmatprep.subr.mxu0 0.0
    %158 = vmatpush1.msra.mxu0 0.0
    %159 = vmatprep.subr.mxu0 0.0
    %160 = vmatpush1.msra.mxu0 %v28
    %161 = vmatprep.subr.mxu0 0.0
    %162 = vmatpush1.msra.mxu0 %v27
    %163 = vmatprep.subr.mxu0 0.0
    %164 = vmatpush2.msra.mxu0 0.0
    %165 = vmatprep.subr.mxu0 0.0
    %166 = vmatpush2.msra.mxu0 0.0
    %167 = vmatprep.subr.mxu0 0.0
    %168 = vmatpush2.msra.mxu0 0.0
    %169 = vmatprep.subr.mxu0 0.0
    %170 = vmatpush2.msra.mxu0 0.0
    %171 = vmatprep.subr.mxu0 0.0
    %172 = vmatpush2.msra.mxu0 0.0
    %173 = vmatprep.subr.mxu0 0.0
    %174 = vmatpush2.msra.mxu0 0.0
    %175 = vmatprep.subr.mxu0 0.0
    %176 = vmatpush2.msra.mxu0 0.0
    %177 = vmatprep.subr.mxu0 0.0
    %178 = vmatpush2.msra.mxu0 0.0
    %179 = vmatprep.subr.mxu0 0.0
    %180 = vmatpush2.msra.mxu0 0.0
    %181 = vmatprep.subr.mxu0 0.0
    %182 = vmatpush2.msra.mxu0 0.0
    %183 = vmatprep.subr.mxu0 0.0
    %184 = vmatpush2.msra.mxu0 0.0
    %185 = vmatprep.subr.mxu0 0.0
    %186 = vmatpush2.msra.mxu0 0.0
    %187 = vmatprep.subr.mxu0 0.0
    %188 = vmatpush2.msra.mxu0 0.0
    %189 = vmatprep.subr.mxu0 0.0
    %190 = vmatpush2.msra.mxu0 0.0
    %191 = vmatprep.subr.mxu0 0.0
    %192 = vmatpush2.msra.mxu0 0.0
    %193 = vmatprep.subr.mxu0 0.0
    %194 = vmatpush2.msra.mxu0 0.0
    %195 = vmatprep.mubr.f32.mxu0 0.0
    %196 = vmatmul.mubr.f32.gmra.mxu0 %v129
    %v197 = vpop.f32.mrf.mxu0
    %v198 = vadd.f32 %v124, %v197
    %v199 = vpop.f32.mrf.mxu0
    %200 = vdwg.mxu0
    %v202 = vlaneseq
    %v203 = vshrl.u32 %v202, 7
    %v204 = vsub.s32 0, %v203
    %v205 = vrot.slane %v33, %v204
    %v207 = vadd.f32 %v198, %v205
    %v208 = vxor.u32 %v207, 2147483648
    %v209 = vmul.f32 %v208, 1.442695
    %v210 = vpow.pop %v209
    %v211 = vadd.f32 %v210, 1.0
    %v212 = vrcp.pop %v211
    %v213 = vmul.f32 1.0, %v212
    %v214 = vtanh.pop %v207
    %v215 = vmul.f32 %v213, 0.0
    %217 = vrot.lane.b32.xlu0 %v214, 64
    %v218 = vpop.permute.xlu0 %217
    %v220 = vmul.f32 %v213, %v218
    %222 = vrot.lane.b32.xlu0 %v220, 32
    %v223 = vpop.permute.xlu0 %222
    %v225 = vadd.f32 %v215, %v223
    %v226 = vtanh.pop %v225
    %228 = vrot.lane.b32.xlu0 %v226, 64
    %v229 = vpop.permute.xlu0 %228
    %v231 = vmul.f32 %v213, %v229
    %232 = vmatprep.subr.mxu0 0.0
    %233 = vmatpush1.msra.mxu0 0.0
    %234 = vmatprep.subr.mxu0 0.0
    %235 = vmatpush1.msra.mxu0 0.0
    %236 = vmatprep.subr.mxu0 0.0
    %237 = vmatpush1.msra.mxu0 0.0
    %238 = vmatprep.subr.mxu0 0.0
    %239 = vmatpush1.msra.mxu0 0.0
    %240 = vmatprep.subr.mxu0 0.0
    %241 = vmatpush1.msra.mxu0 0.0
    %242 = vmatprep.subr.mxu0 0.0
    %243 = vmatpush1.msra.mxu0 0.0
    %244 = vmatprep.subr.mxu0 0.0
    %245 = vmatpush1.msra.mxu0 0.0
    %246 = vmatprep.subr.mxu0 0.0
    %247 = vmatpush1.msra.mxu0 0.0
    %248 = vmatprep.subr.mxu0 0.0
    %249 = vmatpush1.msra.mxu0 0.0
    %250 = vmatprep.subr.mxu0 0.0
    %251 = vmatpush1.msra.mxu0 0.0
    %252 = vmatprep.subr.mxu0 0.0
    %253 = vmatpush1.msra.mxu0 0.0
    %254 = vmatprep.subr.mxu0 0.0
    %255 = vmatpush1.msra.mxu0 0.0
    %256 = vmatprep.subr.mxu0 0.0
    %257 = vmatpush1.msra.mxu0 %v45
    %258 = vmatprep.subr.mxu0 0.0
    %259 = vmatpush1.msra.mxu0 %v44
    %260 = vmatprep.subr.mxu0 0.0
    %261 = vmatpush1.msra.mxu0 %v43
    %262 = vmatprep.subr.mxu0 0.0
    %263 = vmatpush1.msra.mxu0 %v42
    %264 = vmatprep.subr.mxu0 0.0
    %265 = vmatpush2.msra.mxu0 0.0
    %266 = vmatprep.subr.mxu0 0.0
    %267 = vmatpush2.msra.mxu0 0.0
    %268 = vmatprep.subr.mxu0 0.0
    %269 = vmatpush2.msra.mxu0 0.0
    %270 = vmatprep.subr.mxu0 0.0
    %271 = vmatpush2.msra.mxu0 0.0
    %272 = vmatprep.subr.mxu0 0.0
    %273 = vmatpush2.msra.mxu0 0.0
    %274 = vmatprep.subr.mxu0 0.0
    %275 = vmatpush2.msra.mxu0 0.0
    %276 = vmatprep.subr.mxu0 0.0
    %277 = vmatpush2.msra.mxu0 0.0
    %278 = vmatprep.subr.mxu0 0.0
    %279 = vmatpush2.msra.mxu0 0.0
    %280 = vmatprep.subr.mxu0 0.0
    %281 = vmatpush2.msra.mxu0 0.0
    %282 = vmatprep.subr.mxu0 0.0
    %283 = vmatpush2.msra.mxu0 0.0
    %284 = vmatprep.subr.mxu0 0.0
    %285 = vmatpush2.msra.mxu0 0.0
    %286 = vmatprep.subr.mxu0 0.0
    %287 = vmatpush2.msra.mxu0 0.0
    %288 = vmatprep.subr.mxu0 0.0
    %289 = vmatpush2.msra.mxu0 0.0
    %290 = vmatprep.subr.mxu0 0.0
    %291 = vmatpush2.msra.mxu0 0.0
    %292 = vmatprep.subr.mxu0 0.0
    %293 = vmatpush2.msra.mxu0 0.0
    %294 = vmatprep.subr.mxu0 0.0
    %295 = vmatpush2.msra.mxu0 0.0
    %296 = vmatprep.mubr.f32.mxu0 0.0
    %297 = vmatmul.mubr.f32.gmra.mxu0 %v55
    %v298 = vpop.f32.mrf.mxu0
    %v299 = vadd.f32 0.0, %v298
    %v300 = vpop.f32.mrf.mxu0
    %301 = vdwg.mxu0
    %303 = vrot.lane.b32.xlu0 %v231, 32
    %v304 = vpop.permute.xlu0 %303
    %v305 = vsel %vm53, %v304, 0
    %307 = vmatprep.subr.mxu0 0.0
    %308 = vmatpush1.msra.mxu0 0.0
    %309 = vmatprep.subr.mxu0 0.0
    %310 = vmatpush1.msra.mxu0 0.0
    %311 = vmatprep.subr.mxu0 0.0
    %312 = vmatpush1.msra.mxu0 0.0
    %313 = vmatprep.subr.mxu0 0.0
    %314 = vmatpush1.msra.mxu0 0.0
    %315 = vmatprep.subr.mxu0 0.0
    %316 = vmatpush1.msra.mxu0 0.0
    %317 = vmatprep.subr.mxu0 0.0
    %318 = vmatpush1.msra.mxu0 0.0
    %319 = vmatprep.subr.mxu0 0.0
    %320 = vmatpush1.msra.mxu0 0.0
    %321 = vmatprep.subr.mxu0 0.0
    %322 = vmatpush1.msra.mxu0 0.0
    %323 = vmatprep.subr.mxu0 0.0
    %324 = vmatpush1.msra.mxu0 0.0
    %325 = vmatprep.subr.mxu0 0.0
    %326 = vmatpush1.msra.mxu0 0.0
    %327 = vmatprep.subr.mxu0 0.0
    %328 = vmatpush1.msra.mxu0 0.0
    %329 = vmatprep.subr.mxu0 0.0
    %330 = vmatpush1.msra.mxu0 0.0
    %331 = vmatprep.subr.mxu0 0.0
    %332 = vmatpush1.msra.mxu0 %v37
    %333 = vmatprep.subr.mxu0 0.0
    %334 = vmatpush1.msra.mxu0 %v36
    %335 = vmatprep.subr.mxu0 0.0
    %336 = vmatpush1.msra.mxu0 %v35
    %337 = vmatprep.subr.mxu0 0.0
    %338 = vmatpush1.msra.mxu0 %v34
    %339 = vmatprep.subr.mxu0 0.0
    %340 = vmatpush2.msra.mxu0 0.0
    %341 = vmatprep.subr.mxu0 0.0
    %342 = vmatpush2.msra.mxu0 0.0
    %343 = vmatprep.subr.mxu0 0.0
    %344 = vmatpush2.msra.mxu0 0.0
    %345 = vmatprep.subr.mxu0 0.0
    %346 = vmatpush2.msra.mxu0 0.0
    %347 = vmatprep.subr.mxu0 0.0
    %348 = vmatpush2.msra.mxu0 0.0
    %349 = vmatprep.subr.mxu0 0.0
    %350 = vmatpush2.msra.mxu0 0.0
    %351 = vmatprep.subr.mxu0 0.0
    %352 = vmatpush2.msra.mxu0 0.0
    %353 = vmatprep.subr.mxu0 0.0
    %354 = vmatpush2.msra.mxu0 0.0
    %355 = vmatprep.subr.mxu0 0.0
    %356 = vmatpush2.msra.mxu0 0.0
    %357 = vmatprep.subr.mxu0 0.0
    %358 = vmatpush2.msra.mxu0 0.0
    %359 = vmatprep.subr.mxu0 0.0
    %360 = vmatpush2.msra.mxu0 0.0
    %361 = vmatprep.subr.mxu0 0.0
    %362 = vmatpush2.msra.mxu0 0.0
    %363 = vmatprep.subr.mxu0 0.0
    %364 = vmatpush2.msra.mxu0 0.0
    %365 = vmatprep.subr.mxu0 0.0
    %366 = vmatpush2.msra.mxu0 0.0
    %367 = vmatprep.subr.mxu0 0.0
    %368 = vmatpush2.msra.mxu0 0.0
    %369 = vmatprep.subr.mxu0 0.0
    %370 = vmatpush2.msra.mxu0 0.0
    %371 = vmatprep.mubr.f32.mxu0 0.0
    %372 = vmatmul.mubr.f32.gmra.mxu0 %v305
    %v373 = vpop.f32.mrf.mxu0
    %v374 = vadd.f32 %v299, %v373
    %v375 = vpop.f32.mrf.mxu0
    %376 = vdwg.mxu0
    %v378 = vlaneseq
    %v379 = vshrl.u32 %v378, 7
    %v380 = vsub.s32 0, %v379
    %v381 = vrot.slane %v50, %v380
    %v383 = vadd.f32 %v374, %v381
    %v384 = vxor.u32 %v383, 2147483648
    %v385 = vmul.f32 %v384, 1.442695
    %v386 = vpow.pop %v385
    %v387 = vadd.f32 %v386, 1.0
    %v388 = vrcp.pop %v387
    %v389 = vmul.f32 1.0, %v388
    %v390 = vtanh.pop %v383
    %v391 = vmul.f32 %v389, 0.0
    %393 = vrot.lane.b32.xlu0 %v390, 64
    %v394 = vpop.permute.xlu0 %393
    %v396 = vmul.f32 %v389, %v394
    %398 = vrot.lane.b32.xlu0 %v396, 32
    %v399 = vpop.permute.xlu0 %398
    %v401 = vadd.f32 %v391, %v399
    %v402 = vtanh.pop %v401
    %404 = vrot.lane.b32.xlu0 %v402, 64
    %v405 = vpop.permute.xlu0 %404
    %v407 = vmul.f32 %v389, %v405
    %408 = vmatprep.subr.mxu0 0.0
    %409 = vmatpush1.msra.mxu0 0.0
    %410 = vmatprep.subr.mxu0 0.0
    %411 = vmatpush1.msra.mxu0 0.0
    %412 = vmatprep.subr.mxu0 0.0
    %413 = vmatpush1.msra.mxu0 0.0
    %414 = vmatprep.subr.mxu0 0.0
    %415 = vmatpush1.msra.mxu0 0.0
    %416 = vmatprep.subr.mxu0 0.0
    %417 = vmatpush1.msra.mxu0 0.0
    %418 = vmatprep.subr.mxu0 0.0
    %419 = vmatpush1.msra.mxu0 0.0
    %420 = vmatprep.subr.mxu0 0.0
    %421 = vmatpush1.msra.mxu0 0.0
    %422 = vmatprep.subr.mxu0 0.0
    %423 = vmatpush1.msra.mxu0 0.0
    %424 = vmatprep.subr.mxu0 0.0
    %425 = vmatpush1.msra.mxu0 0.0
    %426 = vmatprep.subr.mxu0 0.0
    %427 = vmatpush1.msra.mxu0 0.0
    %428 = vmatprep.subr.mxu0 0.0
    %429 = vmatpush1.msra.mxu0 0.0
    %430 = vmatprep.subr.mxu0 0.0
    %431 = vmatpush1.msra.mxu0 0.0
    %432 = vmatprep.subr.mxu0 0.0
    %433 = vmatpush1.msra.mxu0 %v49
    %434 = vmatprep.subr.mxu0 0.0
    %435 = vmatpush1.msra.mxu0 %v48
    %436 = vmatprep.subr.mxu0 0.0
    %437 = vmatpush1.msra.mxu0 %v47
    %438 = vmatprep.subr.mxu0 0.0
    %439 = vmatpush1.msra.mxu0 %v46
    %440 = vmatprep.subr.mxu0 0.0
    %441 = vmatpush2.msra.mxu0 0.0
    %442 = vmatprep.subr.mxu0 0.0
    %443 = vmatpush2.msra.mxu0 0.0
    %444 = vmatprep.subr.mxu0 0.0
    %445 = vmatpush2.msra.mxu0 0.0
    %446 = vmatprep.subr.mxu0 0.0
    %447 = vmatpush2.msra.mxu0 0.0
    %448 = vmatprep.subr.mxu0 0.0
    %449 = vmatpush2.msra.mxu0 0.0
    %450 = vmatprep.subr.mxu0 0.0
    %451 = vmatpush2.msra.mxu0 0.0
    %452 = vmatprep.subr.mxu0 0.0
    %453 = vmatpush2.msra.mxu0 0.0
    %454 = vmatprep.subr.mxu0 0.0
    %455 = vmatpush2.msra.mxu0 0.0
    %456 = vmatprep.subr.mxu0 0.0
    %457 = vmatpush2.msra.mxu0 0.0
    %458 = vmatprep.subr.mxu0 0.0
    %459 = vmatpush2.msra.mxu0 0.0
    %460 = vmatprep.subr.mxu0 0.0
    %461 = vmatpush2.msra.mxu0 0.0
    %462 = vmatprep.subr.mxu0 0.0
    %463 = vmatpush2.msra.mxu0 0.0
    %464 = vmatprep.subr.mxu0 0.0
    %465 = vmatpush2.msra.mxu0 0.0
    %466 = vmatprep.subr.mxu0 0.0
    %467 = vmatpush2.msra.mxu0 0.0
    %468 = vmatprep.subr.mxu0 0.0
    %469 = vmatpush2.msra.mxu0 0.0
    %470 = vmatprep.subr.mxu0 0.0
    %471 = vmatpush2.msra.mxu0 0.0
    %472 = vmatprep.mubr.f32.mxu0 0.0
    %473 = vmatmul.mubr.f32.gmra.mxu0 %v55
    %v474 = vpop.f32.mrf.mxu0
    %v475 = vadd.f32 0.0, %v474
    %v476 = vpop.f32.mrf.mxu0
    %477 = vdwg.mxu0
    %479 = vrot.lane.b32.xlu0 %v407, 32
    %v480 = vpop.permute.xlu0 %479
    %v481 = vsel %vm53, %v480, 0
    %483 = vmatprep.subr.mxu0 0.0
    %484 = vmatpush1.msra.mxu0 0.0
    %485 = vmatprep.subr.mxu0 0.0
    %486 = vmatpush1.msra.mxu0 0.0
    %487 = vmatprep.subr.mxu0 0.0
    %488 = vmatpush1.msra.mxu0 0.0
    %489 = vmatprep.subr.mxu0 0.0
    %490 = vmatpush1.msra.mxu0 0.0
    %491 = vmatprep.subr.mxu0 0.0
    %492 = vmatpush1.msra.mxu0 0.0
    %493 = vmatprep.subr.mxu0 0.0
    %494 = vmatpush1.msra.mxu0 0.0
    %495 = vmatprep.subr.mxu0 0.0
    %496 = vmatpush1.msra.mxu0 0.0
    %497 = vmatprep.subr.mxu0 0.0
    %498 = vmatpush1.msra.mxu0 0.0
    %499 = vmatprep.subr.mxu0 0.0
    %500 = vmatpush1.msra.mxu0 0.0
    %501 = vmatprep.subr.mxu0 0.0
    %502 = vmatpush1.msra.mxu0 0.0
    %503 = vmatprep.subr.mxu0 0.0
    %504 = vmatpush1.msra.mxu0 0.0
    %505 = vmatprep.subr.mxu0 0.0
    %506 = vmatpush1.msra.mxu0 0.0
    %507 = vmatprep.subr.mxu0 0.0
    %508 = vmatpush1.msra.mxu0 %v41
    %509 = vmatprep.subr.mxu0 0.0
    %510 = vmatpush1.msra.mxu0 %v40
    %511 = vmatprep.subr.mxu0 0.0
    %512 = vmatpush1.msra.mxu0 %v39
    %513 = vmatprep.subr.mxu0 0.0
    %514 = vmatpush1.msra.mxu0 %v38
    %515 = vmatprep.subr.mxu0 0.0
    %516 = vmatpush2.msra.mxu0 0.0
    %517 = vmatprep.subr.mxu0 0.0
    %518 = vmatpush2.msra.mxu0 0.0
    %519 = vmatprep.subr.mxu0 0.0
    %520 = vmatpush2.msra.mxu0 0.0
    %521 = vmatprep.subr.mxu0 0.0
    %522 = vmatpush2.msra.mxu0 0.0
    %523 = vmatprep.subr.mxu0 0.0
    %524 = vmatpush2.msra.mxu0 0.0
    %525 = vmatprep.subr.mxu0 0.0
    %526 = vmatpush2.msra.mxu0 0.0
    %527 = vmatprep.subr.mxu0 0.0
    %528 = vmatpush2.msra.mxu0 0.0
    %529 = vmatprep.subr.mxu0 0.0
    %530 = vmatpush2.msra.mxu0 0.0
    %531 = vmatprep.subr.mxu0 0.0
    %532 = vmatpush2.msra.mxu0 0.0
    %533 = vmatprep.subr.mxu0 0.0
    %534 = vmatpush2.msra.mxu0 0.0
    %535 = vmatprep.subr.mxu0 0.0
    %536 = vmatpush2.msra.mxu0 0.0
    %537 = vmatprep.subr.mxu0 0.0
    %538 = vmatpush2.msra.mxu0 0.0
    %539 = vmatprep.subr.mxu0 0.0
    %540 = vmatpush2.msra.mxu0 0.0
    %541 = vmatprep.subr.mxu0 0.0
    %542 = vmatpush2.msra.mxu0 0.0
    %543 = vmatprep.subr.mxu0 0.0
    %544 = vmatpush2.msra.mxu0 0.0
    %545 = vmatprep.subr.mxu0 0.0
    %546 = vmatpush2.msra.mxu0 0.0
    %547 = vmatprep.mubr.f32.mxu0 0.0
    %548 = vmatmul.mubr.f32.gmra.mxu0 %v481
    %v549 = vpop.f32.mrf.mxu0
    %v550 = vadd.f32 %v475, %v549
    %v551 = vpop.f32.mrf.mxu0
    %552 = vdwg.mxu0
    %v554 = vlaneseq
    %v555 = vshrl.u32 %v554, 7
    %v556 = vsub.s32 0, %v555
    %v557 = vrot.slane %v51, %v556
    %v559 = vadd.f32 %v550, %v557
    %v560 = vxor.u32 %v559, 2147483648
    %v561 = vmul.f32 %v560, 1.442695
    %v562 = vpow.pop %v561
    %v563 = vadd.f32 %v562, 1.0
    %v564 = vrcp.pop %v563
    %v565 = vmul.f32 1.0, %v564
    %v566 = vtanh.pop %v559
    %v567 = vmul.f32 %v565, 0.0
    %569 = vrot.lane.b32.xlu0 %v566, 64
    %v570 = vpop.permute.xlu0 %569
    %v572 = vmul.f32 %v565, %v570
    %574 = vrot.lane.b32.xlu0 %v572, 32
    %v575 = vpop.permute.xlu0 %574
    %v577 = vadd.f32 %v567, %v575
    %v578 = vtanh.pop %v577
    %580 = vrot.lane.b32.xlu0 %v578, 64
    %v581 = vpop.permute.xlu0 %580
    %v583 = vmul.f32 %v565, %v581
    %s584 = scalar_lea.vmem %s0, 2
    %v585 = vld [vmem:[%s584] sm:$0x3]
    %586 = vmatprep.subr.mxu0 0.0
    %587 = vmatpush1.msra.mxu0 0.0
    %588 = vmatprep.subr.mxu0 0.0
    %589 = vmatpush1.msra.mxu0 0.0
    %590 = vmatprep.subr.mxu0 0.0
    %591 = vmatpush1.msra.mxu0 0.0
    %592 = vmatprep.subr.mxu0 0.0
    %593 = vmatpush1.msra.mxu0 0.0
    %594 = vmatprep.subr.mxu0 0.0
    %595 = vmatpush1.msra.mxu0 0.0
    %596 = vmatprep.subr.mxu0 0.0
    %597 = vmatpush1.msra.mxu0 0.0
    %598 = vmatprep.subr.mxu0 0.0
    %599 = vmatpush1.msra.mxu0 0.0
    %600 = vmatprep.subr.mxu0 0.0
    %601 = vmatpush1.msra.mxu0 0.0
    %602 = vmatprep.subr.mxu0 0.0
    %603 = vmatpush1.msra.mxu0 0.0
    %604 = vmatprep.subr.mxu0 0.0
    %605 = vmatpush1.msra.mxu0 0.0
    %606 = vmatprep.subr.mxu0 0.0
    %607 = vmatpush1.msra.mxu0 0.0
    %608 = vmatprep.subr.mxu0 0.0
    %609 = vmatpush1.msra.mxu0 0.0
    %610 = vmatprep.subr.mxu0 0.0
    %611 = vmatpush1.msra.mxu0 %v32
    %612 = vmatprep.subr.mxu0 0.0
    %613 = vmatpush1.msra.mxu0 %v31
    %614 = vmatprep.subr.mxu0 0.0
    %615 = vmatpush1.msra.mxu0 %v30
    %616 = vmatprep.subr.mxu0 0.0
    %617 = vmatpush1.msra.mxu0 %v29
    %618 = vmatprep.subr.mxu0 0.0
    %619 = vmatpush2.msra.mxu0 0.0
    %620 = vmatprep.subr.mxu0 0.0
    %621 = vmatpush2.msra.mxu0 0.0
    %622 = vmatprep.subr.mxu0 0.0
    %623 = vmatpush2.msra.mxu0 0.0
    %624 = vmatprep.subr.mxu0 0.0
    %625 = vmatpush2.msra.mxu0 0.0
    %626 = vmatprep.subr.mxu0 0.0
    %627 = vmatpush2.msra.mxu0 0.0
    %628 = vmatprep.subr.mxu0 0.0
    %629 = vmatpush2.msra.mxu0 0.0
    %630 = vmatprep.subr.mxu0 0.0
    %631 = vmatpush2.msra.mxu0 0.0
    %632 = vmatprep.subr.mxu0 0.0
    %633 = vmatpush2.msra.mxu0 0.0
    %634 = vmatprep.subr.mxu0 0.0
    %635 = vmatpush2.msra.mxu0 0.0
    %636 = vmatprep.subr.mxu0 0.0
    %637 = vmatpush2.msra.mxu0 0.0
    %638 = vmatprep.subr.mxu0 0.0
    %639 = vmatpush2.msra.mxu0 0.0
    %640 = vmatprep.subr.mxu0 0.0
    %641 = vmatpush2.msra.mxu0 0.0
    %642 = vmatprep.subr.mxu0 0.0
    %643 = vmatpush2.msra.mxu0 0.0
    %644 = vmatprep.subr.mxu0 0.0
    %645 = vmatpush2.msra.mxu0 0.0
    %646 = vmatprep.subr.mxu0 0.0
    %647 = vmatpush2.msra.mxu0 0.0
    %648 = vmatprep.subr.mxu0 0.0
    %649 = vmatpush2.msra.mxu0 0.0
    %650 = vmatprep.mubr.f32.mxu0 0.0
    %651 = vmatmul.mubr.f32.gmra.mxu0 %v305
    %v652 = vpop.f32.mrf.mxu0
    %v653 = vadd.f32 0.0, %v652
    %v654 = vpop.f32.mrf.mxu0
    %655 = vdwg.mxu0
    %v657 = vsel %vm127, %v585, 0
    %659 = vmatprep.subr.mxu0 0.0
    %660 = vmatpush1.msra.mxu0 0.0
    %661 = vmatprep.subr.mxu0 0.0
    %662 = vmatpush1.msra.mxu0 0.0
    %663 = vmatprep.subr.mxu0 0.0
    %664 = vmatpush1.msra.mxu0 0.0
    %665 = vmatprep.subr.mxu0 0.0
    %666 = vmatpush1.msra.mxu0 0.0
    %667 = vmatprep.subr.mxu0 0.0
    %668 = vmatpush1.msra.mxu0 0.0
    %669 = vmatprep.subr.mxu0 0.0
    %670 = vmatpush1.msra.mxu0 0.0
    %671 = vmatprep.subr.mxu0 0.0
    %672 = vmatpush1.msra.mxu0 0.0
    %673 = vmatprep.subr.mxu0 0.0
    %674 = vmatpush1.msra.mxu0 0.0
    %675 = vmatprep.subr.mxu0 0.0
    %676 = vmatpush1.msra.mxu0 0.0
    %677 = vmatprep.subr.mxu0 0.0
    %678 = vmatpush1.msra.mxu0 0.0
    %679 = vmatprep.subr.mxu0 0.0
    %680 = vmatpush1.msra.mxu0 0.0
    %681 = vmatprep.subr.mxu0 0.0
    %682 = vmatpush1.msra.mxu0 0.0
    %683 = vmatprep.subr.mxu0 0.0
    %684 = vmatpush1.msra.mxu0 0.0
    %685 = vmatprep.subr.mxu0 0.0
    %686 = vmatpush1.msra.mxu0 0.0
    %687 = vmatprep.subr.mxu0 0.0
    %688 = vmatpush1.msra.mxu0 %v28
    %689 = vmatprep.subr.mxu0 0.0
    %690 = vmatpush1.msra.mxu0 %v27
    %691 = vmatprep.subr.mxu0 0.0
    %692 = vmatpush2.msra.mxu0 0.0
    %693 = vmatprep.subr.mxu0 0.0
    %694 = vmatpush2.msra.mxu0 0.0
    %695 = vmatprep.subr.mxu0 0.0
    %696 = vmatpush2.msra.mxu0 0.0
    %697 = vmatprep.subr.mxu0 0.0
    %698 = vmatpush2.msra.mxu0 0.0
    %699 = vmatprep.subr.mxu0 0.0
    %700 = vmatpush2.msra.mxu0 0.0
    %701 = vmatprep.subr.mxu0 0.0
    %702 = vmatpush2.msra.mxu0 0.0
    %703 = vmatprep.subr.mxu0 0.0
    %704 = vmatpush2.msra.mxu0 0.0
    %705 = vmatprep.subr.mxu0 0.0
    %706 = vmatpush2.msra.mxu0 0.0
    %707 = vmatprep.subr.mxu0 0.0
    %708 = vmatpush2.msra.mxu0 0.0
    %709 = vmatprep.subr.mxu0 0.0
    %710 = vmatpush2.msra.mxu0 0.0
    %711 = vmatprep.subr.mxu0 0.0
    %712 = vmatpush2.msra.mxu0 0.0
    %713 = vmatprep.subr.mxu0 0.0
    %714 = vmatpush2.msra.mxu0 0.0
    %715 = vmatprep.subr.mxu0 0.0
    %716 = vmatpush2.msra.mxu0 0.0
    %717 = vmatprep.subr.mxu0 0.0
    %718 = vmatpush2.msra.mxu0 0.0
    %719 = vmatprep.subr.mxu0 0.0
    %720 = vmatpush2.msra.mxu0 0.0
    %721 = vmatprep.subr.mxu0 0.0
    %722 = vmatpush2.msra.mxu0 0.0
    %723 = vmatprep.mubr.f32.mxu0 0.0
    %724 = vmatmul.mubr.f32.gmra.mxu0 %v657
    %v725 = vpop.f32.mrf.mxu0
    %v726 = vadd.f32 %v653, %v725
    %v727 = vpop.f32.mrf.mxu0
    %728 = vdwg.mxu0
    %v729 = vadd.f32 %v726, %v205
    %v730 = vxor.u32 %v729, 2147483648
    %v731 = vmul.f32 %v730, 1.442695
    %v732 = vpow.pop %v731
    %v733 = vadd.f32 %v732, 1.0
    %v734 = vrcp.pop %v733
    %v735 = vmul.f32 1.0, %v734
    %v736 = vtanh.pop %v729
    %v737 = vmul.f32 %v735, %v225
    %739 = vrot.lane.b32.xlu0 %v736, 64
    %v740 = vpop.permute.xlu0 %739
    %v742 = vmul.f32 %v735, %v740
    %744 = vrot.lane.b32.xlu0 %v742, 32
    %v745 = vpop.permute.xlu0 %744
    %v747 = vadd.f32 %v737, %v745
    %v748 = vtanh.pop %v747
    %750 = vrot.lane.b32.xlu0 %v748, 64
    %v751 = vpop.permute.xlu0 %750
    %v753 = vmul.f32 %v735, %v751
    %754 = vmatprep.subr.mxu0 0.0
    %755 = vmatpush1.msra.mxu0 0.0
    %756 = vmatprep.subr.mxu0 0.0
    %757 = vmatpush1.msra.mxu0 0.0
    %758 = vmatprep.subr.mxu0 0.0
    %759 = vmatpush1.msra.mxu0 0.0
    %760 = vmatprep.subr.mxu0 0.0
    %761 = vmatpush1.msra.mxu0 0.0
    %762 = vmatprep.subr.mxu0 0.0
    %763 = vmatpush1.msra.mxu0 0.0
    %764 = vmatprep.subr.mxu0 0.0
    %765 = vmatpush1.msra.mxu0 0.0
    %766 = vmatprep.subr.mxu0 0.0
    %767 = vmatpush1.msra.mxu0 0.0
    %768 = vmatprep.subr.mxu0 0.0
    %769 = vmatpush1.msra.mxu0 0.0
    %770 = vmatprep.subr.mxu0 0.0
    %771 = vmatpush1.msra.mxu0 0.0
    %772 = vmatprep.subr.mxu0 0.0
    %773 = vmatpush1.msra.mxu0 0.0
    %774 = vmatprep.subr.mxu0 0.0
    %775 = vmatpush1.msra.mxu0 0.0
    %776 = vmatprep.subr.mxu0 0.0
    %777 = vmatpush1.msra.mxu0 0.0
    %778 = vmatprep.subr.mxu0 0.0
    %779 = vmatpush1.msra.mxu0 %v45
    %780 = vmatprep.subr.mxu0 0.0
    %781 = vmatpush1.msra.mxu0 %v44
    %782 = vmatprep.subr.mxu0 0.0
    %783 = vmatpush1.msra.mxu0 %v43
    %784 = vmatprep.subr.mxu0 0.0
    %785 = vmatpush1.msra.mxu0 %v42
    %786 = vmatprep.subr.mxu0 0.0
    %787 = vmatpush2.msra.mxu0 0.0
    %788 = vmatprep.subr.mxu0 0.0
    %789 = vmatpush2.msra.mxu0 0.0
    %790 = vmatprep.subr.mxu0 0.0
    %791 = vmatpush2.msra.mxu0 0.0
    %792 = vmatprep.subr.mxu0 0.0
    %793 = vmatpush2.msra.mxu0 0.0
    %794 = vmatprep.subr.mxu0 0.0
    %795 = vmatpush2.msra.mxu0 0.0
    %796 = vmatprep.subr.mxu0 0.0
    %797 = vmatpush2.msra.mxu0 0.0
    %798 = vmatprep.subr.mxu0 0.0
    %799 = vmatpush2.msra.mxu0 0.0
    %800 = vmatprep.subr.mxu0 0.0
    %801 = vmatpush2.msra.mxu0 0.0
    %802 = vmatprep.subr.mxu0 0.0
    %803 = vmatpush2.msra.mxu0 0.0
    %804 = vmatprep.subr.mxu0 0.0
    %805 = vmatpush2.msra.mxu0 0.0
    %806 = vmatprep.subr.mxu0 0.0
    %807 = vmatpush2.msra.mxu0 0.0
    %808 = vmatprep.subr.mxu0 0.0
    %809 = vmatpush2.msra.mxu0 0.0
    %810 = vmatprep.subr.mxu0 0.0
    %811 = vmatpush2.msra.mxu0 0.0
    %812 = vmatprep.subr.mxu0 0.0
    %813 = vmatpush2.msra.mxu0 0.0
    %814 = vmatprep.subr.mxu0 0.0
    %815 = vmatpush2.msra.mxu0 0.0
    %816 = vmatprep.subr.mxu0 0.0
    %817 = vmatpush2.msra.mxu0 0.0
    %818 = vmatprep.mubr.f32.mxu0 0.0
    %819 = vmatmul.mubr.f32.gmra.mxu0 %v481
    %v820 = vpop.f32.mrf.mxu0
    %v821 = vadd.f32 0.0, %v820
    %v822 = vpop.f32.mrf.mxu0
    %823 = vdwg.mxu0
    %825 = vrot.lane.b32.xlu0 %v753, 32
    %v826 = vpop.permute.xlu0 %825
    %v827 = vsel %vm53, %v826, 0
    %829 = vmatprep.subr.mxu0 0.0
    %830 = vmatpush1.msra.mxu0 0.0
    %831 = vmatprep.subr.mxu0 0.0
    %832 = vmatpush1.msra.mxu0 0.0
    %833 = vmatprep.subr.mxu0 0.0
    %834 = vmatpush1.msra.mxu0 0.0
    %835 = vmatprep.subr.mxu0 0.0
    %836 = vmatpush1.msra.mxu0 0.0
    %837 = vmatprep.subr.mxu0 0.0
    %838 = vmatpush1.msra.mxu0 0.0
    %839 = vmatprep.subr.mxu0 0.0
    %840 = vmatpush1.msra.mxu0 0.0
    %841 = vmatprep.subr.mxu0 0.0
    %842 = vmatpush1.msra.mxu0 0.0
    %843 = vmatprep.subr.mxu0 0.0
    %844 = vmatpush1.msra.mxu0 0.0
    %845 = vmatprep.subr.mxu0 0.0
    %846 = vmatpush1.msra.mxu0 0.0
    %847 = vmatprep.subr.mxu0 0.0
    %848 = vmatpush1.msra.mxu0 0.0
    %849 = vmatprep.subr.mxu0 0.0
    %850 = vmatpush1.msra.mxu0 0.0
    %851 = vmatprep.subr.mxu0 0.0
    %852 = vmatpush1.msra.mxu0 0.0
    %853 = vmatprep.subr.mxu0 0.0
    %854 = vmatpush1.msra.mxu0 %v37
    %855 = vmatprep.subr.mxu0 0.0
    %856 = vmatpush1.msra.mxu0 %v36
    %857 = vmatprep.subr.mxu0 0.0
    %858 = vmatpush1.msra.mxu0 %v35
    %859 = vmatprep.subr.mxu0 0.0
    %860 = vmatpush1.msra.mxu0 %v34
    %861 = vmatprep.subr.mxu0 0.0
    %862 = vmatpush2.msra.mxu0 0.0
    %863 = vmatprep.subr.mxu0 0.0
    %864 = vmatpush2.msra.mxu0 0.0
    %865 = vmatprep.subr.mxu0 0.0
    %866 = vmatpush2.msra.mxu0 0.0
    %867 = vmatprep.subr.mxu0 0.0
    %868 = vmatpush2.msra.mxu0 0.0
    %869 = vmatprep.subr.mxu0 0.0
    %870 = vmatpush2.msra.mxu0 0.0
    %871 = vmatprep.subr.mxu0 0.0
    %872 = vmatpush2.msra.mxu0 0.0
    %873 = vmatprep.subr.mxu0 0.0
    %874 = vmatpush2.msra.mxu0 0.0
    %875 = vmatprep.subr.mxu0 0.0
    %876 = vmatpush2.msra.mxu0 0.0
    %877 = vmatprep.subr.mxu0 0.0
    %878 = vmatpush2.msra.mxu0 0.0
    %879 = vmatprep.subr.mxu0 0.0
    %880 = vmatpush2.msra.mxu0 0.0
    %881 = vmatprep.subr.mxu0 0.0
    %882 = vmatpush2.msra.mxu0 0.0
    %883 = vmatprep.subr.mxu0 0.0
    %884 = vmatpush2.msra.mxu0 0.0
    %885 = vmatprep.subr.mxu0 0.0
    %886 = vmatpush2.msra.mxu0 0.0
    %887 = vmatprep.subr.mxu0 0.0
    %888 = vmatpush2.msra.mxu0 0.0
    %889 = vmatprep.subr.mxu0 0.0
    %890 = vmatpush2.msra.mxu0 0.0
    %891 = vmatprep.subr.mxu0 0.0
    %892 = vmatpush2.msra.mxu0 0.0
    %893 = vmatprep.mubr.f32.mxu0 0.0
    %894 = vmatmul.mubr.f32.gmra.mxu0 %v827
    %v895 = vpop.f32.mrf.mxu0
    %v896 = vadd.f32 %v821, %v895
    %v897 = vpop.f32.mrf.mxu0
    %898 = vdwg.mxu0
    %v899 = vadd.f32 %v896, %v381
    %v900 = vxor.u32 %v899, 2147483648
    %v901 = vmul.f32 %v900, 1.442695
    %v902 = vpow.pop %v901
    %v903 = vadd.f32 %v902, 1.0
    %v904 = vrcp.pop %v903
    %v905 = vmul.f32 1.0, %v904
    %v906 = vtanh.pop %v899
    %v907 = vmul.f32 %v905, %v401
    %909 = vrot.lane.b32.xlu0 %v906, 64
    %v910 = vpop.permute.xlu0 %909
    %v912 = vmul.f32 %v905, %v910
    %914 = vrot.lane.b32.xlu0 %v912, 32
    %v915 = vpop.permute.xlu0 %914
    %v917 = vadd.f32 %v907, %v915
    %v918 = vtanh.pop %v917
    %920 = vrot.lane.b32.xlu0 %v918, 64
    %v921 = vpop.permute.xlu0 %920
    %v923 = vmul.f32 %v905, %v921
    %925 = vrot.lane.b32.xlu0 %v583, 32
    %v926 = vpop.permute.xlu0 %925
    %v927 = vsel %vm53, %v926, 0
    %929 = vmatprep.subr.mxu0 0.0
    %930 = vmatpush1.msra.mxu0 0.0
    %931 = vmatprep.subr.mxu0 0.0
    %932 = vmatpush1.msra.mxu0 0.0
    %933 = vmatprep.subr.mxu0 0.0
    %934 = vmatpush1.msra.mxu0 0.0
    %935 = vmatprep.subr.mxu0 0.0
    %936 = vmatpush1.msra.mxu0 0.0
    %937 = vmatprep.subr.mxu0 0.0
    %938 = vmatpush1.msra.mxu0 0.0
    %939 = vmatprep.subr.mxu0 0.0
    %940 = vmatpush1.msra.mxu0 0.0
    %941 = vmatprep.subr.mxu0 0.0
    %942 = vmatpush1.msra.mxu0 0.0
    %943 = vmatprep.subr.mxu0 0.0
    %944 = vmatpush1.msra.mxu0 0.0
    %945 = vmatprep.subr.mxu0 0.0
    %946 = vmatpush1.msra.mxu0 0.0
    %947 = vmatprep.subr.mxu0 0.0
    %948 = vmatpush1.msra.mxu0 0.0
    %949 = vmatprep.subr.mxu0 0.0
    %950 = vmatpush1.msra.mxu0 0.0
    %951 = vmatprep.subr.mxu0 0.0
    %952 = vmatpush1.msra.mxu0 0.0
    %953 = vmatprep.subr.mxu0 0.0
    %954 = vmatpush1.msra.mxu0 %v49
    %955 = vmatprep.subr.mxu0 0.0
    %956 = vmatpush1.msra.mxu0 %v48
    %957 = vmatprep.subr.mxu0 0.0
    %958 = vmatpush1.msra.mxu0 %v47
    %959 = vmatprep.subr.mxu0 0.0
    %960 = vmatpush1.msra.mxu0 %v46
    %961 = vmatprep.subr.mxu0 0.0
    %962 = vmatpush2.msra.mxu0 0.0
    %963 = vmatprep.subr.mxu0 0.0
    %964 = vmatpush2.msra.mxu0 0.0
    %965 = vmatprep.subr.mxu0 0.0
    %966 = vmatpush2.msra.mxu0 0.0
    %967 = vmatprep.subr.mxu0 0.0
    %968 = vmatpush2.msra.mxu0 0.0
    %969 = vmatprep.subr.mxu0 0.0
    %970 = vmatpush2.msra.mxu0 0.0
    %971 = vmatprep.subr.mxu0 0.0
    %972 = vmatpush2.msra.mxu0 0.0
    %973 = vmatprep.subr.mxu0 0.0
    %974 = vmatpush2.msra.mxu0 0.0
    %975 = vmatprep.subr.mxu0 0.0
    %976 = vmatpush2.msra.mxu0 0.0
    %977 = vmatprep.subr.mxu0 0.0
    %978 = vmatpush2.msra.mxu0 0.0
    %979 = vmatprep.subr.mxu0 0.0
    %980 = vmatpush2.msra.mxu0 0.0
    %981 = vmatprep.subr.mxu0 0.0
    %982 = vmatpush2.msra.mxu0 0.0
    %983 = vmatprep.subr.mxu0 0.0
    %984 = vmatpush2.msra.mxu0 0.0
    %985 = vmatprep.subr.mxu0 0.0
    %986 = vmatpush2.msra.mxu0 0.0
    %987 = vmatprep.subr.mxu0 0.0
    %988 = vmatpush2.msra.mxu0 0.0
    %989 = vmatprep.subr.mxu0 0.0
    %990 = vmatpush2.msra.mxu0 0.0
    %991 = vmatprep.subr.mxu0 0.0
    %992 = vmatpush2.msra.mxu0 0.0
    %993 = vmatprep.mubr.f32.mxu0 0.0
    %994 = vmatmul.mubr.f32.gmra.mxu0 %v927
    %v995 = vpop.f32.mrf.mxu0
    %v996 = vadd.f32 0.0, %v995
    %v997 = vpop.f32.mrf.mxu0
    %998 = vdwg.mxu0
    %1000 = vrot.lane.b32.xlu0 %v923, 32
    %v1001 = vpop.permute.xlu0 %1000
    %v1002 = vsel %vm53, %v1001, 0
    %1004 = vmatprep.subr.mxu0 0.0
    %1005 = vmatpush1.msra.mxu0 0.0
    %1006 = vmatprep.subr.mxu0 0.0
    %1007 = vmatpush1.msra.mxu0 0.0
    %1008 = vmatprep.subr.mxu0 0.0
    %1009 = vmatpush1.msra.mxu0 0.0
    %1010 = vmatprep.subr.mxu0 0.0
    %1011 = vmatpush1.msra.mxu0 0.0
    %1012 = vmatprep.subr.mxu0 0.0
    %1013 = vmatpush1.msra.mxu0 0.0
    %1014 = vmatprep.subr.mxu0 0.0
    %1015 = vmatpush1.msra.mxu0 0.0
    %1016 = vmatprep.subr.mxu0 0.0
    %1017 = vmatpush1.msra.mxu0 0.0
    %1018 = vmatprep.subr.mxu0 0.0
    %1019 = vmatpush1.msra.mxu0 0.0
    %1020 = vmatprep.subr.mxu0 0.0
    %1021 = vmatpush1.msra.mxu0 0.0
    %1022 = vmatprep.subr.mxu0 0.0
    %1023 = vmatpush1.msra.mxu0 0.0
    %1024 = vmatprep.subr.mxu0 0.0
    %1025 = vmatpush1.msra.mxu0 0.0
    %1026 = vmatprep.subr.mxu0 0.0
    %1027 = vmatpush1.msra.mxu0 0.0
    %1028 = vmatprep.subr.mxu0 0.0
    %1029 = vmatpush1.msra.mxu0 %v41
    %1030 = vmatprep.subr.mxu0 0.0
    %1031 = vmatpush1.msra.mxu0 %v40
    %1032 = vmatprep.subr.mxu0 0.0
    %1033 = vmatpush1.msra.mxu0 %v39
    %1034 = vmatprep.subr.mxu0 0.0
    %1035 = vmatpush1.msra.mxu0 %v38
    %1036 = vmatprep.subr.mxu0 0.0
    %1037 = vmatpush2.msra.mxu0 0.0
    %1038 = vmatprep.subr.mxu0 0.0
    %1039 = vmatpush2.msra.mxu0 0.0
    %1040 = vmatprep.subr.mxu0 0.0
    %1041 = vmatpush2.msra.mxu0 0.0
    %1042 = vmatprep.subr.mxu0 0.0
    %1043 = vmatpush2.msra.mxu0 0.0
    %1044 = vmatprep.subr.mxu0 0.0
    %1045 = vmatpush2.msra.mxu0 0.0
    %1046 = vmatprep.subr.mxu0 0.0
    %1047 = vmatpush2.msra.mxu0 0.0
    %1048 = vmatprep.subr.mxu0 0.0
    %1049 = vmatpush2.msra.mxu0 0.0
    %1050 = vmatprep.subr.mxu0 0.0
    %1051 = vmatpush2.msra.mxu0 0.0
    %1052 = vmatprep.subr.mxu0 0.0
    %1053 = vmatpush2.msra.mxu0 0.0
    %1054 = vmatprep.subr.mxu0 0.0
    %1055 = vmatpush2.msra.mxu0 0.0
    %1056 = vmatprep.subr.mxu0 0.0
    %1057 = vmatpush2.msra.mxu0 0.0
    %1058 = vmatprep.subr.mxu0 0.0
    %1059 = vmatpush2.msra.mxu0 0.0
    %1060 = vmatprep.subr.mxu0 0.0
    %1061 = vmatpush2.msra.mxu0 0.0
    %1062 = vmatprep.subr.mxu0 0.0
    %1063 = vmatpush2.msra.mxu0 0.0
    %1064 = vmatprep.subr.mxu0 0.0
    %1065 = vmatpush2.msra.mxu0 0.0
    %1066 = vmatprep.subr.mxu0 0.0
    %1067 = vmatpush2.msra.mxu0 0.0
    %1068 = vmatprep.mubr.f32.mxu0 0.0
    %1069 = vmatmul.mubr.f32.gmra.mxu0 %v1002
    %v1070 = vpop.f32.mrf.mxu0
    %v1071 = vadd.f32 %v996, %v1070
    %v1072 = vpop.f32.mrf.mxu0
    %1073 = vdwg.mxu0
    %v1074 = vadd.f32 %v1071, %v557
    %v1075 = vxor.u32 %v1074, 2147483648
    %v1076 = vmul.f32 %v1075, 1.442695
    %v1077 = vpow.pop %v1076
    %v1078 = vadd.f32 %v1077, 1.0
    %v1079 = vrcp.pop %v1078
    %v1080 = vmul.f32 1.0, %v1079
    %v1081 = vtanh.pop %v1074
    %v1082 = vmul.f32 %v1080, %v577
    %1084 = vrot.lane.b32.xlu0 %v1081, 64
    %v1085 = vpop.permute.xlu0 %1084
    %v1087 = vmul.f32 %v1080, %v1085
    %1089 = vrot.lane.b32.xlu0 %v1087, 32
    %v1090 = vpop.permute.xlu0 %1089
    %v1092 = vadd.f32 %v1082, %v1090
    %v1093 = vtanh.pop %v1092
    %1095 = vrot.lane.b32.xlu0 %v1093, 64
    %v1096 = vpop.permute.xlu0 %1095
    %v1098 = vmul.f32 %v1080, %v1096
    %s1099 = scalar_lea.vmem %s0, 4
    %v1100 = vld [vmem:[%s1099] sm:$0x3]
    %1101 = vmatprep.subr.mxu0 0.0
    %1102 = vmatpush1.msra.mxu0 0.0
    %1103 = vmatprep.subr.mxu0 0.0
    %1104 = vmatpush1.msra.mxu0 0.0
    %1105 = vmatprep.subr.mxu0 0.0
    %1106 = vmatpush1.msra.mxu0 0.0
    %1107 = vmatprep.subr.mxu0 0.0
    %1108 = vmatpush1.msra.mxu0 0.0
    %1109 = vmatprep.subr.mxu0 0.0
    %1110 = vmatpush1.msra.mxu0 0.0
    %1111 = vmatprep.subr.mxu0 0.0
    %1112 = vmatpush1.msra.mxu0 0.0
    %1113 = vmatprep.subr.mxu0 0.0
    %1114 = vmatpush1.msra.mxu0 0.0
    %1115 = vmatprep.subr.mxu0 0.0
    %1116 = vmatpush1.msra.mxu0 0.0
    %1117 = vmatprep.subr.mxu0 0.0
    %1118 = vmatpush1.msra.mxu0 0.0
    %1119 = vmatprep.subr.mxu0 0.0
    %1120 = vmatpush1.msra.mxu0 0.0
    %1121 = vmatprep.subr.mxu0 0.0
    %1122 = vmatpush1.msra.mxu0 0.0
    %1123 = vmatprep.subr.mxu0 0.0
    %1124 = vmatpush1.msra.mxu0 0.0
    %1125 = vmatprep.subr.mxu0 0.0
    %1126 = vmatpush1.msra.mxu0 %v32
    %1127 = vmatprep.subr.mxu0 0.0
    %1128 = vmatpush1.msra.mxu0 %v31
    %1129 = vmatprep.subr.mxu0 0.0
    %1130 = vmatpush1.msra.mxu0 %v30
    %1131 = vmatprep.subr.mxu0 0.0
    %1132 = vmatpush1.msra.mxu0 %v29
    %1133 = vmatprep.subr.mxu0 0.0
    %1134 = vmatpush2.msra.mxu0 0.0
    %1135 = vmatprep.subr.mxu0 0.0
    %1136 = vmatpush2.msra.mxu0 0.0
    %1137 = vmatprep.subr.mxu0 0.0
    %1138 = vmatpush2.msra.mxu0 0.0
    %1139 = vmatprep.subr.mxu0 0.0
    %1140 = vmatpush2.msra.mxu0 0.0
    %1141 = vmatprep.subr.mxu0 0.0
    %1142 = vmatpush2.msra.mxu0 0.0
    %1143 = vmatprep.subr.mxu0 0.0
    %1144 = vmatpush2.msra.mxu0 0.0
    %1145 = vmatprep.subr.mxu0 0.0
    %1146 = vmatpush2.msra.mxu0 0.0
    %1147 = vmatprep.subr.mxu0 0.0
    %1148 = vmatpush2.msra.mxu0 0.0
    %1149 = vmatprep.subr.mxu0 0.0
    %1150 = vmatpush2.msra.mxu0 0.0
    %1151 = vmatprep.subr.mxu0 0.0
    %1152 = vmatpush2.msra.mxu0 0.0
    %1153 = vmatprep.subr.mxu0 0.0
    %1154 = vmatpush2.msra.mxu0 0.0
    %1155 = vmatprep.subr.mxu0 0.0
    %1156 = vmatpush2.msra.mxu0 0.0
    %1157 = vmatprep.subr.mxu0 0.0
    %1158 = vmatpush2.msra.mxu0 0.0
    %1159 = vmatprep.subr.mxu0 0.0
    %1160 = vmatpush2.msra.mxu0 0.0
    %1161 = vmatprep.subr.mxu0 0.0
    %1162 = vmatpush2.msra.mxu0 0.0
    %1163 = vmatprep.subr.mxu0 0.0
    %1164 = vmatpush2.msra.mxu0 0.0
    %1165 = vmatprep.mubr.f32.mxu0 0.0
    %1166 = vmatmul.mubr.f32.gmra.mxu0 %v827
    %v1167 = vpop.f32.mrf.mxu0
    %v1168 = vadd.f32 0.0, %v1167
    %v1169 = vpop.f32.mrf.mxu0
    %1170 = vdwg.mxu0
    %v1172 = vsel %vm127, %v1100, 0
    %1174 = vmatprep.subr.mxu0 0.0
    %1175 = vmatpush1.msra.mxu0 0.0
    %1176 = vmatprep.subr.mxu0 0.0
    %1177 = vmatpush1.msra.mxu0 0.0
    %1178 = vmatprep.subr.mxu0 0.0
    %1179 = vmatpush1.msra.mxu0 0.0
    %1180 = vmatprep.subr.mxu0 0.0
    %1181 = vmatpush1.msra.mxu0 0.0
    %1182 = vmatprep.subr.mxu0 0.0
    %1183 = vmatpush1.msra.mxu0 0.0
    %1184 = vmatprep.subr.mxu0 0.0
    %1185 = vmatpush1.msra.mxu0 0.0
    %1186 = vmatprep.subr.mxu0 0.0
    %1187 = vmatpush1.msra.mxu0 0.0
    %1188 = vmatprep.subr.mxu0 0.0
    %1189 = vmatpush1.msra.mxu0 0.0
    %1190 = vmatprep.subr.mxu0 0.0
    %1191 = vmatpush1.msra.mxu0 0.0
    %1192 = vmatprep.subr.mxu0 0.0
    %1193 = vmatpush1.msra.mxu0 0.0
    %1194 = vmatprep.subr.mxu0 0.0
    %1195 = vmatpush1.msra.mxu0 0.0
    %1196 = vmatprep.subr.mxu0 0.0
    %1197 = vmatpush1.msra.mxu0 0.0
    %1198 = vmatprep.subr.mxu0 0.0
    %1199 = vmatpush1.msra.mxu0 0.0
    %1200 = vmatprep.subr.mxu0 0.0
    %1201 = vmatpush1.msra.mxu0 0.0
    %1202 = vmatprep.subr.mxu0 0.0
    %1203 = vmatpush1.msra.mxu0 %v28
    %1204 = vmatprep.subr.mxu0 0.0
    %1205 = vmatpush1.msra.mxu0 %v27
    %1206 = vmatprep.subr.mxu0 0.0
    %1207 = vmatpush2.msra.mxu0 0.0
    %1208 = vmatprep.subr.mxu0 0.0
    %1209 = vmatpush2.msra.mxu0 0.0
    %1210 = vmatprep.subr.mxu0 0.0
    %1211 = vmatpush2.msra.mxu0 0.0
    %1212 = vmatprep.subr.mxu0 0.0
    %1213 = vmatpush2.msra.mxu0 0.0
    %1214 = vmatprep.subr.mxu0 0.0
    %1215 = vmatpush2.msra.mxu0 0.0
    %1216 = vmatprep.subr.mxu0 0.0
    %1217 = vmatpush2.msra.mxu0 0.0
    %1218 = vmatprep.subr.mxu0 0.0
    %1219 = vmatpush2.msra.mxu0 0.0
    %1220 = vmatprep.subr.mxu0 0.0
    %1221 = vmatpush2.msra.mxu0 0.0
    %1222 = vmatprep.subr.mxu0 0.0
    %1223 = vmatpush2.msra.mxu0 0.0
    %1224 = vmatprep.subr.mxu0 0.0
    %1225 = vmatpush2.msra.mxu0 0.0
    %1226 = vmatprep.subr.mxu0 0.0
    %1227 = vmatpush2.msra.mxu0 0.0
    %1228 = vmatprep.subr.mxu0 0.0
    %1229 = vmatpush2.msra.mxu0 0.0
    %1230 = vmatprep.subr.mxu0 0.0
    %1231 = vmatpush2.msra.mxu0 0.0
    %1232 = vmatprep.subr.mxu0 0.0
    %1233 = vmatpush2.msra.mxu0 0.0
    %1234 = vmatprep.subr.mxu0 0.0
    %1235 = vmatpush2.msra.mxu0 0.0
    %1236 = vmatprep.subr.mxu0 0.0
    %1237 = vmatpush2.msra.mxu0 0.0
    %1238 = vmatprep.mubr.f32.mxu0 0.0
    %1239 = vmatmul.mubr.f32.gmra.mxu0 %v1172
    %v1240 = vpop.f32.mrf.mxu0
    %v1241 = vadd.f32 %v1168, %v1240
    %v1242 = vpop.f32.mrf.mxu0
    %1243 = vdwg.mxu0
    %v1244 = vadd.f32 %v1241, %v205
    %v1245 = vxor.u32 %v1244, 2147483648
    %v1246 = vmul.f32 %v1245, 1.442695
    %v1247 = vpow.pop %v1246
    %v1248 = vadd.f32 %v1247, 1.0
    %v1249 = vrcp.pop %v1248
    %v1250 = vmul.f32 1.0, %v1249
    %v1251 = vtanh.pop %v1244
    %v1252 = vmul.f32 %v1250, %v747
    %1254 = vrot.lane.b32.xlu0 %v1251, 64
    %v1255 = vpop.permute.xlu0 %1254
    %v1257 = vmul.f32 %v1250, %v1255
    %1259 = vrot.lane.b32.xlu0 %v1257, 32
    %v1260 = vpop.permute.xlu0 %1259
    %v1262 = vadd.f32 %v1252, %v1260
    %v1263 = vtanh.pop %v1262
    %1265 = vrot.lane.b32.xlu0 %v1263, 64
    %v1266 = vpop.permute.xlu0 %1265
    %v1268 = vmul.f32 %v1250, %v1266
    %1269 = vmatprep.subr.mxu0 0.0
    %1270 = vmatpush1.msra.mxu0 0.0
    %1271 = vmatprep.subr.mxu0 0.0
    %1272 = vmatpush1.msra.mxu0 0.0
    %1273 = vmatprep.subr.mxu0 0.0
    %1274 = vmatpush1.msra.mxu0 0.0
    %1275 = vmatprep.subr.mxu0 0.0
    %1276 = vmatpush1.msra.mxu0 0.0
    %1277 = vmatprep.subr.mxu0 0.0
    %1278 = vmatpush1.msra.mxu0 0.0
    %1279 = vmatprep.subr.mxu0 0.0
    %1280 = vmatpush1.msra.mxu0 0.0
    %1281 = vmatprep.subr.mxu0 0.0
    %1282 = vmatpush1.msra.mxu0 0.0
    %1283 = vmatprep.subr.mxu0 0.0
    %1284 = vmatpush1.msra.mxu0 0.0
    %1285 = vmatprep.subr.mxu0 0.0
    %1286 = vmatpush1.msra.mxu0 0.0
    %1287 = vmatprep.subr.mxu0 0.0
    %1288 = vmatpush1.msra.mxu0 0.0
    %1289 = vmatprep.subr.mxu0 0.0
    %1290 = vmatpush1.msra.mxu0 0.0
    %1291 = vmatprep.subr.mxu0 0.0
    %1292 = vmatpush1.msra.mxu0 0.0
    %1293 = vmatprep.subr.mxu0 0.0
    %1294 = vmatpush1.msra.mxu0 %v45
    %1295 = vmatprep.subr.mxu0 0.0
    %1296 = vmatpush1.msra.mxu0 %v44
    %1297 = vmatprep.subr.mxu0 0.0
    %1298 = vmatpush1.msra.mxu0 %v43
    %1299 = vmatprep.subr.mxu0 0.0
    %1300 = vmatpush1.msra.mxu0 %v42
    %1301 = vmatprep.subr.mxu0 0.0
    %1302 = vmatpush2.msra.mxu0 0.0
    %1303 = vmatprep.subr.mxu0 0.0
    %1304 = vmatpush2.msra.mxu0 0.0
    %1305 = vmatprep.subr.mxu0 0.0
    %1306 = vmatpush2.msra.mxu0 0.0
    %1307 = vmatprep.subr.mxu0 0.0
    %1308 = vmatpush2.msra.mxu0 0.0
    %1309 = vmatprep.subr.mxu0 0.0
    %1310 = vmatpush2.msra.mxu0 0.0
    %1311 = vmatprep.subr.mxu0 0.0
    %1312 = vmatpush2.msra.mxu0 0.0
    %1313 = vmatprep.subr.mxu0 0.0
    %1314 = vmatpush2.msra.mxu0 0.0
    %1315 = vmatprep.subr.mxu0 0.0
    %1316 = vmatpush2.msra.mxu0 0.0
    %1317 = vmatprep.subr.mxu0 0.0
    %1318 = vmatpush2.msra.mxu0 0.0
    %1319 = vmatprep.subr.mxu0 0.0
    %1320 = vmatpush2.msra.mxu0 0.0
    %1321 = vmatprep.subr.mxu0 0.0
    %1322 = vmatpush2.msra.mxu0 0.0
    %1323 = vmatprep.subr.mxu0 0.0
    %1324 = vmatpush2.msra.mxu0 0.0
    %1325 = vmatprep.subr.mxu0 0.0
    %1326 = vmatpush2.msra.mxu0 0.0
    %1327 = vmatprep.subr.mxu0 0.0
    %1328 = vmatpush2.msra.mxu0 0.0
    %1329 = vmatprep.subr.mxu0 0.0
    %1330 = vmatpush2.msra.mxu0 0.0
    %1331 = vmatprep.subr.mxu0 0.0
    %1332 = vmatpush2.msra.mxu0 0.0
    %1333 = vmatprep.mubr.f32.mxu0 0.0
    %1334 = vmatmul.mubr.f32.gmra.mxu0 %v1002
    %v1335 = vpop.f32.mrf.mxu0
    %v1336 = vadd.f32 0.0, %v1335
    %v1337 = vpop.f32.mrf.mxu0
    %1338 = vdwg.mxu0
    %1340 = vrot.lane.b32.xlu0 %v1268, 32
    %v1341 = vpop.permute.xlu0 %1340
    %v1342 = vsel %vm53, %v1341, 0
    %1344 = vmatprep.subr.mxu0 0.0
    %1345 = vmatpush1.msra.mxu0 0.0
    %1346 = vmatprep.subr.mxu0 0.0
    %1347 = vmatpush1.msra.mxu0 0.0
    %1348 = vmatprep.subr.mxu0 0.0
    %1349 = vmatpush1.msra.mxu0 0.0
    %1350 = vmatprep.subr.mxu0 0.0
    %1351 = vmatpush1.msra.mxu0 0.0
    %1352 = vmatprep.subr.mxu0 0.0
    %1353 = vmatpush1.msra.mxu0 0.0
    %1354 = vmatprep.subr.mxu0 0.0
    %1355 = vmatpush1.msra.mxu0 0.0
    %1356 = vmatprep.subr.mxu0 0.0
    %1357 = vmatpush1.msra.mxu0 0.0
    %1358 = vmatprep.subr.mxu0 0.0
    %1359 = vmatpush1.msra.mxu0 0.0
    %1360 = vmatprep.subr.mxu0 0.0
    %1361 = vmatpush1.msra.mxu0 0.0
    %1362 = vmatprep.subr.mxu0 0.0
    %1363 = vmatpush1.msra.mxu0 0.0
    %1364 = vmatprep.subr.mxu0 0.0
    %1365 = vmatpush1.msra.mxu0 0.0
    %1366 = vmatprep.subr.mxu0 0.0
    %1367 = vmatpush1.msra.mxu0 0.0
    %1368 = vmatprep.subr.mxu0 0.0
    %1369 = vmatpush1.msra.mxu0 %v37
    %1370 = vmatprep.subr.mxu0 0.0
    %1371 = vmatpush1.msra.mxu0 %v36
    %1372 = vmatprep.subr.mxu0 0.0
    %1373 = vmatpush1.msra.mxu0 %v35
    %1374 = vmatprep.subr.mxu0 0.0
    %1375 = vmatpush1.msra.mxu0 %v34
    %1376 = vmatprep.subr.mxu0 0.0
    %1377 = vmatpush2.msra.mxu0 0.0
    %1378 = vmatprep.subr.mxu0 0.0
    %1379 = vmatpush2.msra.mxu0 0.0
    %1380 = vmatprep.subr.mxu0 0.0
    %1381 = vmatpush2.msra.mxu0 0.0
    %1382 = vmatprep.subr.mxu0 0.0
    %1383 = vmatpush2.msra.mxu0 0.0
    %1384 = vmatprep.subr.mxu0 0.0
    %1385 = vmatpush2.msra.mxu0 0.0
    %1386 = vmatprep.subr.mxu0 0.0
    %1387 = vmatpush2.msra.mxu0 0.0
    %1388 = vmatprep.subr.mxu0 0.0
    %1389 = vmatpush2.msra.mxu0 0.0
    %1390 = vmatprep.subr.mxu0 0.0
    %1391 = vmatpush2.msra.mxu0 0.0
    %1392 = vmatprep.subr.mxu0 0.0
    %1393 = vmatpush2.msra.mxu0 0.0
    %1394 = vmatprep.subr.mxu0 0.0
    %1395 = vmatpush2.msra.mxu0 0.0
    %1396 = vmatprep.subr.mxu0 0.0
    %1397 = vmatpush2.msra.mxu0 0.0
    %1398 = vmatprep.subr.mxu0 0.0
    %1399 = vmatpush2.msra.mxu0 0.0
    %1400 = vmatprep.subr.mxu0 0.0
    %1401 = vmatpush2.msra.mxu0 0.0
    %1402 = vmatprep.subr.mxu0 0.0
    %1403 = vmatpush2.msra.mxu0 0.0
    %1404 = vmatprep.subr.mxu0 0.0
    %1405 = vmatpush2.msra.mxu0 0.0
    %1406 = vmatprep.subr.mxu0 0.0
    %1407 = vmatpush2.msra.mxu0 0.0
    %1408 = vmatprep.mubr.f32.mxu0 0.0
    %1409 = vmatmul.mubr.f32.gmra.mxu0 %v1342
    %v1410 = vpop.f32.mrf.mxu0
    %v1411 = vadd.f32 %v1336, %v1410
    %v1412 = vpop.f32.mrf.mxu0
    %1413 = vdwg.mxu0
    %v1414 = vadd.f32 %v1411, %v381
    %v1415 = vxor.u32 %v1414, 2147483648
    %v1416 = vmul.f32 %v1415, 1.442695
    %v1417 = vpow.pop %v1416
    %v1418 = vadd.f32 %v1417, 1.0
    %v1419 = vrcp.pop %v1418
    %v1420 = vmul.f32 1.0, %v1419
    %v1421 = vtanh.pop %v1414
    %v1422 = vmul.f32 %v1420, %v917
    %1424 = vrot.lane.b32.xlu0 %v1421, 64
    %v1425 = vpop.permute.xlu0 %1424
    %v1427 = vmul.f32 %v1420, %v1425
    %1429 = vrot.lane.b32.xlu0 %v1427, 32
    %v1430 = vpop.permute.xlu0 %1429
    %v1432 = vadd.f32 %v1422, %v1430
    %v1433 = vtanh.pop %v1432
    %1435 = vrot.lane.b32.xlu0 %v1433, 64
    %v1436 = vpop.permute.xlu0 %1435
    %v1438 = vmul.f32 %v1420, %v1436
    %1440 = vrot.lane.b32.xlu0 %v1098, 32
    %v1441 = vpop.permute.xlu0 %1440
    %v1442 = vsel %vm53, %v1441, 0
    %1444 = vmatprep.subr.mxu0 0.0
    %1445 = vmatpush1.msra.mxu0 0.0
    %1446 = vmatprep.subr.mxu0 0.0
    %1447 = vmatpush1.msra.mxu0 0.0
    %1448 = vmatprep.subr.mxu0 0.0
    %1449 = vmatpush1.msra.mxu0 0.0
    %1450 = vmatprep.subr.mxu0 0.0
    %1451 = vmatpush1.msra.mxu0 0.0
    %1452 = vmatprep.subr.mxu0 0.0
    %1453 = vmatpush1.msra.mxu0 0.0
    %1454 = vmatprep.subr.mxu0 0.0
    %1455 = vmatpush1.msra.mxu0 0.0
    %1456 = vmatprep.subr.mxu0 0.0
    %1457 = vmatpush1.msra.mxu0 0.0
    %1458 = vmatprep.subr.mxu0 0.0
    %1459 = vmatpush1.msra.mxu0 0.0
    %1460 = vmatprep.subr.mxu0 0.0
    %1461 = vmatpush1.msra.mxu0 0.0
    %1462 = vmatprep.subr.mxu0 0.0
    %1463 = vmatpush1.msra.mxu0 0.0
    %1464 = vmatprep.subr.mxu0 0.0
    %1465 = vmatpush1.msra.mxu0 0.0
    %1466 = vmatprep.subr.mxu0 0.0
    %1467 = vmatpush1.msra.mxu0 0.0
    %1468 = vmatprep.subr.mxu0 0.0
    %1469 = vmatpush1.msra.mxu0 %v49
    %1470 = vmatprep.subr.mxu0 0.0
    %1471 = vmatpush1.msra.mxu0 %v48
    %1472 = vmatprep.subr.mxu0 0.0
    %1473 = vmatpush1.msra.mxu0 %v47
    %1474 = vmatprep.subr.mxu0 0.0
    %1475 = vmatpush1.msra.mxu0 %v46
    %1476 = vmatprep.subr.mxu0 0.0
    %1477 = vmatpush2.msra.mxu0 0.0
    %1478 = vmatprep.subr.mxu0 0.0
    %1479 = vmatpush2.msra.mxu0 0.0
    %1480 = vmatprep.subr.mxu0 0.0
    %1481 = vmatpush2.msra.mxu0 0.0
    %1482 = vmatprep.subr.mxu0 0.0
    %1483 = vmatpush2.msra.mxu0 0.0
    %1484 = vmatprep.subr.mxu0 0.0
    %1485 = vmatpush2.msra.mxu0 0.0
    %1486 = vmatprep.subr.mxu0 0.0
    %1487 = vmatpush2.msra.mxu0 0.0
    %1488 = vmatprep.subr.mxu0 0.0
    %1489 = vmatpush2.msra.mxu0 0.0
    %1490 = vmatprep.subr.mxu0 0.0
    %1491 = vmatpush2.msra.mxu0 0.0
    %1492 = vmatprep.subr.mxu0 0.0
    %1493 = vmatpush2.msra.mxu0 0.0
    %1494 = vmatprep.subr.mxu0 0.0
    %1495 = vmatpush2.msra.mxu0 0.0
    %1496 = vmatprep.subr.mxu0 0.0
    %1497 = vmatpush2.msra.mxu0 0.0
    %1498 = vmatprep.subr.mxu0 0.0
    %1499 = vmatpush2.msra.mxu0 0.0
    %1500 = vmatprep.subr.mxu0 0.0
    %1501 = vmatpush2.msra.mxu0 0.0
    %1502 = vmatprep.subr.mxu0 0.0
    %1503 = vmatpush2.msra.mxu0 0.0
    %1504 = vmatprep.subr.mxu0 0.0
    %1505 = vmatpush2.msra.mxu0 0.0
    %1506 = vmatprep.subr.mxu0 0.0
    %1507 = vmatpush2.msra.mxu0 0.0
    %1508 = vmatprep.mubr.f32.mxu0 0.0
    %1509 = vmatmul.mubr.f32.gmra.mxu0 %v1442
    %v1510 = vpop.f32.mrf.mxu0
    %v1511 = vadd.f32 0.0, %v1510
    %v1512 = vpop.f32.mrf.mxu0
    %1513 = vdwg.mxu0
    %1515 = vrot.lane.b32.xlu0 %v1438, 32
    %v1516 = vpop.permute.xlu0 %1515
    %v1517 = vsel %vm53, %v1516, 0
    %1519 = vmatprep.subr.mxu0 0.0
    %1520 = vmatpush1.msra.mxu0 0.0
    %1521 = vmatprep.subr.mxu0 0.0
    %1522 = vmatpush1.msra.mxu0 0.0
    %1523 = vmatprep.subr.mxu0 0.0
    %1524 = vmatpush1.msra.mxu0 0.0
    %1525 = vmatprep.subr.mxu0 0.0
    %1526 = vmatpush1.msra.mxu0 0.0
    %1527 = vmatprep.subr.mxu0 0.0
    %1528 = vmatpush1.msra.mxu0 0.0
    %1529 = vmatprep.subr.mxu0 0.0
    %1530 = vmatpush1.msra.mxu0 0.0
    %1531 = vmatprep.subr.mxu0 0.0
    %1532 = vmatpush1.msra.mxu0 0.0
    %1533 = vmatprep.subr.mxu0 0.0
    %1534 = vmatpush1.msra.mxu0 0.0
    %1535 = vmatprep.subr.mxu0 0.0
    %1536 = vmatpush1.msra.mxu0 0.0
    %1537 = vmatprep.subr.mxu0 0.0
    %1538 = vmatpush1.msra.mxu0 0.0
    %1539 = vmatprep.subr.mxu0 0.0
    %1540 = vmatpush1.msra.mxu0 0.0
    %1541 = vmatprep.subr.mxu0 0.0
    %1542 = vmatpush1.msra.mxu0 0.0
    %1543 = vmatprep.subr.mxu0 0.0
    %1544 = vmatpush1.msra.mxu0 %v41
    %1545 = vmatprep.subr.mxu0 0.0
    %1546 = vmatpush1.msra.mxu0 %v40
    %1547 = vmatprep.subr.mxu0 0.0
    %1548 = vmatpush1.msra.mxu0 %v39
    %1549 = vmatprep.subr.mxu0 0.0
    %1550 = vmatpush1.msra.mxu0 %v38
    %1551 = vmatprep.subr.mxu0 0.0
    %1552 = vmatpush2.msra.mxu0 0.0
    %1553 = vmatprep.subr.mxu0 0.0
    %1554 = vmatpush2.msra.mxu0 0.0
    %1555 = vmatprep.subr.mxu0 0.0
    %1556 = vmatpush2.msra.mxu0 0.0
    %1557 = vmatprep.subr.mxu0 0.0
    %1558 = vmatpush2.msra.mxu0 0.0
    %1559 = vmatprep.subr.mxu0 0.0
    %1560 = vmatpush2.msra.mxu0 0.0
    %1561 = vmatprep.subr.mxu0 0.0
    %1562 = vmatpush2.msra.mxu0 0.0
    %1563 = vmatprep.subr.mxu0 0.0
    %1564 = vmatpush2.msra.mxu0 0.0
    %1565 = vmatprep.subr.mxu0 0.0
    %1566 = vmatpush2.msra.mxu0 0.0
    %1567 = vmatprep.subr.mxu0 0.0
    %1568 = vmatpush2.msra.mxu0 0.0
    %1569 = vmatprep.subr.mxu0 0.0
    %1570 = vmatpush2.msra.mxu0 0.0
    %1571 = vmatprep.subr.mxu0 0.0
    %1572 = vmatpush2.msra.mxu0 0.0
    %1573 = vmatprep.subr.mxu0 0.0
    %1574 = vmatpush2.msra.mxu0 0.0
    %1575 = vmatprep.subr.mxu0 0.0
    %1576 = vmatpush2.msra.mxu0 0.0
    %1577 = vmatprep.subr.mxu0 0.0
    %1578 = vmatpush2.msra.mxu0 0.0
    %1579 = vmatprep.subr.mxu0 0.0
    %1580 = vmatpush2.msra.mxu0 0.0
    %1581 = vmatprep.subr.mxu0 0.0
    %1582 = vmatpush2.msra.mxu0 0.0
    %1583 = vmatprep.mubr.f32.mxu0 0.0
    %1584 = vmatmul.mubr.f32.gmra.mxu0 %v1517
    %v1585 = vpop.f32.mrf.mxu0
    %v1586 = vadd.f32 %v1511, %v1585
    %v1587 = vpop.f32.mrf.mxu0
    %1588 = vdwg.mxu0
    %v1589 = vadd.f32 %v1586, %v557
    %v1590 = vxor.u32 %v1589, 2147483648
    %v1591 = vmul.f32 %v1590, 1.442695
    %v1592 = vpow.pop %v1591
    %v1593 = vadd.f32 %v1592, 1.0
    %v1594 = vrcp.pop %v1593
    %v1595 = vmul.f32 1.0, %v1594
    %v1596 = vtanh.pop %v1589
    %v1597 = vmul.f32 %v1595, %v1092
    %1599 = vrot.lane.b32.xlu0 %v1596, 64
    %v1600 = vpop.permute.xlu0 %1599
    %v1602 = vmul.f32 %v1595, %v1600
    %1604 = vrot.lane.b32.xlu0 %v1602, 32
    %v1605 = vpop.permute.xlu0 %1604
    %v1607 = vadd.f32 %v1597, %v1605
    %v1608 = vtanh.pop %v1607
    %1610 = vrot.lane.b32.xlu0 %v1608, 64
    %v1611 = vpop.permute.xlu0 %1610
    %v1613 = vmul.f32 %v1595, %v1611
    %s1614 = scalar_lea.vmem %s0, 6
    %v1615 = vld [vmem:[%s1614] sm:$0x3]
    %1616 = vmatprep.subr.mxu0 0.0
    %1617 = vmatpush1.msra.mxu0 0.0
    %1618 = vmatprep.subr.mxu0 0.0
    %1619 = vmatpush1.msra.mxu0 0.0
    %1620 = vmatprep.subr.mxu0 0.0
    %1621 = vmatpush1.msra.mxu0 0.0
    %1622 = vmatprep.subr.mxu0 0.0
    %1623 = vmatpush1.msra.mxu0 0.0
    %1624 = vmatprep.subr.mxu0 0.0
    %1625 = vmatpush1.msra.mxu0 0.0
    %1626 = vmatprep.subr.mxu0 0.0
    %1627 = vmatpush1.msra.mxu0 0.0
    %1628 = vmatprep.subr.mxu0 0.0
    %1629 = vmatpush1.msra.mxu0 0.0
    %1630 = vmatprep.subr.mxu0 0.0
    %1631 = vmatpush1.msra.mxu0 0.0
    %1632 = vmatprep.subr.mxu0 0.0
    %1633 = vmatpush1.msra.mxu0 0.0
    %1634 = vmatprep.subr.mxu0 0.0
    %1635 = vmatpush1.msra.mxu0 0.0
    %1636 = vmatprep.subr.mxu0 0.0
    %1637 = vmatpush1.msra.mxu0 0.0
    %1638 = vmatprep.subr.mxu0 0.0
    %1639 = vmatpush1.msra.mxu0 0.0
    %1640 = vmatprep.subr.mxu0 0.0
    %1641 = vmatpush1.msra.mxu0 %v32
    %1642 = vmatprep.subr.mxu0 0.0
    %1643 = vmatpush1.msra.mxu0 %v31
    %1644 = vmatprep.subr.mxu0 0.0
    %1645 = vmatpush1.msra.mxu0 %v30
    %1646 = vmatprep.subr.mxu0 0.0
    %1647 = vmatpush1.msra.mxu0 %v29
    %1648 = vmatprep.subr.mxu0 0.0
    %1649 = vmatpush2.msra.mxu0 0.0
    %1650 = vmatprep.subr.mxu0 0.0
    %1651 = vmatpush2.msra.mxu0 0.0
    %1652 = vmatprep.subr.mxu0 0.0
    %1653 = vmatpush2.msra.mxu0 0.0
    %1654 = vmatprep.subr.mxu0 0.0
    %1655 = vmatpush2.msra.mxu0 0.0
    %1656 = vmatprep.subr.mxu0 0.0
    %1657 = vmatpush2.msra.mxu0 0.0
    %1658 = vmatprep.subr.mxu0 0.0
    %1659 = vmatpush2.msra.mxu0 0.0
    %1660 = vmatprep.subr.mxu0 0.0
    %1661 = vmatpush2.msra.mxu0 0.0
    %1662 = vmatprep.subr.mxu0 0.0
    %1663 = vmatpush2.msra.mxu0 0.0
    %1664 = vmatprep.subr.mxu0 0.0
    %1665 = vmatpush2.msra.mxu0 0.0
    %1666 = vmatprep.subr.mxu0 0.0
    %1667 = vmatpush2.msra.mxu0 0.0
    %1668 = vmatprep.subr.mxu0 0.0
    %1669 = vmatpush2.msra.mxu0 0.0
    %1670 = vmatprep.subr.mxu0 0.0
    %1671 = vmatpush2.msra.mxu0 0.0
    %1672 = vmatprep.subr.mxu0 0.0
    %1673 = vmatpush2.msra.mxu0 0.0
    %1674 = vmatprep.subr.mxu0 0.0
    %1675 = vmatpush2.msra.mxu0 0.0
    %1676 = vmatprep.subr.mxu0 0.0
    %1677 = vmatpush2.msra.mxu0 0.0
    %1678 = vmatprep.subr.mxu0 0.0
    %1679 = vmatpush2.msra.mxu0 0.0
    %1680 = vmatprep.mubr.f32.mxu0 0.0
    %1681 = vmatmul.mubr.f32.gmra.mxu0 %v1342
    %v1682 = vpop.f32.mrf.mxu0
    %v1683 = vadd.f32 0.0, %v1682
    %v1684 = vpop.f32.mrf.mxu0
    %1685 = vdwg.mxu0
    %v1687 = vsel %vm127, %v1615, 0
    %1689 = vmatprep.subr.mxu0 0.0
    %1690 = vmatpush1.msra.mxu0 0.0
    %1691 = vmatprep.subr.mxu0 0.0
    %1692 = vmatpush1.msra.mxu0 0.0
    %1693 = vmatprep.subr.mxu0 0.0
    %1694 = vmatpush1.msra.mxu0 0.0
    %1695 = vmatprep.subr.mxu0 0.0
    %1696 = vmatpush1.msra.mxu0 0.0
    %1697 = vmatprep.subr.mxu0 0.0
    %1698 = vmatpush1.msra.mxu0 0.0
    %1699 = vmatprep.subr.mxu0 0.0
    %1700 = vmatpush1.msra.mxu0 0.0
    %1701 = vmatprep.subr.mxu0 0.0
    %1702 = vmatpush1.msra.mxu0 0.0
    %1703 = vmatprep.subr.mxu0 0.0
    %1704 = vmatpush1.msra.mxu0 0.0
    %1705 = vmatprep.subr.mxu0 0.0
    %1706 = vmatpush1.msra.mxu0 0.0
    %1707 = vmatprep.subr.mxu0 0.0
    %1708 = vmatpush1.msra.mxu0 0.0
    %1709 = vmatprep.subr.mxu0 0.0
    %1710 = vmatpush1.msra.mxu0 0.0
    %1711 = vmatprep.subr.mxu0 0.0
    %1712 = vmatpush1.msra.mxu0 0.0
    %1713 = vmatprep.subr.mxu0 0.0
    %1714 = vmatpush1.msra.mxu0 0.0
    %1715 = vmatprep.subr.mxu0 0.0
    %1716 = vmatpush1.msra.mxu0 0.0
    %1717 = vmatprep.subr.mxu0 0.0
    %1718 = vmatpush1.msra.mxu0 %v28
    %1719 = vmatprep.subr.mxu0 0.0
    %1720 = vmatpush1.msra.mxu0 %v27
    %1721 = vmatprep.subr.mxu0 0.0
    %1722 = vmatpush2.msra.mxu0 0.0
    %1723 = vmatprep.subr.mxu0 0.0
    %1724 = vmatpush2.msra.mxu0 0.0
    %1725 = vmatprep.subr.mxu0 0.0
    %1726 = vmatpush2.msra.mxu0 0.0
    %1727 = vmatprep.subr.mxu0 0.0
    %1728 = vmatpush2.msra.mxu0 0.0
    %1729 = vmatprep.subr.mxu0 0.0
    %1730 = vmatpush2.msra.mxu0 0.0
    %1731 = vmatprep.subr.mxu0 0.0
    %1732 = vmatpush2.msra.mxu0 0.0
    %1733 = vmatprep.subr.mxu0 0.0
    %1734 = vmatpush2.msra.mxu0 0.0
    %1735 = vmatprep.subr.mxu0 0.0
    %1736 = vmatpush2.msra.mxu0 0.0
    %1737 = vmatprep.subr.mxu0 0.0
    %1738 = vmatpush2.msra.mxu0 0.0
    %1739 = vmatprep.subr.mxu0 0.0
    %1740 = vmatpush2.msra.mxu0 0.0
    %1741 = vmatprep.subr.mxu0 0.0
    %1742 = vmatpush2.msra.mxu0 0.0
    %1743 = vmatprep.subr.mxu0 0.0
    %1744 = vmatpush2.msra.mxu0 0.0
    %1745 = vmatprep.subr.mxu0 0.0
    %1746 = vmatpush2.msra.mxu0 0.0
    %1747 = vmatprep.subr.mxu0 0.0
    %1748 = vmatpush2.msra.mxu0 0.0
    %1749 = vmatprep.subr.mxu0 0.0
    %1750 = vmatpush2.msra.mxu0 0.0
    %1751 = vmatprep.subr.mxu0 0.0
    %1752 = vmatpush2.msra.mxu0 0.0
    %1753 = vmatprep.mubr.f32.mxu0 0.0
    %1754 = vmatmul.mubr.f32.gmra.mxu0 %v1687
    %v1755 = vpop.f32.mrf.mxu0
    %v1756 = vadd.f32 %v1683, %v1755
    %v1757 = vpop.f32.mrf.mxu0
    %1758 = vdwg.mxu0
    %v1759 = vadd.f32 %v1756, %v205
    %v1760 = vxor.u32 %v1759, 2147483648
    %v1761 = vmul.f32 %v1760, 1.442695
    %v1762 = vpow.pop %v1761
    %v1763 = vadd.f32 %v1762, 1.0
    %v1764 = vrcp.pop %v1763
    %v1765 = vmul.f32 1.0, %v1764
    %v1766 = vtanh.pop %v1759
    %v1767 = vmul.f32 %v1765, %v1262
    %1769 = vrot.lane.b32.xlu0 %v1766, 64
    %v1770 = vpop.permute.xlu0 %1769
    %v1772 = vmul.f32 %v1765, %v1770
    %1774 = vrot.lane.b32.xlu0 %v1772, 32
    %v1775 = vpop.permute.xlu0 %1774
    %v1777 = vadd.f32 %v1767, %v1775
    %v1778 = vtanh.pop %v1777
    %1780 = vrot.lane.b32.xlu0 %v1778, 64
    %v1781 = vpop.permute.xlu0 %1780
    %v1783 = vmul.f32 %v1765, %v1781
    %1784 = vmatprep.subr.mxu0 0.0
    %1785 = vmatpush1.msra.mxu0 0.0
    %1786 = vmatprep.subr.mxu0 0.0
    %1787 = vmatpush1.msra.mxu0 0.0
    %1788 = vmatprep.subr.mxu0 0.0
    %1789 = vmatpush1.msra.mxu0 0.0
    %1790 = vmatprep.subr.mxu0 0.0
    %1791 = vmatpush1.msra.mxu0 0.0
    %1792 = vmatprep.subr.mxu0 0.0
    %1793 = vmatpush1.msra.mxu0 0.0
    %1794 = vmatprep.subr.mxu0 0.0
    %1795 = vmatpush1.msra.mxu0 0.0
    %1796 = vmatprep.subr.mxu0 0.0
    %1797 = vmatpush1.msra.mxu0 0.0
    %1798 = vmatprep.subr.mxu0 0.0
    %1799 = vmatpush1.msra.mxu0 0.0
    %1800 = vmatprep.subr.mxu0 0.0
    %1801 = vmatpush1.msra.mxu0 0.0
    %1802 = vmatprep.subr.mxu0 0.0
    %1803 = vmatpush1.msra.mxu0 0.0
    %1804 = vmatprep.subr.mxu0 0.0
    %1805 = vmatpush1.msra.mxu0 0.0
    %1806 = vmatprep.subr.mxu0 0.0
    %1807 = vmatpush1.msra.mxu0 0.0
    %1808 = vmatprep.subr.mxu0 0.0
    %1809 = vmatpush1.msra.mxu0 %v45
    %1810 = vmatprep.subr.mxu0 0.0
    %1811 = vmatpush1.msra.mxu0 %v44
    %1812 = vmatprep.subr.mxu0 0.0
    %1813 = vmatpush1.msra.mxu0 %v43
    %1814 = vmatprep.subr.mxu0 0.0
    %1815 = vmatpush1.msra.mxu0 %v42
    %1816 = vmatprep.subr.mxu0 0.0
    %1817 = vmatpush2.msra.mxu0 0.0
    %1818 = vmatprep.subr.mxu0 0.0
    %1819 = vmatpush2.msra.mxu0 0.0
    %1820 = vmatprep.subr.mxu0 0.0
    %1821 = vmatpush2.msra.mxu0 0.0
    %1822 = vmatprep.subr.mxu0 0.0
    %1823 = vmatpush2.msra.mxu0 0.0
    %1824 = vmatprep.subr.mxu0 0.0
    %1825 = vmatpush2.msra.mxu0 0.0
    %1826 = vmatprep.subr.mxu0 0.0
    %1827 = vmatpush2.msra.mxu0 0.0
    %1828 = vmatprep.subr.mxu0 0.0
    %1829 = vmatpush2.msra.mxu0 0.0
    %1830 = vmatprep.subr.mxu0 0.0
    %1831 = vmatpush2.msra.mxu0 0.0
    %1832 = vmatprep.subr.mxu0 0.0
    %1833 = vmatpush2.msra.mxu0 0.0
    %1834 = vmatprep.subr.mxu0 0.0
    %1835 = vmatpush2.msra.mxu0 0.0
    %1836 = vmatprep.subr.mxu0 0.0
    %1837 = vmatpush2.msra.mxu0 0.0
    %1838 = vmatprep.subr.mxu0 0.0
    %1839 = vmatpush2.msra.mxu0 0.0
    %1840 = vmatprep.subr.mxu0 0.0
    %1841 = vmatpush2.msra.mxu0 0.0
    %1842 = vmatprep.subr.mxu0 0.0
    %1843 = vmatpush2.msra.mxu0 0.0
    %1844 = vmatprep.subr.mxu0 0.0
    %1845 = vmatpush2.msra.mxu0 0.0
    %1846 = vmatprep.subr.mxu0 0.0
    %1847 = vmatpush2.msra.mxu0 0.0
    %1848 = vmatprep.mubr.f32.mxu0 0.0
    %1849 = vmatmul.mubr.f32.gmra.mxu0 %v1517
    %v1850 = vpop.f32.mrf.mxu0
    %v1851 = vadd.f32 0.0, %v1850
    %v1852 = vpop.f32.mrf.mxu0
    %1853 = vdwg.mxu0
    %1855 = vrot.lane.b32.xlu0 %v1783, 32
    %v1856 = vpop.permute.xlu0 %1855
    %v1857 = vsel %vm53, %v1856, 0
    %1859 = vmatprep.subr.mxu0 0.0
    %1860 = vmatpush1.msra.mxu0 0.0
    %1861 = vmatprep.subr.mxu0 0.0
    %1862 = vmatpush1.msra.mxu0 0.0
    %1863 = vmatprep.subr.mxu0 0.0
    %1864 = vmatpush1.msra.mxu0 0.0
    %1865 = vmatprep.subr.mxu0 0.0
    %1866 = vmatpush1.msra.mxu0 0.0
    %1867 = vmatprep.subr.mxu0 0.0
    %1868 = vmatpush1.msra.mxu0 0.0
    %1869 = vmatprep.subr.mxu0 0.0
    %1870 = vmatpush1.msra.mxu0 0.0
    %1871 = vmatprep.subr.mxu0 0.0
    %1872 = vmatpush1.msra.mxu0 0.0
    %1873 = vmatprep.subr.mxu0 0.0
    %1874 = vmatpush1.msra.mxu0 0.0
    %1875 = vmatprep.subr.mxu0 0.0
    %1876 = vmatpush1.msra.mxu0 0.0
    %1877 = vmatprep.subr.mxu0 0.0
    %1878 = vmatpush1.msra.mxu0 0.0
    %1879 = vmatprep.subr.mxu0 0.0
    %1880 = vmatpush1.msra.mxu0 0.0
    %1881 = vmatprep.subr.mxu0 0.0
    %1882 = vmatpush1.msra.mxu0 0.0
    %1883 = vmatprep.subr.mxu0 0.0
    %1884 = vmatpush1.msra.mxu0 %v37
    %1885 = vmatprep.subr.mxu0 0.0
    %1886 = vmatpush1.msra.mxu0 %v36
    %1887 = vmatprep.subr.mxu0 0.0
    %1888 = vmatpush1.msra.mxu0 %v35
    %1889 = vmatprep.subr.mxu0 0.0
    %1890 = vmatpush1.msra.mxu0 %v34
    %1891 = vmatprep.subr.mxu0 0.0
    %1892 = vmatpush2.msra.mxu0 0.0
    %1893 = vmatprep.subr.mxu0 0.0
    %1894 = vmatpush2.msra.mxu0 0.0
    %1895 = vmatprep.subr.mxu0 0.0
    %1896 = vmatpush2.msra.mxu0 0.0
    %1897 = vmatprep.subr.mxu0 0.0
    %1898 = vmatpush2.msra.mxu0 0.0
    %1899 = vmatprep.subr.mxu0 0.0
    %1900 = vmatpush2.msra.mxu0 0.0
    %1901 = vmatprep.subr.mxu0 0.0
    %1902 = vmatpush2.msra.mxu0 0.0
    %1903 = vmatprep.subr.mxu0 0.0
    %1904 = vmatpush2.msra.mxu0 0.0
    %1905 = vmatprep.subr.mxu0 0.0
    %1906 = vmatpush2.msra.mxu0 0.0
    %1907 = vmatprep.subr.mxu0 0.0
    %1908 = vmatpush2.msra.mxu0 0.0
    %1909 = vmatprep.subr.mxu0 0.0
    %1910 = vmatpush2.msra.mxu0 0.0
    %1911 = vmatprep.subr.mxu0 0.0
    %1912 = vmatpush2.msra.mxu0 0.0
    %1913 = vmatprep.subr.mxu0 0.0
    %1914 = vmatpush2.msra.mxu0 0.0
    %1915 = vmatprep.subr.mxu0 0.0
    %1916 = vmatpush2.msra.mxu0 0.0
    %1917 = vmatprep.subr.mxu0 0.0
    %1918 = vmatpush2.msra.mxu0 0.0
    %1919 = vmatprep.subr.mxu0 0.0
    %1920 = vmatpush2.msra.mxu0 0.0
    %1921 = vmatprep.subr.mxu0 0.0
    %1922 = vmatpush2.msra.mxu0 0.0
    %1923 = vmatprep.mubr.f32.mxu0 0.0
    %1924 = vmatmul.mubr.f32.gmra.mxu0 %v1857
    %v1925 = vpop.f32.mrf.mxu0
    %v1926 = vadd.f32 %v1851, %v1925
    %v1927 = vpop.f32.mrf.mxu0
    %1928 = vdwg.mxu0
    %v1929 = vadd.f32 %v1926, %v381
    %v1930 = vxor.u32 %v1929, 2147483648
    %v1931 = vmul.f32 %v1930, 1.442695
    %v1932 = vpow.pop %v1931
    %v1933 = vadd.f32 %v1932, 1.0
    %v1934 = vrcp.pop %v1933
    %v1935 = vmul.f32 1.0, %v1934
    %v1936 = vtanh.pop %v1929
    %v1937 = vmul.f32 %v1935, %v1432
    %1939 = vrot.lane.b32.xlu0 %v1936, 64
    %v1940 = vpop.permute.xlu0 %1939
    %v1942 = vmul.f32 %v1935, %v1940
    %1944 = vrot.lane.b32.xlu0 %v1942, 32
    %v1945 = vpop.permute.xlu0 %1944
    %v1947 = vadd.f32 %v1937, %v1945
    %v1948 = vtanh.pop %v1947
    %1950 = vrot.lane.b32.xlu0 %v1948, 64
    %v1951 = vpop.permute.xlu0 %1950
    %v1953 = vmul.f32 %v1935, %v1951
    %1955 = vrot.lane.b32.xlu0 %v1613, 32
    %v1956 = vpop.permute.xlu0 %1955
    %v1957 = vsel %vm53, %v1956, 0
    %1959 = vmatprep.subr.mxu0 0.0
    %1960 = vmatpush1.msra.mxu0 0.0
    %1961 = vmatprep.subr.mxu0 0.0
    %1962 = vmatpush1.msra.mxu0 0.0
    %1963 = vmatprep.subr.mxu0 0.0
    %1964 = vmatpush1.msra.mxu0 0.0
    %1965 = vmatprep.subr.mxu0 0.0
    %1966 = vmatpush1.msra.mxu0 0.0
    %1967 = vmatprep.subr.mxu0 0.0
    %1968 = vmatpush1.msra.mxu0 0.0
    %1969 = vmatprep.subr.mxu0 0.0
    %1970 = vmatpush1.msra.mxu0 0.0
    %1971 = vmatprep.subr.mxu0 0.0
    %1972 = vmatpush1.msra.mxu0 0.0
    %1973 = vmatprep.subr.mxu0 0.0
    %1974 = vmatpush1.msra.mxu0 0.0
    %1975 = vmatprep.subr.mxu0 0.0
    %1976 = vmatpush1.msra.mxu0 0.0
    %1977 = vmatprep.subr.mxu0 0.0
    %1978 = vmatpush1.msra.mxu0 0.0
    %1979 = vmatprep.subr.mxu0 0.0
    %1980 = vmatpush1.msra.mxu0 0.0
    %1981 = vmatprep.subr.mxu0 0.0
    %1982 = vmatpush1.msra.mxu0 0.0
    %1983 = vmatprep.subr.mxu0 0.0
    %1984 = vmatpush1.msra.mxu0 %v49
    %1985 = vmatprep.subr.mxu0 0.0
    %1986 = vmatpush1.msra.mxu0 %v48
    %1987 = vmatprep.subr.mxu0 0.0
    %1988 = vmatpush1.msra.mxu0 %v47
    %1989 = vmatprep.subr.mxu0 0.0
    %1990 = vmatpush1.msra.mxu0 %v46
    %1991 = vmatprep.subr.mxu0 0.0
    %1992 = vmatpush2.msra.mxu0 0.0
    %1993 = vmatprep.subr.mxu0 0.0
    %1994 = vmatpush2.msra.mxu0 0.0
    %1995 = vmatprep.subr.mxu0 0.0
    %1996 = vmatpush2.msra.mxu0 0.0
    %1997 = vmatprep.subr.mxu0 0.0
    %1998 = vmatpush2.msra.mxu0 0.0
    %1999 = vmatprep.subr.mxu0 0.0
    %2000 = vmatpush2.msra.mxu0 0.0
    %2001 = vmatprep.subr.mxu0 0.0
    %2002 = vmatpush2.msra.mxu0 0.0
    %2003 = vmatprep.subr.mxu0 0.0
    %2004 = vmatpush2.msra.mxu0 0.0
    %2005 = vmatprep.subr.mxu0 0.0
    %2006 = vmatpush2.msra.mxu0 0.0
    %2007 = vmatprep.subr.mxu0 0.0
    %2008 = vmatpush2.msra.mxu0 0.0
    %2009 = vmatprep.subr.mxu0 0.0
    %2010 = vmatpush2.msra.mxu0 0.0
    %2011 = vmatprep.subr.mxu0 0.0
    %2012 = vmatpush2.msra.mxu0 0.0
    %2013 = vmatprep.subr.mxu0 0.0
    %2014 = vmatpush2.msra.mxu0 0.0
    %2015 = vmatprep.subr.mxu0 0.0
    %2016 = vmatpush2.msra.mxu0 0.0
    %2017 = vmatprep.subr.mxu0 0.0
    %2018 = vmatpush2.msra.mxu0 0.0
    %2019 = vmatprep.subr.mxu0 0.0
    %2020 = vmatpush2.msra.mxu0 0.0
    %2021 = vmatprep.subr.mxu0 0.0
    %2022 = vmatpush2.msra.mxu0 0.0
    %2023 = vmatprep.mubr.f32.mxu0 0.0
    %2024 = vmatmul.mubr.f32.gmra.mxu0 %v1957
    %v2025 = vpop.f32.mrf.mxu0
    %v2026 = vadd.f32 0.0, %v2025
    %v2027 = vpop.f32.mrf.mxu0
    %2028 = vdwg.mxu0
    %2030 = vrot.lane.b32.xlu0 %v1953, 32
    %v2031 = vpop.permute.xlu0 %2030
    %v2032 = vsel %vm53, %v2031, 0
    %2034 = vmatprep.subr.mxu0 0.0
    %2035 = vmatpush1.msra.mxu0 0.0
    %2036 = vmatprep.subr.mxu0 0.0
    %2037 = vmatpush1.msra.mxu0 0.0
    %2038 = vmatprep.subr.mxu0 0.0
    %2039 = vmatpush1.msra.mxu0 0.0
    %2040 = vmatprep.subr.mxu0 0.0
    %2041 = vmatpush1.msra.mxu0 0.0
    %2042 = vmatprep.subr.mxu0 0.0
    %2043 = vmatpush1.msra.mxu0 0.0
    %2044 = vmatprep.subr.mxu0 0.0
    %2045 = vmatpush1.msra.mxu0 0.0
    %2046 = vmatprep.subr.mxu0 0.0
    %2047 = vmatpush1.msra.mxu0 0.0
    %2048 = vmatprep.subr.mxu0 0.0
    %2049 = vmatpush1.msra.mxu0 0.0
    %2050 = vmatprep.subr.mxu0 0.0
    %2051 = vmatpush1.msra.mxu0 0.0
    %2052 = vmatprep.subr.mxu0 0.0
    %2053 = vmatpush1.msra.mxu0 0.0
    %2054 = vmatprep.subr.mxu0 0.0
    %2055 = vmatpush1.msra.mxu0 0.0
    %2056 = vmatprep.subr.mxu0 0.0
    %2057 = vmatpush1.msra.mxu0 0.0
    %2058 = vmatprep.subr.mxu0 0.0
    %2059 = vmatpush1.msra.mxu0 %v41
    %2060 = vmatprep.subr.mxu0 0.0
    %2061 = vmatpush1.msra.mxu0 %v40
    %2062 = vmatprep.subr.mxu0 0.0
    %2063 = vmatpush1.msra.mxu0 %v39
    %2064 = vmatprep.subr.mxu0 0.0
    %2065 = vmatpush1.msra.mxu0 %v38
    %2066 = vmatprep.subr.mxu0 0.0
    %2067 = vmatpush2.msra.mxu0 0.0
    %2068 = vmatprep.subr.mxu0 0.0
    %2069 = vmatpush2.msra.mxu0 0.0
    %2070 = vmatprep.subr.mxu0 0.0
    %2071 = vmatpush2.msra.mxu0 0.0
    %2072 = vmatprep.subr.mxu0 0.0
    %2073 = vmatpush2.msra.mxu0 0.0
    %2074 = vmatprep.subr.mxu0 0.0
    %2075 = vmatpush2.msra.mxu0 0.0
    %2076 = vmatprep.subr.mxu0 0.0
    %2077 = vmatpush2.msra.mxu0 0.0
    %2078 = vmatprep.subr.mxu0 0.0
    %2079 = vmatpush2.msra.mxu0 0.0
    %2080 = vmatprep.subr.mxu0 0.0
    %2081 = vmatpush2.msra.mxu0 0.0
    %2082 = vmatprep.subr.mxu0 0.0
    %2083 = vmatpush2.msra.mxu0 0.0
    %2084 = vmatprep.subr.mxu0 0.0
    %2085 = vmatpush2.msra.mxu0 0.0
    %2086 = vmatprep.subr.mxu0 0.0
    %2087 = vmatpush2.msra.mxu0 0.0
    %2088 = vmatprep.subr.mxu0 0.0
    %2089 = vmatpush2.msra.mxu0 0.0
    %2090 = vmatprep.subr.mxu0 0.0
    %2091 = vmatpush2.msra.mxu0 0.0
    %2092 = vmatprep.subr.mxu0 0.0
    %2093 = vmatpush2.msra.mxu0 0.0
    %2094 = vmatprep.subr.mxu0 0.0
    %2095 = vmatpush2.msra.mxu0 0.0
    %2096 = vmatprep.subr.mxu0 0.0
    %2097 = vmatpush2.msra.mxu0 0.0
    %2098 = vmatprep.mubr.f32.mxu0 0.0
    %2099 = vmatmul.mubr.f32.gmra.mxu0 %v2032
    %v2100 = vpop.f32.mrf.mxu0
    %v2101 = vadd.f32 %v2026, %v2100
    %v2102 = vpop.f32.mrf.mxu0
    %2103 = vdwg.mxu0
    %v2104 = vadd.f32 %v2101, %v557
    %v2105 = vxor.u32 %v2104, 2147483648
    %v2106 = vmul.f32 %v2105, 1.442695
    %v2107 = vpow.pop %v2106
    %v2108 = vadd.f32 %v2107, 1.0
    %v2109 = vrcp.pop %v2108
    %v2110 = vmul.f32 1.0, %v2109
    %v2111 = vtanh.pop %v2104
    %v2112 = vmul.f32 %v2110, %v1607
    %2114 = vrot.lane.b32.xlu0 %v2111, 64
    %v2115 = vpop.permute.xlu0 %2114
    %v2117 = vmul.f32 %v2110, %v2115
    %2119 = vrot.lane.b32.xlu0 %v2117, 32
    %v2120 = vpop.permute.xlu0 %2119
    %v2122 = vadd.f32 %v2112, %v2120
    %v2123 = vtanh.pop %v2122
    %2125 = vrot.lane.b32.xlu0 %v2123, 64
    %v2126 = vpop.permute.xlu0 %2125
    %v2128 = vmul.f32 %v2110, %v2126
    %s2129 = scalar_lea.vmem %s0, 8
    %v2130 = vld [vmem:[%s2129] sm:$0x3]
    %2131 = vmatprep.subr.mxu0 0.0
    %2132 = vmatpush1.msra.mxu0 0.0
    %2133 = vmatprep.subr.mxu0 0.0
    %2134 = vmatpush1.msra.mxu0 0.0
    %2135 = vmatprep.subr.mxu0 0.0
    %2136 = vmatpush1.msra.mxu0 0.0
    %2137 = vmatprep.subr.mxu0 0.0
    %2138 = vmatpush1.msra.mxu0 0.0
    %2139 = vmatprep.subr.mxu0 0.0
    %2140 = vmatpush1.msra.mxu0 0.0
    %2141 = vmatprep.subr.mxu0 0.0
    %2142 = vmatpush1.msra.mxu0 0.0
    %2143 = vmatprep.subr.mxu0 0.0
    %2144 = vmatpush1.msra.mxu0 0.0
    %2145 = vmatprep.subr.mxu0 0.0
    %2146 = vmatpush1.msra.mxu0 0.0
    %2147 = vmatprep.subr.mxu0 0.0
    %2148 = vmatpush1.msra.mxu0 0.0
    %2149 = vmatprep.subr.mxu0 0.0
    %2150 = vmatpush1.msra.mxu0 0.0
    %2151 = vmatprep.subr.mxu0 0.0
    %2152 = vmatpush1.msra.mxu0 0.0
    %2153 = vmatprep.subr.mxu0 0.0
    %2154 = vmatpush1.msra.mxu0 0.0
    %2155 = vmatprep.subr.mxu0 0.0
    %2156 = vmatpush1.msra.mxu0 %v32
    %2157 = vmatprep.subr.mxu0 0.0
    %2158 = vmatpush1.msra.mxu0 %v31
    %2159 = vmatprep.subr.mxu0 0.0
    %2160 = vmatpush1.msra.mxu0 %v30
    %2161 = vmatprep.subr.mxu0 0.0
    %2162 = vmatpush1.msra.mxu0 %v29
    %2163 = vmatprep.subr.mxu0 0.0
    %2164 = vmatpush2.msra.mxu0 0.0
    %2165 = vmatprep.subr.mxu0 0.0
    %2166 = vmatpush2.msra.mxu0 0.0
    %2167 = vmatprep.subr.mxu0 0.0
    %2168 = vmatpush2.msra.mxu0 0.0
    %2169 = vmatprep.subr.mxu0 0.0
    %2170 = vmatpush2.msra.mxu0 0.0
    %2171 = vmatprep.subr.mxu0 0.0
    %2172 = vmatpush2.msra.mxu0 0.0
    %2173 = vmatprep.subr.mxu0 0.0
    %2174 = vmatpush2.msra.mxu0 0.0
    %2175 = vmatprep.subr.mxu0 0.0
    %2176 = vmatpush2.msra.mxu0 0.0
    %2177 = vmatprep.subr.mxu0 0.0
    %2178 = vmatpush2.msra.mxu0 0.0
    %2179 = vmatprep.subr.mxu0 0.0
    %2180 = vmatpush2.msra.mxu0 0.0
    %2181 = vmatprep.subr.mxu0 0.0
    %2182 = vmatpush2.msra.mxu0 0.0
    %2183 = vmatprep.subr.mxu0 0.0
    %2184 = vmatpush2.msra.mxu0 0.0
    %2185 = vmatprep.subr.mxu0 0.0
    %2186 = vmatpush2.msra.mxu0 0.0
    %2187 = vmatprep.subr.mxu0 0.0
    %2188 = vmatpush2.msra.mxu0 0.0
    %2189 = vmatprep.subr.mxu0 0.0
    %2190 = vmatpush2.msra.mxu0 0.0
    %2191 = vmatprep.subr.mxu0 0.0
    %2192 = vmatpush2.msra.mxu0 0.0
    %2193 = vmatprep.subr.mxu0 0.0
    %2194 = vmatpush2.msra.mxu0 0.0
    %2195 = vmatprep.mubr.f32.mxu0 0.0
    %2196 = vmatmul.mubr.f32.gmra.mxu0 %v1857
    %v2197 = vpop.f32.mrf.mxu0
    %v2198 = vadd.f32 0.0, %v2197
    %v2199 = vpop.f32.mrf.mxu0
    %2200 = vdwg.mxu0
    %v2202 = vsel %vm127, %v2130, 0
    %2204 = vmatprep.subr.mxu0 0.0
    %2205 = vmatpush1.msra.mxu0 0.0
    %2206 = vmatprep.subr.mxu0 0.0
    %2207 = vmatpush1.msra.mxu0 0.0
    %2208 = vmatprep.subr.mxu0 0.0
    %2209 = vmatpush1.msra.mxu0 0.0
    %2210 = vmatprep.subr.mxu0 0.0
    %2211 = vmatpush1.msra.mxu0 0.0
    %2212 = vmatprep.subr.mxu0 0.0
    %2213 = vmatpush1.msra.mxu0 0.0
    %2214 = vmatprep.subr.mxu0 0.0
    %2215 = vmatpush1.msra.mxu0 0.0
    %2216 = vmatprep.subr.mxu0 0.0
    %2217 = vmatpush1.msra.mxu0 0.0
    %2218 = vmatprep.subr.mxu0 0.0
    %2219 = vmatpush1.msra.mxu0 0.0
    %2220 = vmatprep.subr.mxu0 0.0
    %2221 = vmatpush1.msra.mxu0 0.0
    %2222 = vmatprep.subr.mxu0 0.0
    %2223 = vmatpush1.msra.mxu0 0.0
    %2224 = vmatprep.subr.mxu0 0.0
    %2225 = vmatpush1.msra.mxu0 0.0
    %2226 = vmatprep.subr.mxu0 0.0
    %2227 = vmatpush1.msra.mxu0 0.0
    %2228 = vmatprep.subr.mxu0 0.0
    %2229 = vmatpush1.msra.mxu0 0.0
    %2230 = vmatprep.subr.mxu0 0.0
    %2231 = vmatpush1.msra.mxu0 0.0
    %2232 = vmatprep.subr.mxu0 0.0
    %2233 = vmatpush1.msra.mxu0 %v28
    %2234 = vmatprep.subr.mxu0 0.0
    %2235 = vmatpush1.msra.mxu0 %v27
    %2236 = vmatprep.subr.mxu0 0.0
    %2237 = vmatpush2.msra.mxu0 0.0
    %2238 = vmatprep.subr.mxu0 0.0
    %2239 = vmatpush2.msra.mxu0 0.0
    %2240 = vmatprep.subr.mxu0 0.0
    %2241 = vmatpush2.msra.mxu0 0.0
    %2242 = vmatprep.subr.mxu0 0.0
    %2243 = vmatpush2.msra.mxu0 0.0
    %2244 = vmatprep.subr.mxu0 0.0
    %2245 = vmatpush2.msra.mxu0 0.0
    %2246 = vmatprep.subr.mxu0 0.0
    %2247 = vmatpush2.msra.mxu0 0.0
    %2248 = vmatprep.subr.mxu0 0.0
    %2249 = vmatpush2.msra.mxu0 0.0
    %2250 = vmatprep.subr.mxu0 0.0
    %2251 = vmatpush2.msra.mxu0 0.0
    %2252 = vmatprep.subr.mxu0 0.0
    %2253 = vmatpush2.msra.mxu0 0.0
    %2254 = vmatprep.subr.mxu0 0.0
    %2255 = vmatpush2.msra.mxu0 0.0
    %2256 = vmatprep.subr.mxu0 0.0
    %2257 = vmatpush2.msra.mxu0 0.0
    %2258 = vmatprep.subr.mxu0 0.0
    %2259 = vmatpush2.msra.mxu0 0.0
    %2260 = vmatprep.subr.mxu0 0.0
    %2261 = vmatpush2.msra.mxu0 0.0
    %2262 = vmatprep.subr.mxu0 0.0
    %2263 = vmatpush2.msra.mxu0 0.0
    %2264 = vmatprep.subr.mxu0 0.0
    %2265 = vmatpush2.msra.mxu0 0.0
    %2266 = vmatprep.subr.mxu0 0.0
    %2267 = vmatpush2.msra.mxu0 0.0
    %2268 = vmatprep.mubr.f32.mxu0 0.0
    %2269 = vmatmul.mubr.f32.gmra.mxu0 %v2202
    %v2270 = vpop.f32.mrf.mxu0
    %v2271 = vadd.f32 %v2198, %v2270
    %v2272 = vpop.f32.mrf.mxu0
    %2273 = vdwg.mxu0
    %v2274 = vadd.f32 %v2271, %v205
    %v2275 = vxor.u32 %v2274, 2147483648
    %v2276 = vmul.f32 %v2275, 1.442695
    %v2277 = vpow.pop %v2276
    %v2278 = vadd.f32 %v2277, 1.0
    %v2279 = vrcp.pop %v2278
    %v2280 = vmul.f32 1.0, %v2279
    %v2281 = vtanh.pop %v2274
    %v2282 = vmul.f32 %v2280, %v1777
    %2284 = vrot.lane.b32.xlu0 %v2281, 64
    %v2285 = vpop.permute.xlu0 %2284
    %v2287 = vmul.f32 %v2280, %v2285
    %2289 = vrot.lane.b32.xlu0 %v2287, 32
    %v2290 = vpop.permute.xlu0 %2289
    %v2292 = vadd.f32 %v2282, %v2290
    %v2293 = vtanh.pop %v2292
    %2295 = vrot.lane.b32.xlu0 %v2293, 64
    %v2296 = vpop.permute.xlu0 %2295
    %v2298 = vmul.f32 %v2280, %v2296
    %2299 = vmatprep.subr.mxu0 0.0
    %2300 = vmatpush1.msra.mxu0 0.0
    %2301 = vmatprep.subr.mxu0 0.0
    %2302 = vmatpush1.msra.mxu0 0.0
    %2303 = vmatprep.subr.mxu0 0.0
    %2304 = vmatpush1.msra.mxu0 0.0
    %2305 = vmatprep.subr.mxu0 0.0
    %2306 = vmatpush1.msra.mxu0 0.0
    %2307 = vmatprep.subr.mxu0 0.0
    %2308 = vmatpush1.msra.mxu0 0.0
    %2309 = vmatprep.subr.mxu0 0.0
    %2310 = vmatpush1.msra.mxu0 0.0
    %2311 = vmatprep.subr.mxu0 0.0
    %2312 = vmatpush1.msra.mxu0 0.0
    %2313 = vmatprep.subr.mxu0 0.0
    %2314 = vmatpush1.msra.mxu0 0.0
    %2315 = vmatprep.subr.mxu0 0.0
    %2316 = vmatpush1.msra.mxu0 0.0
    %2317 = vmatprep.subr.mxu0 0.0
    %2318 = vmatpush1.msra.mxu0 0.0
    %2319 = vmatprep.subr.mxu0 0.0
    %2320 = vmatpush1.msra.mxu0 0.0
    %2321 = vmatprep.subr.mxu0 0.0
    %2322 = vmatpush1.msra.mxu0 0.0
    %2323 = vmatprep.subr.mxu0 0.0
    %2324 = vmatpush1.msra.mxu0 %v45
    %2325 = vmatprep.subr.mxu0 0.0
    %2326 = vmatpush1.msra.mxu0 %v44
    %2327 = vmatprep.subr.mxu0 0.0
    %2328 = vmatpush1.msra.mxu0 %v43
    %2329 = vmatprep.subr.mxu0 0.0
    %2330 = vmatpush1.msra.mxu0 %v42
    %2331 = vmatprep.subr.mxu0 0.0
    %2332 = vmatpush2.msra.mxu0 0.0
    %2333 = vmatprep.subr.mxu0 0.0
    %2334 = vmatpush2.msra.mxu0 0.0
    %2335 = vmatprep.subr.mxu0 0.0
    %2336 = vmatpush2.msra.mxu0 0.0
    %2337 = vmatprep.subr.mxu0 0.0
    %2338 = vmatpush2.msra.mxu0 0.0
    %2339 = vmatprep.subr.mxu0 0.0
    %2340 = vmatpush2.msra.mxu0 0.0
    %2341 = vmatprep.subr.mxu0 0.0
    %2342 = vmatpush2.msra.mxu0 0.0
    %2343 = vmatprep.subr.mxu0 0.0
    %2344 = vmatpush2.msra.mxu0 0.0
    %2345 = vmatprep.subr.mxu0 0.0
    %2346 = vmatpush2.msra.mxu0 0.0
    %2347 = vmatprep.subr.mxu0 0.0
    %2348 = vmatpush2.msra.mxu0 0.0
    %2349 = vmatprep.subr.mxu0 0.0
    %2350 = vmatpush2.msra.mxu0 0.0
    %2351 = vmatprep.subr.mxu0 0.0
    %2352 = vmatpush2.msra.mxu0 0.0
    %2353 = vmatprep.subr.mxu0 0.0
    %2354 = vmatpush2.msra.mxu0 0.0
    %2355 = vmatprep.subr.mxu0 0.0
    %2356 = vmatpush2.msra.mxu0 0.0
    %2357 = vmatprep.subr.mxu0 0.0
    %2358 = vmatpush2.msra.mxu0 0.0
    %2359 = vmatprep.subr.mxu0 0.0
    %2360 = vmatpush2.msra.mxu0 0.0
    %2361 = vmatprep.subr.mxu0 0.0
    %2362 = vmatpush2.msra.mxu0 0.0
    %2363 = vmatprep.mubr.f32.mxu0 0.0
    %2364 = vmatmul.mubr.f32.gmra.mxu0 %v2032
    %v2365 = vpop.f32.mrf.mxu0
    %v2366 = vadd.f32 0.0, %v2365
    %v2367 = vpop.f32.mrf.mxu0
    %2368 = vdwg.mxu0
    %2370 = vrot.lane.b32.xlu0 %v2298, 32
    %v2371 = vpop.permute.xlu0 %2370
    %v2372 = vsel %vm53, %v2371, 0
    %2374 = vmatprep.subr.mxu0 0.0
    %2375 = vmatpush1.msra.mxu0 0.0
    %2376 = vmatprep.subr.mxu0 0.0
    %2377 = vmatpush1.msra.mxu0 0.0
    %2378 = vmatprep.subr.mxu0 0.0
    %2379 = vmatpush1.msra.mxu0 0.0
    %2380 = vmatprep.subr.mxu0 0.0
    %2381 = vmatpush1.msra.mxu0 0.0
    %2382 = vmatprep.subr.mxu0 0.0
    %2383 = vmatpush1.msra.mxu0 0.0
    %2384 = vmatprep.subr.mxu0 0.0
    %2385 = vmatpush1.msra.mxu0 0.0
    %2386 = vmatprep.subr.mxu0 0.0
    %2387 = vmatpush1.msra.mxu0 0.0
    %2388 = vmatprep.subr.mxu0 0.0
    %2389 = vmatpush1.msra.mxu0 0.0
    %2390 = vmatprep.subr.mxu0 0.0
    %2391 = vmatpush1.msra.mxu0 0.0
    %2392 = vmatprep.subr.mxu0 0.0
    %2393 = vmatpush1.msra.mxu0 0.0
    %2394 = vmatprep.subr.mxu0 0.0
    %2395 = vmatpush1.msra.mxu0 0.0
    %2396 = vmatprep.subr.mxu0 0.0
    %2397 = vmatpush1.msra.mxu0 0.0
    %2398 = vmatprep.subr.mxu0 0.0
    %2399 = vmatpush1.msra.mxu0 %v37
    %2400 = vmatprep.subr.mxu0 0.0
    %2401 = vmatpush1.msra.mxu0 %v36
    %2402 = vmatprep.subr.mxu0 0.0
    %2403 = vmatpush1.msra.mxu0 %v35
    %2404 = vmatprep.subr.mxu0 0.0
    %2405 = vmatpush1.msra.mxu0 %v34
    %2406 = vmatprep.subr.mxu0 0.0
    %2407 = vmatpush2.msra.mxu0 0.0
    %2408 = vmatprep.subr.mxu0 0.0
    %2409 = vmatpush2.msra.mxu0 0.0
    %2410 = vmatprep.subr.mxu0 0.0
    %2411 = vmatpush2.msra.mxu0 0.0
    %2412 = vmatprep.subr.mxu0 0.0
    %2413 = vmatpush2.msra.mxu0 0.0
    %2414 = vmatprep.subr.mxu0 0.0
    %2415 = vmatpush2.msra.mxu0 0.0
    %2416 = vmatprep.subr.mxu0 0.0
    %2417 = vmatpush2.msra.mxu0 0.0
    %2418 = vmatprep.subr.mxu0 0.0
    %2419 = vmatpush2.msra.mxu0 0.0
    %2420 = vmatprep.subr.mxu0 0.0
    %2421 = vmatpush2.msra.mxu0 0.0
    %2422 = vmatprep.subr.mxu0 0.0
    %2423 = vmatpush2.msra.mxu0 0.0
    %2424 = vmatprep.subr.mxu0 0.0
    %2425 = vmatpush2.msra.mxu0 0.0
    %2426 = vmatprep.subr.mxu0 0.0
    %2427 = vmatpush2.msra.mxu0 0.0
    %2428 = vmatprep.subr.mxu0 0.0
    %2429 = vmatpush2.msra.mxu0 0.0
    %2430 = vmatprep.subr.mxu0 0.0
    %2431 = vmatpush2.msra.mxu0 0.0
    %2432 = vmatprep.subr.mxu0 0.0
    %2433 = vmatpush2.msra.mxu0 0.0
    %2434 = vmatprep.subr.mxu0 0.0
    %2435 = vmatpush2.msra.mxu0 0.0
    %2436 = vmatprep.subr.mxu0 0.0
    %2437 = vmatpush2.msra.mxu0 0.0
    %2438 = vmatprep.mubr.f32.mxu0 0.0
    %2439 = vmatmul.mubr.f32.gmra.mxu0 %v2372
    %v2440 = vpop.f32.mrf.mxu0
    %v2441 = vadd.f32 %v2366, %v2440
    %v2442 = vpop.f32.mrf.mxu0
    %2443 = vdwg.mxu0
    %v2444 = vadd.f32 %v2441, %v381
    %v2445 = vxor.u32 %v2444, 2147483648
    %v2446 = vmul.f32 %v2445, 1.442695
    %v2447 = vpow.pop %v2446
    %v2448 = vadd.f32 %v2447, 1.0
    %v2449 = vrcp.pop %v2448
    %v2450 = vmul.f32 1.0, %v2449
    %v2451 = vtanh.pop %v2444
    %v2452 = vmul.f32 %v2450, %v1947
    %2454 = vrot.lane.b32.xlu0 %v2451, 64
    %v2455 = vpop.permute.xlu0 %2454
    %v2457 = vmul.f32 %v2450, %v2455
    %2459 = vrot.lane.b32.xlu0 %v2457, 32
    %v2460 = vpop.permute.xlu0 %2459
    %v2462 = vadd.f32 %v2452, %v2460
    %v2463 = vtanh.pop %v2462
    %2465 = vrot.lane.b32.xlu0 %v2463, 64
    %v2466 = vpop.permute.xlu0 %2465
    %v2468 = vmul.f32 %v2450, %v2466
    %2470 = vrot.lane.b32.xlu0 %v2128, 32
    %v2471 = vpop.permute.xlu0 %2470
    %v2472 = vsel %vm53, %v2471, 0
    %2474 = vmatprep.subr.mxu0 0.0
    %2475 = vmatpush1.msra.mxu0 0.0
    %2476 = vmatprep.subr.mxu0 0.0
    %2477 = vmatpush1.msra.mxu0 0.0
    %2478 = vmatprep.subr.mxu0 0.0
    %2479 = vmatpush1.msra.mxu0 0.0
    %2480 = vmatprep.subr.mxu0 0.0
    %2481 = vmatpush1.msra.mxu0 0.0
    %2482 = vmatprep.subr.mxu0 0.0
    %2483 = vmatpush1.msra.mxu0 0.0
    %2484 = vmatprep.subr.mxu0 0.0
    %2485 = vmatpush1.msra.mxu0 0.0
    %2486 = vmatprep.subr.mxu0 0.0
    %2487 = vmatpush1.msra.mxu0 0.0
    %2488 = vmatprep.subr.mxu0 0.0
    %2489 = vmatpush1.msra.mxu0 0.0
    %2490 = vmatprep.subr.mxu0 0.0
    %2491 = vmatpush1.msra.mxu0 0.0
    %2492 = vmatprep.subr.mxu0 0.0
    %2493 = vmatpush1.msra.mxu0 0.0
    %2494 = vmatprep.subr.mxu0 0.0
    %2495 = vmatpush1.msra.mxu0 0.0
    %2496 = vmatprep.subr.mxu0 0.0
    %2497 = vmatpush1.msra.mxu0 0.0
    %2498 = vmatprep.subr.mxu0 0.0
    %2499 = vmatpush1.msra.mxu0 %v49
    %2500 = vmatprep.subr.mxu0 0.0
    %2501 = vmatpush1.msra.mxu0 %v48
    %2502 = vmatprep.subr.mxu0 0.0
    %2503 = vmatpush1.msra.mxu0 %v47
    %2504 = vmatprep.subr.mxu0 0.0
    %2505 = vmatpush1.msra.mxu0 %v46
    %2506 = vmatprep.subr.mxu0 0.0
    %2507 = vmatpush2.msra.mxu0 0.0
    %2508 = vmatprep.subr.mxu0 0.0
    %2509 = vmatpush2.msra.mxu0 0.0
    %2510 = vmatprep.subr.mxu0 0.0
    %2511 = vmatpush2.msra.mxu0 0.0
    %2512 = vmatprep.subr.mxu0 0.0
    %2513 = vmatpush2.msra.mxu0 0.0
    %2514 = vmatprep.subr.mxu0 0.0
    %2515 = vmatpush2.msra.mxu0 0.0
    %2516 = vmatprep.subr.mxu0 0.0
    %2517 = vmatpush2.msra.mxu0 0.0
    %2518 = vmatprep.subr.mxu0 0.0
    %2519 = vmatpush2.msra.mxu0 0.0
    %2520 = vmatprep.subr.mxu0 0.0
    %2521 = vmatpush2.msra.mxu0 0.0
    %2522 = vmatprep.subr.mxu0 0.0
    %2523 = vmatpush2.msra.mxu0 0.0
    %2524 = vmatprep.subr.mxu0 0.0
    %2525 = vmatpush2.msra.mxu0 0.0
    %2526 = vmatprep.subr.mxu0 0.0
    %2527 = vmatpush2.msra.mxu0 0.0
    %2528 = vmatprep.subr.mxu0 0.0
    %2529 = vmatpush2.msra.mxu0 0.0
    %2530 = vmatprep.subr.mxu0 0.0
    %2531 = vmatpush2.msra.mxu0 0.0
    %2532 = vmatprep.subr.mxu0 0.0
    %2533 = vmatpush2.msra.mxu0 0.0
    %2534 = vmatprep.subr.mxu0 0.0
    %2535 = vmatpush2.msra.mxu0 0.0
    %2536 = vmatprep.subr.mxu0 0.0
    %2537 = vmatpush2.msra.mxu0 0.0
    %2538 = vmatprep.mubr.f32.mxu0 0.0
    %2539 = vmatmul.mubr.f32.gmra.mxu0 %v2472
    %v2540 = vpop.f32.mrf.mxu0
    %v2541 = vadd.f32 0.0, %v2540
    %v2542 = vpop.f32.mrf.mxu0
    %2543 = vdwg.mxu0
    %2545 = vrot.lane.b32.xlu0 %v2468, 32
    %v2546 = vpop.permute.xlu0 %2545
    %v2547 = vsel %vm53, %v2546, 0
    %2549 = vmatprep.subr.mxu0 0.0
    %2550 = vmatpush1.msra.mxu0 0.0
    %2551 = vmatprep.subr.mxu0 0.0
    %2552 = vmatpush1.msra.mxu0 0.0
    %2553 = vmatprep.subr.mxu0 0.0
    %2554 = vmatpush1.msra.mxu0 0.0
    %2555 = vmatprep.subr.mxu0 0.0
    %2556 = vmatpush1.msra.mxu0 0.0
    %2557 = vmatprep.subr.mxu0 0.0
    %2558 = vmatpush1.msra.mxu0 0.0
    %2559 = vmatprep.subr.mxu0 0.0
    %2560 = vmatpush1.msra.mxu0 0.0
    %2561 = vmatprep.subr.mxu0 0.0
    %2562 = vmatpush1.msra.mxu0 0.0
    %2563 = vmatprep.subr.mxu0 0.0
    %2564 = vmatpush1.msra.mxu0 0.0
    %2565 = vmatprep.subr.mxu0 0.0
    %2566 = vmatpush1.msra.mxu0 0.0
    %2567 = vmatprep.subr.mxu0 0.0
    %2568 = vmatpush1.msra.mxu0 0.0
    %2569 = vmatprep.subr.mxu0 0.0
    %2570 = vmatpush1.msra.mxu0 0.0
    %2571 = vmatprep.subr.mxu0 0.0
    %2572 = vmatpush1.msra.mxu0 0.0
    %2573 = vmatprep.subr.mxu0 0.0
    %2574 = vmatpush1.msra.mxu0 %v41
    %2575 = vmatprep.subr.mxu0 0.0
    %2576 = vmatpush1.msra.mxu0 %v40
    %2577 = vmatprep.subr.mxu0 0.0
    %2578 = vmatpush1.msra.mxu0 %v39
    %2579 = vmatprep.subr.mxu0 0.0
    %2580 = vmatpush1.msra.mxu0 %v38
    %2581 = vmatprep.subr.mxu0 0.0
    %2582 = vmatpush2.msra.mxu0 0.0
    %2583 = vmatprep.subr.mxu0 0.0
    %2584 = vmatpush2.msra.mxu0 0.0
    %2585 = vmatprep.subr.mxu0 0.0
    %2586 = vmatpush2.msra.mxu0 0.0
    %2587 = vmatprep.subr.mxu0 0.0
    %2588 = vmatpush2.msra.mxu0 0.0
    %2589 = vmatprep.subr.mxu0 0.0
    %2590 = vmatpush2.msra.mxu0 0.0
    %2591 = vmatprep.subr.mxu0 0.0
    %2592 = vmatpush2.msra.mxu0 0.0
    %2593 = vmatprep.subr.mxu0 0.0
    %2594 = vmatpush2.msra.mxu0 0.0
    %2595 = vmatprep.subr.mxu0 0.0
    %2596 = vmatpush2.msra.mxu0 0.0
    %2597 = vmatprep.subr.mxu0 0.0
    %2598 = vmatpush2.msra.mxu0 0.0
    %2599 = vmatprep.subr.mxu0 0.0
    %2600 = vmatpush2.msra.mxu0 0.0
    %2601 = vmatprep.subr.mxu0 0.0
    %2602 = vmatpush2.msra.mxu0 0.0
    %2603 = vmatprep.subr.mxu0 0.0
    %2604 = vmatpush2.msra.mxu0 0.0
    %2605 = vmatprep.subr.mxu0 0.0
    %2606 = vmatpush2.msra.mxu0 0.0
    %2607 = vmatprep.subr.mxu0 0.0
    %2608 = vmatpush2.msra.mxu0 0.0
    %2609 = vmatprep.subr.mxu0 0.0
    %2610 = vmatpush2.msra.mxu0 0.0
    %2611 = vmatprep.subr.mxu0 0.0
    %2612 = vmatpush2.msra.mxu0 0.0
    %2613 = vmatprep.mubr.f32.mxu0 0.0
    %2614 = vmatmul.mubr.f32.gmra.mxu0 %v2547
    %v2615 = vpop.f32.mrf.mxu0
    %v2616 = vadd.f32 %v2541, %v2615
    %v2617 = vpop.f32.mrf.mxu0
    %2618 = vdwg.mxu0
    %v2619 = vadd.f32 %v2616, %v557
    %v2620 = vxor.u32 %v2619, 2147483648
    %v2621 = vmul.f32 %v2620, 1.442695
    %v2622 = vpow.pop %v2621
    %v2623 = vadd.f32 %v2622, 1.0
    %v2624 = vrcp.pop %v2623
    %v2625 = vmul.f32 1.0, %v2624
    %v2626 = vtanh.pop %v2619
    %v2627 = vmul.f32 %v2625, %v2122
    %2629 = vrot.lane.b32.xlu0 %v2626, 64
    %v2630 = vpop.permute.xlu0 %2629
    %v2632 = vmul.f32 %v2625, %v2630
    %2634 = vrot.lane.b32.xlu0 %v2632, 32
    %v2635 = vpop.permute.xlu0 %2634
    %v2637 = vadd.f32 %v2627, %v2635
    %v2638 = vtanh.pop %v2637
    %2640 = vrot.lane.b32.xlu0 %v2638, 64
    %v2641 = vpop.permute.xlu0 %2640
    %v2643 = vmul.f32 %v2625, %v2641
    %s2644 = scalar_lea.vmem %s0, 10
    %v2645 = vld [vmem:[%s2644] sm:$0x3]
    %2646 = vmatprep.subr.mxu0 0.0
    %2647 = vmatpush1.msra.mxu0 0.0
    %2648 = vmatprep.subr.mxu0 0.0
    %2649 = vmatpush1.msra.mxu0 0.0
    %2650 = vmatprep.subr.mxu0 0.0
    %2651 = vmatpush1.msra.mxu0 0.0
    %2652 = vmatprep.subr.mxu0 0.0
    %2653 = vmatpush1.msra.mxu0 0.0
    %2654 = vmatprep.subr.mxu0 0.0
    %2655 = vmatpush1.msra.mxu0 0.0
    %2656 = vmatprep.subr.mxu0 0.0
    %2657 = vmatpush1.msra.mxu0 0.0
    %2658 = vmatprep.subr.mxu0 0.0
    %2659 = vmatpush1.msra.mxu0 0.0
    %2660 = vmatprep.subr.mxu0 0.0
    %2661 = vmatpush1.msra.mxu0 0.0
    %2662 = vmatprep.subr.mxu0 0.0
    %2663 = vmatpush1.msra.mxu0 0.0
    %2664 = vmatprep.subr.mxu0 0.0
    %2665 = vmatpush1.msra.mxu0 0.0
    %2666 = vmatprep.subr.mxu0 0.0
    %2667 = vmatpush1.msra.mxu0 0.0
    %2668 = vmatprep.subr.mxu0 0.0
    %2669 = vmatpush1.msra.mxu0 0.0
    %2670 = vmatprep.subr.mxu0 0.0
    %2671 = vmatpush1.msra.mxu0 %v32
    %2672 = vmatprep.subr.mxu0 0.0
    %2673 = vmatpush1.msra.mxu0 %v31
    %2674 = vmatprep.subr.mxu0 0.0
    %2675 = vmatpush1.msra.mxu0 %v30
    %2676 = vmatprep.subr.mxu0 0.0
    %2677 = vmatpush1.msra.mxu0 %v29
    %2678 = vmatprep.subr.mxu0 0.0
    %2679 = vmatpush2.msra.mxu0 0.0
    %2680 = vmatprep.subr.mxu0 0.0
    %2681 = vmatpush2.msra.mxu0 0.0
    %2682 = vmatprep.subr.mxu0 0.0
    %2683 = vmatpush2.msra.mxu0 0.0
    %2684 = vmatprep.subr.mxu0 0.0
    %2685 = vmatpush2.msra.mxu0 0.0
    %2686 = vmatprep.subr.mxu0 0.0
    %2687 = vmatpush2.msra.mxu0 0.0
    %2688 = vmatprep.subr.mxu0 0.0
    %2689 = vmatpush2.msra.mxu0 0.0
    %2690 = vmatprep.subr.mxu0 0.0
    %2691 = vmatpush2.msra.mxu0 0.0
    %2692 = vmatprep.subr.mxu0 0.0
    %2693 = vmatpush2.msra.mxu0 0.0
    %2694 = vmatprep.subr.mxu0 0.0
    %2695 = vmatpush2.msra.mxu0 0.0
    %2696 = vmatprep.subr.mxu0 0.0
    %2697 = vmatpush2.msra.mxu0 0.0
    %2698 = vmatprep.subr.mxu0 0.0
    %2699 = vmatpush2.msra.mxu0 0.0
    %2700 = vmatprep.subr.mxu0 0.0
    %2701 = vmatpush2.msra.mxu0 0.0
    %2702 = vmatprep.subr.mxu0 0.0
    %2703 = vmatpush2.msra.mxu0 0.0
    %2704 = vmatprep.subr.mxu0 0.0
    %2705 = vmatpush2.msra.mxu0 0.0
    %2706 = vmatprep.subr.mxu0 0.0
    %2707 = vmatpush2.msra.mxu0 0.0
    %2708 = vmatprep.subr.mxu0 0.0
    %2709 = vmatpush2.msra.mxu0 0.0
    %2710 = vmatprep.mubr.f32.mxu0 0.0
    %2711 = vmatmul.mubr.f32.gmra.mxu0 %v2372
    %v2712 = vpop.f32.mrf.mxu0
    %v2713 = vadd.f32 0.0, %v2712
    %v2714 = vpop.f32.mrf.mxu0
    %2715 = vdwg.mxu0
    %v2717 = vsel %vm127, %v2645, 0
    %2719 = vmatprep.subr.mxu0 0.0
    %2720 = vmatpush1.msra.mxu0 0.0
    %2721 = vmatprep.subr.mxu0 0.0
    %2722 = vmatpush1.msra.mxu0 0.0
    %2723 = vmatprep.subr.mxu0 0.0
    %2724 = vmatpush1.msra.mxu0 0.0
    %2725 = vmatprep.subr.mxu0 0.0
    %2726 = vmatpush1.msra.mxu0 0.0
    %2727 = vmatprep.subr.mxu0 0.0
    %2728 = vmatpush1.msra.mxu0 0.0
    %2729 = vmatprep.subr.mxu0 0.0
    %2730 = vmatpush1.msra.mxu0 0.0
    %2731 = vmatprep.subr.mxu0 0.0
    %2732 = vmatpush1.msra.mxu0 0.0
    %2733 = vmatprep.subr.mxu0 0.0
    %2734 = vmatpush1.msra.mxu0 0.0
    %2735 = vmatprep.subr.mxu0 0.0
    %2736 = vmatpush1.msra.mxu0 0.0
    %2737 = vmatprep.subr.mxu0 0.0
    %2738 = vmatpush1.msra.mxu0 0.0
    %2739 = vmatprep.subr.mxu0 0.0
    %2740 = vmatpush1.msra.mxu0 0.0
    %2741 = vmatprep.subr.mxu0 0.0
    %2742 = vmatpush1.msra.mxu0 0.0
    %2743 = vmatprep.subr.mxu0 0.0
    %2744 = vmatpush1.msra.mxu0 0.0
    %2745 = vmatprep.subr.mxu0 0.0
    %2746 = vmatpush1.msra.mxu0 0.0
    %2747 = vmatprep.subr.mxu0 0.0
    %2748 = vmatpush1.msra.mxu0 %v28
    %2749 = vmatprep.subr.mxu0 0.0
    %2750 = vmatpush1.msra.mxu0 %v27
    %2751 = vmatprep.subr.mxu0 0.0
    %2752 = vmatpush2.msra.mxu0 0.0
    %2753 = vmatprep.subr.mxu0 0.0
    %2754 = vmatpush2.msra.mxu0 0.0
    %2755 = vmatprep.subr.mxu0 0.0
    %2756 = vmatpush2.msra.mxu0 0.0
    %2757 = vmatprep.subr.mxu0 0.0
    %2758 = vmatpush2.msra.mxu0 0.0
    %2759 = vmatprep.subr.mxu0 0.0
    %2760 = vmatpush2.msra.mxu0 0.0
    %2761 = vmatprep.subr.mxu0 0.0
    %2762 = vmatpush2.msra.mxu0 0.0
    %2763 = vmatprep.subr.mxu0 0.0
    %2764 = vmatpush2.msra.mxu0 0.0
    %2765 = vmatprep.subr.mxu0 0.0
    %2766 = vmatpush2.msra.mxu0 0.0
    %2767 = vmatprep.subr.mxu0 0.0
    %2768 = vmatpush2.msra.mxu0 0.0
    %2769 = vmatprep.subr.mxu0 0.0
    %2770 = vmatpush2.msra.mxu0 0.0
    %2771 = vmatprep.subr.mxu0 0.0
    %2772 = vmatpush2.msra.mxu0 0.0
    %2773 = vmatprep.subr.mxu0 0.0
    %2774 = vmatpush2.msra.mxu0 0.0
    %2775 = vmatprep.subr.mxu0 0.0
    %2776 = vmatpush2.msra.mxu0 0.0
    %2777 = vmatprep.subr.mxu0 0.0
    %2778 = vmatpush2.msra.mxu0 0.0
    %2779 = vmatprep.subr.mxu0 0.0
    %2780 = vmatpush2.msra.mxu0 0.0
    %2781 = vmatprep.subr.mxu0 0.0
    %2782 = vmatpush2.msra.mxu0 0.0
    %2783 = vmatprep.mubr.f32.mxu0 0.0
    %2784 = vmatmul.mubr.f32.gmra.mxu0 %v2717
    %v2785 = vpop.f32.mrf.mxu0
    %v2786 = vadd.f32 %v2713, %v2785
    %v2787 = vpop.f32.mrf.mxu0
    %2788 = vdwg.mxu0
    %v2789 = vadd.f32 %v2786, %v205
    %v2790 = vxor.u32 %v2789, 2147483648
    %v2791 = vmul.f32 %v2790, 1.442695
    %v2792 = vpow.pop %v2791
    %v2793 = vadd.f32 %v2792, 1.0
    %v2794 = vrcp.pop %v2793
    %v2795 = vmul.f32 1.0, %v2794
    %v2796 = vtanh.pop %v2789
    %v2797 = vmul.f32 %v2795, %v2292
    %2799 = vrot.lane.b32.xlu0 %v2796, 64
    %v2800 = vpop.permute.xlu0 %2799
    %v2802 = vmul.f32 %v2795, %v2800
    %2804 = vrot.lane.b32.xlu0 %v2802, 32
    %v2805 = vpop.permute.xlu0 %2804
    %v2807 = vadd.f32 %v2797, %v2805
    %v2808 = vtanh.pop %v2807
    %2810 = vrot.lane.b32.xlu0 %v2808, 64
    %v2811 = vpop.permute.xlu0 %2810
    %v2813 = vmul.f32 %v2795, %v2811
    %2814 = vmatprep.subr.mxu0 0.0
    %2815 = vmatpush1.msra.mxu0 0.0
    %2816 = vmatprep.subr.mxu0 0.0
    %2817 = vmatpush1.msra.mxu0 0.0
    %2818 = vmatprep.subr.mxu0 0.0
    %2819 = vmatpush1.msra.mxu0 0.0
    %2820 = vmatprep.subr.mxu0 0.0
    %2821 = vmatpush1.msra.mxu0 0.0
    %2822 = vmatprep.subr.mxu0 0.0
    %2823 = vmatpush1.msra.mxu0 0.0
    %2824 = vmatprep.subr.mxu0 0.0
    %2825 = vmatpush1.msra.mxu0 0.0
    %2826 = vmatprep.subr.mxu0 0.0
    %2827 = vmatpush1.msra.mxu0 0.0
    %2828 = vmatprep.subr.mxu0 0.0
    %2829 = vmatpush1.msra.mxu0 0.0
    %2830 = vmatprep.subr.mxu0 0.0
    %2831 = vmatpush1.msra.mxu0 0.0
    %2832 = vmatprep.subr.mxu0 0.0
    %2833 = vmatpush1.msra.mxu0 0.0
    %2834 = vmatprep.subr.mxu0 0.0
    %2835 = vmatpush1.msra.mxu0 0.0
    %2836 = vmatprep.subr.mxu0 0.0
    %2837 = vmatpush1.msra.mxu0 0.0
    %2838 = vmatprep.subr.mxu0 0.0
    %2839 = vmatpush1.msra.mxu0 %v45
    %2840 = vmatprep.subr.mxu0 0.0
    %2841 = vmatpush1.msra.mxu0 %v44
    %2842 = vmatprep.subr.mxu0 0.0
    %2843 = vmatpush1.msra.mxu0 %v43
    %2844 = vmatprep.subr.mxu0 0.0
    %2845 = vmatpush1.msra.mxu0 %v42
    %2846 = vmatprep.subr.mxu0 0.0
    %2847 = vmatpush2.msra.mxu0 0.0
    %2848 = vmatprep.subr.mxu0 0.0
    %2849 = vmatpush2.msra.mxu0 0.0
    %2850 = vmatprep.subr.mxu0 0.0
    %2851 = vmatpush2.msra.mxu0 0.0
    %2852 = vmatprep.subr.mxu0 0.0
    %2853 = vmatpush2.msra.mxu0 0.0
    %2854 = vmatprep.subr.mxu0 0.0
    %2855 = vmatpush2.msra.mxu0 0.0
    %2856 = vmatprep.subr.mxu0 0.0
    %2857 = vmatpush2.msra.mxu0 0.0
    %2858 = vmatprep.subr.mxu0 0.0
    %2859 = vmatpush2.msra.mxu0 0.0
    %2860 = vmatprep.subr.mxu0 0.0
    %2861 = vmatpush2.msra.mxu0 0.0
    %2862 = vmatprep.subr.mxu0 0.0
    %2863 = vmatpush2.msra.mxu0 0.0
    %2864 = vmatprep.subr.mxu0 0.0
    %2865 = vmatpush2.msra.mxu0 0.0
    %2866 = vmatprep.subr.mxu0 0.0
    %2867 = vmatpush2.msra.mxu0 0.0
    %2868 = vmatprep.subr.mxu0 0.0
    %2869 = vmatpush2.msra.mxu0 0.0
    %2870 = vmatprep.subr.mxu0 0.0
    %2871 = vmatpush2.msra.mxu0 0.0
    %2872 = vmatprep.subr.mxu0 0.0
    %2873 = vmatpush2.msra.mxu0 0.0
    %2874 = vmatprep.subr.mxu0 0.0
    %2875 = vmatpush2.msra.mxu0 0.0
    %2876 = vmatprep.subr.mxu0 0.0
    %2877 = vmatpush2.msra.mxu0 0.0
    %2878 = vmatprep.mubr.f32.mxu0 0.0
    %2879 = vmatmul.mubr.f32.gmra.mxu0 %v2547
    %v2880 = vpop.f32.mrf.mxu0
    %v2881 = vadd.f32 0.0, %v2880
    %v2882 = vpop.f32.mrf.mxu0
    %2883 = vdwg.mxu0
    %2885 = vrot.lane.b32.xlu0 %v2813, 32
    %v2886 = vpop.permute.xlu0 %2885
    %v2887 = vsel %vm53, %v2886, 0
    %2889 = vmatprep.subr.mxu0 0.0
    %2890 = vmatpush1.msra.mxu0 0.0
    %2891 = vmatprep.subr.mxu0 0.0
    %2892 = vmatpush1.msra.mxu0 0.0
    %2893 = vmatprep.subr.mxu0 0.0
    %2894 = vmatpush1.msra.mxu0 0.0
    %2895 = vmatprep.subr.mxu0 0.0
    %2896 = vmatpush1.msra.mxu0 0.0
    %2897 = vmatprep.subr.mxu0 0.0
    %2898 = vmatpush1.msra.mxu0 0.0
    %2899 = vmatprep.subr.mxu0 0.0
    %2900 = vmatpush1.msra.mxu0 0.0
    %2901 = vmatprep.subr.mxu0 0.0
    %2902 = vmatpush1.msra.mxu0 0.0
    %2903 = vmatprep.subr.mxu0 0.0
    %2904 = vmatpush1.msra.mxu0 0.0
    %2905 = vmatprep.subr.mxu0 0.0
    %2906 = vmatpush1.msra.mxu0 0.0
    %2907 = vmatprep.subr.mxu0 0.0
    %2908 = vmatpush1.msra.mxu0 0.0
    %2909 = vmatprep.subr.mxu0 0.0
    %2910 = vmatpush1.msra.mxu0 0.0
    %2911 = vmatprep.subr.mxu0 0.0
    %2912 = vmatpush1.msra.mxu0 0.0
    %2913 = vmatprep.subr.mxu0 0.0
    %2914 = vmatpush1.msra.mxu0 %v37
    %2915 = vmatprep.subr.mxu0 0.0
    %2916 = vmatpush1.msra.mxu0 %v36
    %2917 = vmatprep.subr.mxu0 0.0
    %2918 = vmatpush1.msra.mxu0 %v35
    %2919 = vmatprep.subr.mxu0 0.0
    %2920 = vmatpush1.msra.mxu0 %v34
    %2921 = vmatprep.subr.mxu0 0.0
    %2922 = vmatpush2.msra.mxu0 0.0
    %2923 = vmatprep.subr.mxu0 0.0
    %2924 = vmatpush2.msra.mxu0 0.0
    %2925 = vmatprep.subr.mxu0 0.0
    %2926 = vmatpush2.msra.mxu0 0.0
    %2927 = vmatprep.subr.mxu0 0.0
    %2928 = vmatpush2.msra.mxu0 0.0
    %2929 = vmatprep.subr.mxu0 0.0
    %2930 = vmatpush2.msra.mxu0 0.0
    %2931 = vmatprep.subr.mxu0 0.0
    %2932 = vmatpush2.msra.mxu0 0.0
    %2933 = vmatprep.subr.mxu0 0.0
    %2934 = vmatpush2.msra.mxu0 0.0
    %2935 = vmatprep.subr.mxu0 0.0
    %2936 = vmatpush2.msra.mxu0 0.0
    %2937 = vmatprep.subr.mxu0 0.0
    %2938 = vmatpush2.msra.mxu0 0.0
    %2939 = vmatprep.subr.mxu0 0.0
    %2940 = vmatpush2.msra.mxu0 0.0
    %2941 = vmatprep.subr.mxu0 0.0
    %2942 = vmatpush2.msra.mxu0 0.0
    %2943 = vmatprep.subr.mxu0 0.0
    %2944 = vmatpush2.msra.mxu0 0.0
    %2945 = vmatprep.subr.mxu0 0.0
    %2946 = vmatpush2.msra.mxu0 0.0
    %2947 = vmatprep.subr.mxu0 0.0
    %2948 = vmatpush2.msra.mxu0 0.0
    %2949 = vmatprep.subr.mxu0 0.0
    %2950 = vmatpush2.msra.mxu0 0.0
    %2951 = vmatprep.subr.mxu0 0.0
    %2952 = vmatpush2.msra.mxu0 0.0
    %2953 = vmatprep.mubr.f32.mxu0 0.0
    %2954 = vmatmul.mubr.f32.gmra.mxu0 %v2887
    %v2955 = vpop.f32.mrf.mxu0
    %v2956 = vadd.f32 %v2881, %v2955
    %v2957 = vpop.f32.mrf.mxu0
    %2958 = vdwg.mxu0
    %v2959 = vadd.f32 %v2956, %v381
    %v2960 = vxor.u32 %v2959, 2147483648
    %v2961 = vmul.f32 %v2960, 1.442695
    %v2962 = vpow.pop %v2961
    %v2963 = vadd.f32 %v2962, 1.0
    %v2964 = vrcp.pop %v2963
    %v2965 = vmul.f32 1.0, %v2964
    %v2966 = vtanh.pop %v2959
    %v2967 = vmul.f32 %v2965, %v2462
    %2969 = vrot.lane.b32.xlu0 %v2966, 64
    %v2970 = vpop.permute.xlu0 %2969
    %v2972 = vmul.f32 %v2965, %v2970
    %2974 = vrot.lane.b32.xlu0 %v2972, 32
    %v2975 = vpop.permute.xlu0 %2974
    %v2977 = vadd.f32 %v2967, %v2975
    %v2978 = vtanh.pop %v2977
    %2980 = vrot.lane.b32.xlu0 %v2978, 64
    %v2981 = vpop.permute.xlu0 %2980
    %v2983 = vmul.f32 %v2965, %v2981
    %2985 = vrot.lane.b32.xlu0 %v2643, 32
    %v2986 = vpop.permute.xlu0 %2985
    %v2987 = vsel %vm53, %v2986, 0
    %2989 = vmatprep.subr.mxu0 0.0
    %2990 = vmatpush1.msra.mxu0 0.0
    %2991 = vmatprep.subr.mxu0 0.0
    %2992 = vmatpush1.msra.mxu0 0.0
    %2993 = vmatprep.subr.mxu0 0.0
    %2994 = vmatpush1.msra.mxu0 0.0
    %2995 = vmatprep.subr.mxu0 0.0
    %2996 = vmatpush1.msra.mxu0 0.0
    %2997 = vmatprep.subr.mxu0 0.0
    %2998 = vmatpush1.msra.mxu0 0.0
    %2999 = vmatprep.subr.mxu0 0.0
    %3000 = vmatpush1.msra.mxu0 0.0
    %3001 = vmatprep.subr.mxu0 0.0
    %3002 = vmatpush1.msra.mxu0 0.0
    %3003 = vmatprep.subr.mxu0 0.0
    %3004 = vmatpush1.msra.mxu0 0.0
    %3005 = vmatprep.subr.mxu0 0.0
    %3006 = vmatpush1.msra.mxu0 0.0
    %3007 = vmatprep.subr.mxu0 0.0
    %3008 = vmatpush1.msra.mxu0 0.0
    %3009 = vmatprep.subr.mxu0 0.0
    %3010 = vmatpush1.msra.mxu0 0.0
    %3011 = vmatprep.subr.mxu0 0.0
    %3012 = vmatpush1.msra.mxu0 0.0
    %3013 = vmatprep.subr.mxu0 0.0
    %3014 = vmatpush1.msra.mxu0 %v49
    %3015 = vmatprep.subr.mxu0 0.0
    %3016 = vmatpush1.msra.mxu0 %v48
    %3017 = vmatprep.subr.mxu0 0.0
    %3018 = vmatpush1.msra.mxu0 %v47
    %3019 = vmatprep.subr.mxu0 0.0
    %3020 = vmatpush1.msra.mxu0 %v46
    %3021 = vmatprep.subr.mxu0 0.0
    %3022 = vmatpush2.msra.mxu0 0.0
    %3023 = vmatprep.subr.mxu0 0.0
    %3024 = vmatpush2.msra.mxu0 0.0
    %3025 = vmatprep.subr.mxu0 0.0
    %3026 = vmatpush2.msra.mxu0 0.0
    %3027 = vmatprep.subr.mxu0 0.0
    %3028 = vmatpush2.msra.mxu0 0.0
    %3029 = vmatprep.subr.mxu0 0.0
    %3030 = vmatpush2.msra.mxu0 0.0
    %3031 = vmatprep.subr.mxu0 0.0
    %3032 = vmatpush2.msra.mxu0 0.0
    %3033 = vmatprep.subr.mxu0 0.0
    %3034 = vmatpush2.msra.mxu0 0.0
    %3035 = vmatprep.subr.mxu0 0.0
    %3036 = vmatpush2.msra.mxu0 0.0
    %3037 = vmatprep.subr.mxu0 0.0
    %3038 = vmatpush2.msra.mxu0 0.0
    %3039 = vmatprep.subr.mxu0 0.0
    %3040 = vmatpush2.msra.mxu0 0.0
    %3041 = vmatprep.subr.mxu0 0.0
    %3042 = vmatpush2.msra.mxu0 0.0
    %3043 = vmatprep.subr.mxu0 0.0
    %3044 = vmatpush2.msra.mxu0 0.0
    %3045 = vmatprep.subr.mxu0 0.0
    %3046 = vmatpush2.msra.mxu0 0.0
    %3047 = vmatprep.subr.mxu0 0.0
    %3048 = vmatpush2.msra.mxu0 0.0
    %3049 = vmatprep.subr.mxu0 0.0
    %3050 = vmatpush2.msra.mxu0 0.0
    %3051 = vmatprep.subr.mxu0 0.0
    %3052 = vmatpush2.msra.mxu0 0.0
    %3053 = vmatprep.mubr.f32.mxu0 0.0
    %3054 = vmatmul.mubr.f32.gmra.mxu0 %v2987
    %v3055 = vpop.f32.mrf.mxu0
    %v3056 = vadd.f32 0.0, %v3055
    %v3057 = vpop.f32.mrf.mxu0
    %3058 = vdwg.mxu0
    %3060 = vrot.lane.b32.xlu0 %v2983, 32
    %v3061 = vpop.permute.xlu0 %3060
    %v3062 = vsel %vm53, %v3061, 0
    %3064 = vmatprep.subr.mxu0 0.0
    %3065 = vmatpush1.msra.mxu0 0.0
    %3066 = vmatprep.subr.mxu0 0.0
    %3067 = vmatpush1.msra.mxu0 0.0
    %3068 = vmatprep.subr.mxu0 0.0
    %3069 = vmatpush1.msra.mxu0 0.0
    %3070 = vmatprep.subr.mxu0 0.0
    %3071 = vmatpush1.msra.mxu0 0.0
    %3072 = vmatprep.subr.mxu0 0.0
    %3073 = vmatpush1.msra.mxu0 0.0
    %3074 = vmatprep.subr.mxu0 0.0
    %3075 = vmatpush1.msra.mxu0 0.0
    %3076 = vmatprep.subr.mxu0 0.0
    %3077 = vmatpush1.msra.mxu0 0.0
    %3078 = vmatprep.subr.mxu0 0.0
    %3079 = vmatpush1.msra.mxu0 0.0
    %3080 = vmatprep.subr.mxu0 0.0
    %3081 = vmatpush1.msra.mxu0 0.0
    %3082 = vmatprep.subr.mxu0 0.0
    %3083 = vmatpush1.msra.mxu0 0.0
    %3084 = vmatprep.subr.mxu0 0.0
    %3085 = vmatpush1.msra.mxu0 0.0
    %3086 = vmatprep.subr.mxu0 0.0
    %3087 = vmatpush1.msra.mxu0 0.0
    %3088 = vmatprep.subr.mxu0 0.0
    %3089 = vmatpush1.msra.mxu0 %v41
    %3090 = vmatprep.subr.mxu0 0.0
    %3091 = vmatpush1.msra.mxu0 %v40
    %3092 = vmatprep.subr.mxu0 0.0
    %3093 = vmatpush1.msra.mxu0 %v39
    %3094 = vmatprep.subr.mxu0 0.0
    %3095 = vmatpush1.msra.mxu0 %v38
    %3096 = vmatprep.subr.mxu0 0.0
    %3097 = vmatpush2.msra.mxu0 0.0
    %3098 = vmatprep.subr.mxu0 0.0
    %3099 = vmatpush2.msra.mxu0 0.0
    %3100 = vmatprep.subr.mxu0 0.0
    %3101 = vmatpush2.msra.mxu0 0.0
    %3102 = vmatprep.subr.mxu0 0.0
    %3103 = vmatpush2.msra.mxu0 0.0
    %3104 = vmatprep.subr.mxu0 0.0
    %3105 = vmatpush2.msra.mxu0 0.0
    %3106 = vmatprep.subr.mxu0 0.0
    %3107 = vmatpush2.msra.mxu0 0.0
    %3108 = vmatprep.subr.mxu0 0.0
    %3109 = vmatpush2.msra.mxu0 0.0
    %3110 = vmatprep.subr.mxu0 0.0
    %3111 = vmatpush2.msra.mxu0 0.0
    %3112 = vmatprep.subr.mxu0 0.0
    %3113 = vmatpush2.msra.mxu0 0.0
    %3114 = vmatprep.subr.mxu0 0.0
    %3115 = vmatpush2.msra.mxu0 0.0
    %3116 = vmatprep.subr.mxu0 0.0
    %3117 = vmatpush2.msra.mxu0 0.0
    %3118 = vmatprep.subr.mxu0 0.0
    %3119 = vmatpush2.msra.mxu0 0.0
    %3120 = vmatprep.subr.mxu0 0.0
    %3121 = vmatpush2.msra.mxu0 0.0
    %3122 = vmatprep.subr.mxu0 0.0
    %3123 = vmatpush2.msra.mxu0 0.0
    %3124 = vmatprep.subr.mxu0 0.0
    %3125 = vmatpush2.msra.mxu0 0.0
    %3126 = vmatprep.subr.mxu0 0.0
    %3127 = vmatpush2.msra.mxu0 0.0
    %3128 = vmatprep.mubr.f32.mxu0 0.0
    %3129 = vmatmul.mubr.f32.gmra.mxu0 %v3062
    %v3130 = vpop.f32.mrf.mxu0
    %v3131 = vadd.f32 %v3056, %v3130
    %v3132 = vpop.f32.mrf.mxu0
    %3133 = vdwg.mxu0
    %v3134 = vadd.f32 %v3131, %v557
    %v3135 = vxor.u32 %v3134, 2147483648
    %v3136 = vmul.f32 %v3135, 1.442695
    %v3137 = vpow.pop %v3136
    %v3138 = vadd.f32 %v3137, 1.0
    %v3139 = vrcp.pop %v3138
    %v3140 = vmul.f32 1.0, %v3139
    %v3141 = vtanh.pop %v3134
    %v3142 = vmul.f32 %v3140, %v2637
    %3144 = vrot.lane.b32.xlu0 %v3141, 64
    %v3145 = vpop.permute.xlu0 %3144
    %v3147 = vmul.f32 %v3140, %v3145
    %3149 = vrot.lane.b32.xlu0 %v3147, 32
    %v3150 = vpop.permute.xlu0 %3149
    %v3152 = vadd.f32 %v3142, %v3150
    %v3153 = vtanh.pop %v3152
    %3155 = vrot.lane.b32.xlu0 %v3153, 64
    %v3156 = vpop.permute.xlu0 %3155
    %v3158 = vmul.f32 %v3140, %v3156
    %s3159 = scalar_lea.vmem %s0, 12
    %v3160 = vld [vmem:[%s3159] sm:$0x3]
    %3161 = vmatprep.subr.mxu0 0.0
    %3162 = vmatpush1.msra.mxu0 0.0
    %3163 = vmatprep.subr.mxu0 0.0
    %3164 = vmatpush1.msra.mxu0 0.0
    %3165 = vmatprep.subr.mxu0 0.0
    %3166 = vmatpush1.msra.mxu0 0.0
    %3167 = vmatprep.subr.mxu0 0.0
    %3168 = vmatpush1.msra.mxu0 0.0
    %3169 = vmatprep.subr.mxu0 0.0
    %3170 = vmatpush1.msra.mxu0 0.0
    %3171 = vmatprep.subr.mxu0 0.0
    %3172 = vmatpush1.msra.mxu0 0.0
    %3173 = vmatprep.subr.mxu0 0.0
    %3174 = vmatpush1.msra.mxu0 0.0
    %3175 = vmatprep.subr.mxu0 0.0
    %3176 = vmatpush1.msra.mxu0 0.0
    %3177 = vmatprep.subr.mxu0 0.0
    %3178 = vmatpush1.msra.mxu0 0.0
    %3179 = vmatprep.subr.mxu0 0.0
    %3180 = vmatpush1.msra.mxu0 0.0
    %3181 = vmatprep.subr.mxu0 0.0
    %3182 = vmatpush1.msra.mxu0 0.0
    %3183 = vmatprep.subr.mxu0 0.0
    %3184 = vmatpush1.msra.mxu0 0.0
    %3185 = vmatprep.subr.mxu0 0.0
    %3186 = vmatpush1.msra.mxu0 %v32
    %3187 = vmatprep.subr.mxu0 0.0
    %3188 = vmatpush1.msra.mxu0 %v31
    %3189 = vmatprep.subr.mxu0 0.0
    %3190 = vmatpush1.msra.mxu0 %v30
    %3191 = vmatprep.subr.mxu0 0.0
    %3192 = vmatpush1.msra.mxu0 %v29
    %3193 = vmatprep.subr.mxu0 0.0
    %3194 = vmatpush2.msra.mxu0 0.0
    %3195 = vmatprep.subr.mxu0 0.0
    %3196 = vmatpush2.msra.mxu0 0.0
    %3197 = vmatprep.subr.mxu0 0.0
    %3198 = vmatpush2.msra.mxu0 0.0
    %3199 = vmatprep.subr.mxu0 0.0
    %3200 = vmatpush2.msra.mxu0 0.0
    %3201 = vmatprep.subr.mxu0 0.0
    %3202 = vmatpush2.msra.mxu0 0.0
    %3203 = vmatprep.subr.mxu0 0.0
    %3204 = vmatpush2.msra.mxu0 0.0
    %3205 = vmatprep.subr.mxu0 0.0
    %3206 = vmatpush2.msra.mxu0 0.0
    %3207 = vmatprep.subr.mxu0 0.0
    %3208 = vmatpush2.msra.mxu0 0.0
    %3209 = vmatprep.subr.mxu0 0.0
    %3210 = vmatpush2.msra.mxu0 0.0
    %3211 = vmatprep.subr.mxu0 0.0
    %3212 = vmatpush2.msra.mxu0 0.0
    %3213 = vmatprep.subr.mxu0 0.0
    %3214 = vmatpush2.msra.mxu0 0.0
    %3215 = vmatprep.subr.mxu0 0.0
    %3216 = vmatpush2.msra.mxu0 0.0
    %3217 = vmatprep.subr.mxu0 0.0
    %3218 = vmatpush2.msra.mxu0 0.0
    %3219 = vmatprep.subr.mxu0 0.0
    %3220 = vmatpush2.msra.mxu0 0.0
    %3221 = vmatprep.subr.mxu0 0.0
    %3222 = vmatpush2.msra.mxu0 0.0
    %3223 = vmatprep.subr.mxu0 0.0
    %3224 = vmatpush2.msra.mxu0 0.0
    %3225 = vmatprep.mubr.f32.mxu0 0.0
    %3226 = vmatmul.mubr.f32.gmra.mxu0 %v2887
    %v3227 = vpop.f32.mrf.mxu0
    %v3228 = vadd.f32 0.0, %v3227
    %v3229 = vpop.f32.mrf.mxu0
    %3230 = vdwg.mxu0
    %v3232 = vsel %vm127, %v3160, 0
    %3234 = vmatprep.subr.mxu0 0.0
    %3235 = vmatpush1.msra.mxu0 0.0
    %3236 = vmatprep.subr.mxu0 0.0
    %3237 = vmatpush1.msra.mxu0 0.0
    %3238 = vmatprep.subr.mxu0 0.0
    %3239 = vmatpush1.msra.mxu0 0.0
    %3240 = vmatprep.subr.mxu0 0.0
    %3241 = vmatpush1.msra.mxu0 0.0
    %3242 = vmatprep.subr.mxu0 0.0
    %3243 = vmatpush1.msra.mxu0 0.0
    %3244 = vmatprep.subr.mxu0 0.0
    %3245 = vmatpush1.msra.mxu0 0.0
    %3246 = vmatprep.subr.mxu0 0.0
    %3247 = vmatpush1.msra.mxu0 0.0
    %3248 = vmatprep.subr.mxu0 0.0
    %3249 = vmatpush1.msra.mxu0 0.0
    %3250 = vmatprep.subr.mxu0 0.0
    %3251 = vmatpush1.msra.mxu0 0.0
    %3252 = vmatprep.subr.mxu0 0.0
    %3253 = vmatpush1.msra.mxu0 0.0
    %3254 = vmatprep.subr.mxu0 0.0
    %3255 = vmatpush1.msra.mxu0 0.0
    %3256 = vmatprep.subr.mxu0 0.0
    %3257 = vmatpush1.msra.mxu0 0.0
    %3258 = vmatprep.subr.mxu0 0.0
    %3259 = vmatpush1.msra.mxu0 0.0
    %3260 = vmatprep.subr.mxu0 0.0
    %3261 = vmatpush1.msra.mxu0 0.0
    %3262 = vmatprep.subr.mxu0 0.0
    %3263 = vmatpush1.msra.mxu0 %v28
    %3264 = vmatprep.subr.mxu0 0.0
    %3265 = vmatpush1.msra.mxu0 %v27
    %3266 = vmatprep.subr.mxu0 0.0
    %3267 = vmatpush2.msra.mxu0 0.0
    %3268 = vmatprep.subr.mxu0 0.0
    %3269 = vmatpush2.msra.mxu0 0.0
    %3270 = vmatprep.subr.mxu0 0.0
    %3271 = vmatpush2.msra.mxu0 0.0
    %3272 = vmatprep.subr.mxu0 0.0
    %3273 = vmatpush2.msra.mxu0 0.0
    %3274 = vmatprep.subr.mxu0 0.0
    %3275 = vmatpush2.msra.mxu0 0.0
    %3276 = vmatprep.subr.mxu0 0.0
    %3277 = vmatpush2.msra.mxu0 0.0
    %3278 = vmatprep.subr.mxu0 0.0
    %3279 = vmatpush2.msra.mxu0 0.0
    %3280 = vmatprep.subr.mxu0 0.0
    %3281 = vmatpush2.msra.mxu0 0.0
    %3282 = vmatprep.subr.mxu0 0.0
    %3283 = vmatpush2.msra.mxu0 0.0
    %3284 = vmatprep.subr.mxu0 0.0
    %3285 = vmatpush2.msra.mxu0 0.0
    %3286 = vmatprep.subr.mxu0 0.0
    %3287 = vmatpush2.msra.mxu0 0.0
    %3288 = vmatprep.subr.mxu0 0.0
    %3289 = vmatpush2.msra.mxu0 0.0
    %3290 = vmatprep.subr.mxu0 0.0
    %3291 = vmatpush2.msra.mxu0 0.0
    %3292 = vmatprep.subr.mxu0 0.0
    %3293 = vmatpush2.msra.mxu0 0.0
    %3294 = vmatprep.subr.mxu0 0.0
    %3295 = vmatpush2.msra.mxu0 0.0
    %3296 = vmatprep.subr.mxu0 0.0
    %3297 = vmatpush2.msra.mxu0 0.0
    %3298 = vmatprep.mubr.f32.mxu0 0.0
    %3299 = vmatmul.mubr.f32.gmra.mxu0 %v3232
    %v3300 = vpop.f32.mrf.mxu0
    %v3301 = vadd.f32 %v3228, %v3300
    %v3302 = vpop.f32.mrf.mxu0
    %3303 = vdwg.mxu0
    %v3304 = vadd.f32 %v3301, %v205
    %v3305 = vxor.u32 %v3304, 2147483648
    %v3306 = vmul.f32 %v3305, 1.442695
    %v3307 = vpow.pop %v3306
    %v3308 = vadd.f32 %v3307, 1.0
    %v3309 = vrcp.pop %v3308
    %v3310 = vmul.f32 1.0, %v3309
    %v3311 = vtanh.pop %v3304
    %v3312 = vmul.f32 %v3310, %v2807
    %3314 = vrot.lane.b32.xlu0 %v3311, 64
    %v3315 = vpop.permute.xlu0 %3314
    %v3317 = vmul.f32 %v3310, %v3315
    %3319 = vrot.lane.b32.xlu0 %v3317, 32
    %v3320 = vpop.permute.xlu0 %3319
    %v3322 = vadd.f32 %v3312, %v3320
    %v3323 = vtanh.pop %v3322
    %3325 = vrot.lane.b32.xlu0 %v3323, 64
    %v3326 = vpop.permute.xlu0 %3325
    %v3328 = vmul.f32 %v3310, %v3326
    %3329 = vmatprep.subr.mxu0 0.0
    %3330 = vmatpush1.msra.mxu0 0.0
    %3331 = vmatprep.subr.mxu0 0.0
    %3332 = vmatpush1.msra.mxu0 0.0
    %3333 = vmatprep.subr.mxu0 0.0
    %3334 = vmatpush1.msra.mxu0 0.0
    %3335 = vmatprep.subr.mxu0 0.0
    %3336 = vmatpush1.msra.mxu0 0.0
    %3337 = vmatprep.subr.mxu0 0.0
    %3338 = vmatpush1.msra.mxu0 0.0
    %3339 = vmatprep.subr.mxu0 0.0
    %3340 = vmatpush1.msra.mxu0 0.0
    %3341 = vmatprep.subr.mxu0 0.0
    %3342 = vmatpush1.msra.mxu0 0.0
    %3343 = vmatprep.subr.mxu0 0.0
    %3344 = vmatpush1.msra.mxu0 0.0
    %3345 = vmatprep.subr.mxu0 0.0
    %3346 = vmatpush1.msra.mxu0 0.0
    %3347 = vmatprep.subr.mxu0 0.0
    %3348 = vmatpush1.msra.mxu0 0.0
    %3349 = vmatprep.subr.mxu0 0.0
    %3350 = vmatpush1.msra.mxu0 0.0
    %3351 = vmatprep.subr.mxu0 0.0
    %3352 = vmatpush1.msra.mxu0 0.0
    %3353 = vmatprep.subr.mxu0 0.0
    %3354 = vmatpush1.msra.mxu0 %v45
    %3355 = vmatprep.subr.mxu0 0.0
    %3356 = vmatpush1.msra.mxu0 %v44
    %3357 = vmatprep.subr.mxu0 0.0
    %3358 = vmatpush1.msra.mxu0 %v43
    %3359 = vmatprep.subr.mxu0 0.0
    %3360 = vmatpush1.msra.mxu0 %v42
    %3361 = vmatprep.subr.mxu0 0.0
    %3362 = vmatpush2.msra.mxu0 0.0
    %3363 = vmatprep.subr.mxu0 0.0
    %3364 = vmatpush2.msra.mxu0 0.0
    %3365 = vmatprep.subr.mxu0 0.0
    %3366 = vmatpush2.msra.mxu0 0.0
    %3367 = vmatprep.subr.mxu0 0.0
    %3368 = vmatpush2.msra.mxu0 0.0
    %3369 = vmatprep.subr.mxu0 0.0
    %3370 = vmatpush2.msra.mxu0 0.0
    %3371 = vmatprep.subr.mxu0 0.0
    %3372 = vmatpush2.msra.mxu0 0.0
    %3373 = vmatprep.subr.mxu0 0.0
    %3374 = vmatpush2.msra.mxu0 0.0
    %3375 = vmatprep.subr.mxu0 0.0
    %3376 = vmatpush2.msra.mxu0 0.0
    %3377 = vmatprep.subr.mxu0 0.0
    %3378 = vmatpush2.msra.mxu0 0.0
    %3379 = vmatprep.subr.mxu0 0.0
    %3380 = vmatpush2.msra.mxu0 0.0
    %3381 = vmatprep.subr.mxu0 0.0
    %3382 = vmatpush2.msra.mxu0 0.0
    %3383 = vmatprep.subr.mxu0 0.0
    %3384 = vmatpush2.msra.mxu0 0.0
    %3385 = vmatprep.subr.mxu0 0.0
    %3386 = vmatpush2.msra.mxu0 0.0
    %3387 = vmatprep.subr.mxu0 0.0
    %3388 = vmatpush2.msra.mxu0 0.0
    %3389 = vmatprep.subr.mxu0 0.0
    %3390 = vmatpush2.msra.mxu0 0.0
    %3391 = vmatprep.subr.mxu0 0.0
    %3392 = vmatpush2.msra.mxu0 0.0
    %3393 = vmatprep.mubr.f32.mxu0 0.0
    %3394 = vmatmul.mubr.f32.gmra.mxu0 %v3062
    %v3395 = vpop.f32.mrf.mxu0
    %v3396 = vadd.f32 0.0, %v3395
    %v3397 = vpop.f32.mrf.mxu0
    %3398 = vdwg.mxu0
    %3400 = vrot.lane.b32.xlu0 %v3328, 32
    %v3401 = vpop.permute.xlu0 %3400
    %v3402 = vsel %vm53, %v3401, 0
    %3404 = vmatprep.subr.mxu0 0.0
    %3405 = vmatpush1.msra.mxu0 0.0
    %3406 = vmatprep.subr.mxu0 0.0
    %3407 = vmatpush1.msra.mxu0 0.0
    %3408 = vmatprep.subr.mxu0 0.0
    %3409 = vmatpush1.msra.mxu0 0.0
    %3410 = vmatprep.subr.mxu0 0.0
    %3411 = vmatpush1.msra.mxu0 0.0
    %3412 = vmatprep.subr.mxu0 0.0
    %3413 = vmatpush1.msra.mxu0 0.0
    %3414 = vmatprep.subr.mxu0 0.0
    %3415 = vmatpush1.msra.mxu0 0.0
    %3416 = vmatprep.subr.mxu0 0.0
    %3417 = vmatpush1.msra.mxu0 0.0
    %3418 = vmatprep.subr.mxu0 0.0
    %3419 = vmatpush1.msra.mxu0 0.0
    %3420 = vmatprep.subr.mxu0 0.0
    %3421 = vmatpush1.msra.mxu0 0.0
    %3422 = vmatprep.subr.mxu0 0.0
    %3423 = vmatpush1.msra.mxu0 0.0
    %3424 = vmatprep.subr.mxu0 0.0
    %3425 = vmatpush1.msra.mxu0 0.0
    %3426 = vmatprep.subr.mxu0 0.0
    %3427 = vmatpush1.msra.mxu0 0.0
    %3428 = vmatprep.subr.mxu0 0.0
    %3429 = vmatpush1.msra.mxu0 %v37
    %3430 = vmatprep.subr.mxu0 0.0
    %3431 = vmatpush1.msra.mxu0 %v36
    %3432 = vmatprep.subr.mxu0 0.0
    %3433 = vmatpush1.msra.mxu0 %v35
    %3434 = vmatprep.subr.mxu0 0.0
    %3435 = vmatpush1.msra.mxu0 %v34
    %3436 = vmatprep.subr.mxu0 0.0
    %3437 = vmatpush2.msra.mxu0 0.0
    %3438 = vmatprep.subr.mxu0 0.0
    %3439 = vmatpush2.msra.mxu0 0.0
    %3440 = vmatprep.subr.mxu0 0.0
    %3441 = vmatpush2.msra.mxu0 0.0
    %3442 = vmatprep.subr.mxu0 0.0
    %3443 = vmatpush2.msra.mxu0 0.0
    %3444 = vmatprep.subr.mxu0 0.0
    %3445 = vmatpush2.msra.mxu0 0.0
    %3446 = vmatprep.subr.mxu0 0.0
    %3447 = vmatpush2.msra.mxu0 0.0
    %3448 = vmatprep.subr.mxu0 0.0
    %3449 = vmatpush2.msra.mxu0 0.0
    %3450 = vmatprep.subr.mxu0 0.0
    %3451 = vmatpush2.msra.mxu0 0.0
    %3452 = vmatprep.subr.mxu0 0.0
    %3453 = vmatpush2.msra.mxu0 0.0
    %3454 = vmatprep.subr.mxu0 0.0
    %3455 = vmatpush2.msra.mxu0 0.0
    %3456 = vmatprep.subr.mxu0 0.0
    %3457 = vmatpush2.msra.mxu0 0.0
    %3458 = vmatprep.subr.mxu0 0.0
    %3459 = vmatpush2.msra.mxu0 0.0
    %3460 = vmatprep.subr.mxu0 0.0
    %3461 = vmatpush2.msra.mxu0 0.0
    %3462 = vmatprep.subr.mxu0 0.0
    %3463 = vmatpush2.msra.mxu0 0.0
    %3464 = vmatprep.subr.mxu0 0.0
    %3465 = vmatpush2.msra.mxu0 0.0
    %3466 = vmatprep.subr.mxu0 0.0
    %3467 = vmatpush2.msra.mxu0 0.0
    %3468 = vmatprep.mubr.f32.mxu0 0.0
    %3469 = vmatmul.mubr.f32.gmra.mxu0 %v3402
    %v3470 = vpop.f32.mrf.mxu0
    %v3471 = vadd.f32 %v3396, %v3470
    %v3472 = vpop.f32.mrf.mxu0
    %3473 = vdwg.mxu0
    %v3474 = vadd.f32 %v3471, %v381
    %v3475 = vxor.u32 %v3474, 2147483648
    %v3476 = vmul.f32 %v3475, 1.442695
    %v3477 = vpow.pop %v3476
    %v3478 = vadd.f32 %v3477, 1.0
    %v3479 = vrcp.pop %v3478
    %v3480 = vmul.f32 1.0, %v3479
    %v3481 = vtanh.pop %v3474
    %v3482 = vmul.f32 %v3480, %v2977
    %3484 = vrot.lane.b32.xlu0 %v3481, 64
    %v3485 = vpop.permute.xlu0 %3484
    %v3487 = vmul.f32 %v3480, %v3485
    %3489 = vrot.lane.b32.xlu0 %v3487, 32
    %v3490 = vpop.permute.xlu0 %3489
    %v3492 = vadd.f32 %v3482, %v3490
    %v3493 = vtanh.pop %v3492
    %3495 = vrot.lane.b32.xlu0 %v3493, 64
    %v3496 = vpop.permute.xlu0 %3495
    %v3498 = vmul.f32 %v3480, %v3496
    %3500 = vrot.lane.b32.xlu0 %v3158, 32
    %v3501 = vpop.permute.xlu0 %3500
    %v3502 = vsel %vm53, %v3501, 0
    %3504 = vmatprep.subr.mxu0 0.0
    %3505 = vmatpush1.msra.mxu0 0.0
    %3506 = vmatprep.subr.mxu0 0.0
    %3507 = vmatpush1.msra.mxu0 0.0
    %3508 = vmatprep.subr.mxu0 0.0
    %3509 = vmatpush1.msra.mxu0 0.0
    %3510 = vmatprep.subr.mxu0 0.0
    %3511 = vmatpush1.msra.mxu0 0.0
    %3512 = vmatprep.subr.mxu0 0.0
    %3513 = vmatpush1.msra.mxu0 0.0
    %3514 = vmatprep.subr.mxu0 0.0
    %3515 = vmatpush1.msra.mxu0 0.0
    %3516 = vmatprep.subr.mxu0 0.0
    %3517 = vmatpush1.msra.mxu0 0.0
    %3518 = vmatprep.subr.mxu0 0.0
    %3519 = vmatpush1.msra.mxu0 0.0
    %3520 = vmatprep.subr.mxu0 0.0
    %3521 = vmatpush1.msra.mxu0 0.0
    %3522 = vmatprep.subr.mxu0 0.0
    %3523 = vmatpush1.msra.mxu0 0.0
    %3524 = vmatprep.subr.mxu0 0.0
    %3525 = vmatpush1.msra.mxu0 0.0
    %3526 = vmatprep.subr.mxu0 0.0
    %3527 = vmatpush1.msra.mxu0 0.0
    %3528 = vmatprep.subr.mxu0 0.0
    %3529 = vmatpush1.msra.mxu0 %v49
    %3530 = vmatprep.subr.mxu0 0.0
    %3531 = vmatpush1.msra.mxu0 %v48
    %3532 = vmatprep.subr.mxu0 0.0
    %3533 = vmatpush1.msra.mxu0 %v47
    %3534 = vmatprep.subr.mxu0 0.0
    %3535 = vmatpush1.msra.mxu0 %v46
    %3536 = vmatprep.subr.mxu0 0.0
    %3537 = vmatpush2.msra.mxu0 0.0
    %3538 = vmatprep.subr.mxu0 0.0
    %3539 = vmatpush2.msra.mxu0 0.0
    %3540 = vmatprep.subr.mxu0 0.0
    %3541 = vmatpush2.msra.mxu0 0.0
    %3542 = vmatprep.subr.mxu0 0.0
    %3543 = vmatpush2.msra.mxu0 0.0
    %3544 = vmatprep.subr.mxu0 0.0
    %3545 = vmatpush2.msra.mxu0 0.0
    %3546 = vmatprep.subr.mxu0 0.0
    %3547 = vmatpush2.msra.mxu0 0.0
    %3548 = vmatprep.subr.mxu0 0.0
    %3549 = vmatpush2.msra.mxu0 0.0
    %3550 = vmatprep.subr.mxu0 0.0
    %3551 = vmatpush2.msra.mxu0 0.0
    %3552 = vmatprep.subr.mxu0 0.0
    %3553 = vmatpush2.msra.mxu0 0.0
    %3554 = vmatprep.subr.mxu0 0.0
    %3555 = vmatpush2.msra.mxu0 0.0
    %3556 = vmatprep.subr.mxu0 0.0
    %3557 = vmatpush2.msra.mxu0 0.0
    %3558 = vmatprep.subr.mxu0 0.0
    %3559 = vmatpush2.msra.mxu0 0.0
    %3560 = vmatprep.subr.mxu0 0.0
    %3561 = vmatpush2.msra.mxu0 0.0
    %3562 = vmatprep.subr.mxu0 0.0
    %3563 = vmatpush2.msra.mxu0 0.0
    %3564 = vmatprep.subr.mxu0 0.0
    %3565 = vmatpush2.msra.mxu0 0.0
    %3566 = vmatprep.subr.mxu0 0.0
    %3567 = vmatpush2.msra.mxu0 0.0
    %3568 = vmatprep.mubr.f32.mxu0 0.0
    %3569 = vmatmul.mubr.f32.gmra.mxu0 %v3502
    %v3570 = vpop.f32.mrf.mxu0
    %v3571 = vadd.f32 0.0, %v3570
    %v3572 = vpop.f32.mrf.mxu0
    %3573 = vdwg.mxu0
    %3575 = vrot.lane.b32.xlu0 %v3498, 32
    %v3576 = vpop.permute.xlu0 %3575
    %v3577 = vsel %vm53, %v3576, 0
    %3579 = vmatprep.subr.mxu0 0.0
    %3580 = vmatpush1.msra.mxu0 0.0
    %3581 = vmatprep.subr.mxu0 0.0
    %3582 = vmatpush1.msra.mxu0 0.0
    %3583 = vmatprep.subr.mxu0 0.0
    %3584 = vmatpush1.msra.mxu0 0.0
    %3585 = vmatprep.subr.mxu0 0.0
    %3586 = vmatpush1.msra.mxu0 0.0
    %3587 = vmatprep.subr.mxu0 0.0
    %3588 = vmatpush1.msra.mxu0 0.0
    %3589 = vmatprep.subr.mxu0 0.0
    %3590 = vmatpush1.msra.mxu0 0.0
    %3591 = vmatprep.subr.mxu0 0.0
    %3592 = vmatpush1.msra.mxu0 0.0
    %3593 = vmatprep.subr.mxu0 0.0
    %3594 = vmatpush1.msra.mxu0 0.0
    %3595 = vmatprep.subr.mxu0 0.0
    %3596 = vmatpush1.msra.mxu0 0.0
    %3597 = vmatprep.subr.mxu0 0.0
    %3598 = vmatpush1.msra.mxu0 0.0
    %3599 = vmatprep.subr.mxu0 0.0
    %3600 = vmatpush1.msra.mxu0 0.0
    %3601 = vmatprep.subr.mxu0 0.0
    %3602 = vmatpush1.msra.mxu0 0.0
    %3603 = vmatprep.subr.mxu0 0.0
    %3604 = vmatpush1.msra.mxu0 %v41
    %3605 = vmatprep.subr.mxu0 0.0
    %3606 = vmatpush1.msra.mxu0 %v40
    %3607 = vmatprep.subr.mxu0 0.0
    %3608 = vmatpush1.msra.mxu0 %v39
    %3609 = vmatprep.subr.mxu0 0.0
    %3610 = vmatpush1.msra.mxu0 %v38
    %3611 = vmatprep.subr.mxu0 0.0
    %3612 = vmatpush2.msra.mxu0 0.0
    %3613 = vmatprep.subr.mxu0 0.0
    %3614 = vmatpush2.msra.mxu0 0.0
    %3615 = vmatprep.subr.mxu0 0.0
    %3616 = vmatpush2.msra.mxu0 0.0
    %3617 = vmatprep.subr.mxu0 0.0
    %3618 = vmatpush2.msra.mxu0 0.0
    %3619 = vmatprep.subr.mxu0 0.0
    %3620 = vmatpush2.msra.mxu0 0.0
    %3621 = vmatprep.subr.mxu0 0.0
    %3622 = vmatpush2.msra.mxu0 0.0
    %3623 = vmatprep.subr.mxu0 0.0
    %3624 = vmatpush2.msra.mxu0 0.0
    %3625 = vmatprep.subr.mxu0 0.0
    %3626 = vmatpush2.msra.mxu0 0.0
    %3627 = vmatprep.subr.mxu0 0.0
    %3628 = vmatpush2.msra.mxu0 0.0
    %3629 = vmatprep.subr.mxu0 0.0
    %3630 = vmatpush2.msra.mxu0 0.0
    %3631 = vmatprep.subr.mxu0 0.0
    %3632 = vmatpush2.msra.mxu0 0.0
    %3633 = vmatprep.subr.mxu0 0.0
    %3634 = vmatpush2.msra.mxu0 0.0
    %3635 = vmatprep.subr.mxu0 0.0
    %3636 = vmatpush2.msra.mxu0 0.0
    %3637 = vmatprep.subr.mxu0 0.0
    %3638 = vmatpush2.msra.mxu0 0.0
    %3639 = vmatprep.subr.mxu0 0.0
    %3640 = vmatpush2.msra.mxu0 0.0
    %3641 = vmatprep.subr.mxu0 0.0
    %3642 = vmatpush2.msra.mxu0 0.0
    %3643 = vmatprep.mubr.f32.mxu0 0.0
    %3644 = vmatmul.mubr.f32.gmra.mxu0 %v3577
    %v3645 = vpop.f32.mrf.mxu0
    %v3646 = vadd.f32 %v3571, %v3645
    %v3647 = vpop.f32.mrf.mxu0
    %3648 = vdwg.mxu0
    %v3649 = vadd.f32 %v3646, %v557
    %v3650 = vxor.u32 %v3649, 2147483648
    %v3651 = vmul.f32 %v3650, 1.442695
    %v3652 = vpow.pop %v3651
    %v3653 = vadd.f32 %v3652, 1.0
    %v3654 = vrcp.pop %v3653
    %v3655 = vmul.f32 1.0, %v3654
    %v3656 = vtanh.pop %v3649
    %v3657 = vmul.f32 %v3655, %v3152
    %3659 = vrot.lane.b32.xlu0 %v3656, 64
    %v3660 = vpop.permute.xlu0 %3659
    %v3662 = vmul.f32 %v3655, %v3660
    %3664 = vrot.lane.b32.xlu0 %v3662, 32
    %v3665 = vpop.permute.xlu0 %3664
    %v3667 = vadd.f32 %v3657, %v3665
    %v3668 = vtanh.pop %v3667
    %3670 = vrot.lane.b32.xlu0 %v3668, 64
    %v3671 = vpop.permute.xlu0 %3670
    %v3673 = vmul.f32 %v3655, %v3671
    %s3674 = scalar_lea.vmem %s0, 14
    %v3675 = vld [vmem:[%s3674] sm:$0x3]
    %3676 = vmatprep.subr.mxu0 0.0
    %3677 = vmatpush1.msra.mxu0 0.0
    %3678 = vmatprep.subr.mxu0 0.0
    %3679 = vmatpush1.msra.mxu0 0.0
    %3680 = vmatprep.subr.mxu0 0.0
    %3681 = vmatpush1.msra.mxu0 0.0
    %3682 = vmatprep.subr.mxu0 0.0
    %3683 = vmatpush1.msra.mxu0 0.0
    %3684 = vmatprep.subr.mxu0 0.0
    %3685 = vmatpush1.msra.mxu0 0.0
    %3686 = vmatprep.subr.mxu0 0.0
    %3687 = vmatpush1.msra.mxu0 0.0
    %3688 = vmatprep.subr.mxu0 0.0
    %3689 = vmatpush1.msra.mxu0 0.0
    %3690 = vmatprep.subr.mxu0 0.0
    %3691 = vmatpush1.msra.mxu0 0.0
    %3692 = vmatprep.subr.mxu0 0.0
    %3693 = vmatpush1.msra.mxu0 0.0
    %3694 = vmatprep.subr.mxu0 0.0
    %3695 = vmatpush1.msra.mxu0 0.0
    %3696 = vmatprep.subr.mxu0 0.0
    %3697 = vmatpush1.msra.mxu0 0.0
    %3698 = vmatprep.subr.mxu0 0.0
    %3699 = vmatpush1.msra.mxu0 0.0
    %3700 = vmatprep.subr.mxu0 0.0
    %3701 = vmatpush1.msra.mxu0 %v32
    %3702 = vmatprep.subr.mxu0 0.0
    %3703 = vmatpush1.msra.mxu0 %v31
    %3704 = vmatprep.subr.mxu0 0.0
    %3705 = vmatpush1.msra.mxu0 %v30
    %3706 = vmatprep.subr.mxu0 0.0
    %3707 = vmatpush1.msra.mxu0 %v29
    %3708 = vmatprep.subr.mxu0 0.0
    %3709 = vmatpush2.msra.mxu0 0.0
    %3710 = vmatprep.subr.mxu0 0.0
    %3711 = vmatpush2.msra.mxu0 0.0
    %3712 = vmatprep.subr.mxu0 0.0
    %3713 = vmatpush2.msra.mxu0 0.0
    %3714 = vmatprep.subr.mxu0 0.0
    %3715 = vmatpush2.msra.mxu0 0.0
    %3716 = vmatprep.subr.mxu0 0.0
    %3717 = vmatpush2.msra.mxu0 0.0
    %3718 = vmatprep.subr.mxu0 0.0
    %3719 = vmatpush2.msra.mxu0 0.0
    %3720 = vmatprep.subr.mxu0 0.0
    %3721 = vmatpush2.msra.mxu0 0.0
    %3722 = vmatprep.subr.mxu0 0.0
    %3723 = vmatpush2.msra.mxu0 0.0
    %3724 = vmatprep.subr.mxu0 0.0
    %3725 = vmatpush2.msra.mxu0 0.0
    %3726 = vmatprep.subr.mxu0 0.0
    %3727 = vmatpush2.msra.mxu0 0.0
    %3728 = vmatprep.subr.mxu0 0.0
    %3729 = vmatpush2.msra.mxu0 0.0
    %3730 = vmatprep.subr.mxu0 0.0
    %3731 = vmatpush2.msra.mxu0 0.0
    %3732 = vmatprep.subr.mxu0 0.0
    %3733 = vmatpush2.msra.mxu0 0.0
    %3734 = vmatprep.subr.mxu0 0.0
    %3735 = vmatpush2.msra.mxu0 0.0
    %3736 = vmatprep.subr.mxu0 0.0
    %3737 = vmatpush2.msra.mxu0 0.0
    %3738 = vmatprep.subr.mxu0 0.0
    %3739 = vmatpush2.msra.mxu0 0.0
    %3740 = vmatprep.mubr.f32.mxu0 0.0
    %3741 = vmatmul.mubr.f32.gmra.mxu0 %v3402
    %v3742 = vpop.f32.mrf.mxu0
    %v3743 = vadd.f32 0.0, %v3742
    %v3744 = vpop.f32.mrf.mxu0
    %3745 = vdwg.mxu0
    %v3747 = vsel %vm127, %v3675, 0
    %3749 = vmatprep.subr.mxu0 0.0
    %3750 = vmatpush1.msra.mxu0 0.0
    %3751 = vmatprep.subr.mxu0 0.0
    %3752 = vmatpush1.msra.mxu0 0.0
    %3753 = vmatprep.subr.mxu0 0.0
    %3754 = vmatpush1.msra.mxu0 0.0
    %3755 = vmatprep.subr.mxu0 0.0
    %3756 = vmatpush1.msra.mxu0 0.0
    %3757 = vmatprep.subr.mxu0 0.0
    %3758 = vmatpush1.msra.mxu0 0.0
    %3759 = vmatprep.subr.mxu0 0.0
    %3760 = vmatpush1.msra.mxu0 0.0
    %3761 = vmatprep.subr.mxu0 0.0
    %3762 = vmatpush1.msra.mxu0 0.0
    %3763 = vmatprep.subr.mxu0 0.0
    %3764 = vmatpush1.msra.mxu0 0.0
    %3765 = vmatprep.subr.mxu0 0.0
    %3766 = vmatpush1.msra.mxu0 0.0
    %3767 = vmatprep.subr.mxu0 0.0
    %3768 = vmatpush1.msra.mxu0 0.0
    %3769 = vmatprep.subr.mxu0 0.0
    %3770 = vmatpush1.msra.mxu0 0.0
    %3771 = vmatprep.subr.mxu0 0.0
    %3772 = vmatpush1.msra.mxu0 0.0
    %3773 = vmatprep.subr.mxu0 0.0
    %3774 = vmatpush1.msra.mxu0 0.0
    %3775 = vmatprep.subr.mxu0 0.0
    %3776 = vmatpush1.msra.mxu0 0.0
    %3777 = vmatprep.subr.mxu0 0.0
    %3778 = vmatpush1.msra.mxu0 %v28
    %3779 = vmatprep.subr.mxu0 0.0
    %3780 = vmatpush1.msra.mxu0 %v27
    %3781 = vmatprep.subr.mxu0 0.0
    %3782 = vmatpush2.msra.mxu0 0.0
    %3783 = vmatprep.subr.mxu0 0.0
    %3784 = vmatpush2.msra.mxu0 0.0
    %3785 = vmatprep.subr.mxu0 0.0
    %3786 = vmatpush2.msra.mxu0 0.0
    %3787 = vmatprep.subr.mxu0 0.0
    %3788 = vmatpush2.msra.mxu0 0.0
    %3789 = vmatprep.subr.mxu0 0.0
    %3790 = vmatpush2.msra.mxu0 0.0
    %3791 = vmatprep.subr.mxu0 0.0
    %3792 = vmatpush2.msra.mxu0 0.0
    %3793 = vmatprep.subr.mxu0 0.0
    %3794 = vmatpush2.msra.mxu0 0.0
    %3795 = vmatprep.subr.mxu0 0.0
    %3796 = vmatpush2.msra.mxu0 0.0
    %3797 = vmatprep.subr.mxu0 0.0
    %3798 = vmatpush2.msra.mxu0 0.0
    %3799 = vmatprep.subr.mxu0 0.0
    %3800 = vmatpush2.msra.mxu0 0.0
    %3801 = vmatprep.subr.mxu0 0.0
    %3802 = vmatpush2.msra.mxu0 0.0
    %3803 = vmatprep.subr.mxu0 0.0
    %3804 = vmatpush2.msra.mxu0 0.0
    %3805 = vmatprep.subr.mxu0 0.0
    %3806 = vmatpush2.msra.mxu0 0.0
    %3807 = vmatprep.subr.mxu0 0.0
    %3808 = vmatpush2.msra.mxu0 0.0
    %3809 = vmatprep.subr.mxu0 0.0
    %3810 = vmatpush2.msra.mxu0 0.0
    %3811 = vmatprep.subr.mxu0 0.0
    %3812 = vmatpush2.msra.mxu0 0.0
    %3813 = vmatprep.mubr.f32.mxu0 0.0
    %3814 = vmatmul.mubr.f32.gmra.mxu0 %v3747
    %v3815 = vpop.f32.mrf.mxu0
    %v3816 = vadd.f32 %v3743, %v3815
    %v3817 = vpop.f32.mrf.mxu0
    %3818 = vdwg.mxu0
    %v3819 = vadd.f32 %v3816, %v205
    %v3820 = vxor.u32 %v3819, 2147483648
    %v3821 = vmul.f32 %v3820, 1.442695
    %v3822 = vpow.pop %v3821
    %v3823 = vadd.f32 %v3822, 1.0
    %v3824 = vrcp.pop %v3823
    %v3825 = vmul.f32 1.0, %v3824
    %v3826 = vtanh.pop %v3819
    %v3827 = vmul.f32 %v3825, %v3322
    %3829 = vrot.lane.b32.xlu0 %v3826, 64
    %v3830 = vpop.permute.xlu0 %3829
    %v3832 = vmul.f32 %v3825, %v3830
    %3834 = vrot.lane.b32.xlu0 %v3832, 32
    %v3835 = vpop.permute.xlu0 %3834
    %v3837 = vadd.f32 %v3827, %v3835
    %v3838 = vtanh.pop %v3837
    %3840 = vrot.lane.b32.xlu0 %v3838, 64
    %v3841 = vpop.permute.xlu0 %3840
    %v3843 = vmul.f32 %v3825, %v3841
    %3844 = vmatprep.subr.mxu0 0.0
    %3845 = vmatpush1.msra.mxu0 0.0
    %3846 = vmatprep.subr.mxu0 0.0
    %3847 = vmatpush1.msra.mxu0 0.0
    %3848 = vmatprep.subr.mxu0 0.0
    %3849 = vmatpush1.msra.mxu0 0.0
    %3850 = vmatprep.subr.mxu0 0.0
    %3851 = vmatpush1.msra.mxu0 0.0
    %3852 = vmatprep.subr.mxu0 0.0
    %3853 = vmatpush1.msra.mxu0 0.0
    %3854 = vmatprep.subr.mxu0 0.0
    %3855 = vmatpush1.msra.mxu0 0.0
    %3856 = vmatprep.subr.mxu0 0.0
    %3857 = vmatpush1.msra.mxu0 0.0
    %3858 = vmatprep.subr.mxu0 0.0
    %3859 = vmatpush1.msra.mxu0 0.0
    %3860 = vmatprep.subr.mxu0 0.0
    %3861 = vmatpush1.msra.mxu0 0.0
    %3862 = vmatprep.subr.mxu0 0.0
    %3863 = vmatpush1.msra.mxu0 0.0
    %3864 = vmatprep.subr.mxu0 0.0
    %3865 = vmatpush1.msra.mxu0 0.0
    %3866 = vmatprep.subr.mxu0 0.0
    %3867 = vmatpush1.msra.mxu0 0.0
    %3868 = vmatprep.subr.mxu0 0.0
    %3869 = vmatpush1.msra.mxu0 %v45
    %3870 = vmatprep.subr.mxu0 0.0
    %3871 = vmatpush1.msra.mxu0 %v44
    %3872 = vmatprep.subr.mxu0 0.0
    %3873 = vmatpush1.msra.mxu0 %v43
    %3874 = vmatprep.subr.mxu0 0.0
    %3875 = vmatpush1.msra.mxu0 %v42
    %3876 = vmatprep.subr.mxu0 0.0
    %3877 = vmatpush2.msra.mxu0 0.0
    %3878 = vmatprep.subr.mxu0 0.0
    %3879 = vmatpush2.msra.mxu0 0.0
    %3880 = vmatprep.subr.mxu0 0.0
    %3881 = vmatpush2.msra.mxu0 0.0
    %3882 = vmatprep.subr.mxu0 0.0
    %3883 = vmatpush2.msra.mxu0 0.0
    %3884 = vmatprep.subr.mxu0 0.0
    %3885 = vmatpush2.msra.mxu0 0.0
    %3886 = vmatprep.subr.mxu0 0.0
    %3887 = vmatpush2.msra.mxu0 0.0
    %3888 = vmatprep.subr.mxu0 0.0
    %3889 = vmatpush2.msra.mxu0 0.0
    %3890 = vmatprep.subr.mxu0 0.0
    %3891 = vmatpush2.msra.mxu0 0.0
    %3892 = vmatprep.subr.mxu0 0.0
    %3893 = vmatpush2.msra.mxu0 0.0
    %3894 = vmatprep.subr.mxu0 0.0
    %3895 = vmatpush2.msra.mxu0 0.0
    %3896 = vmatprep.subr.mxu0 0.0
    %3897 = vmatpush2.msra.mxu0 0.0
    %3898 = vmatprep.subr.mxu0 0.0
    %3899 = vmatpush2.msra.mxu0 0.0
    %3900 = vmatprep.subr.mxu0 0.0
    %3901 = vmatpush2.msra.mxu0 0.0
    %3902 = vmatprep.subr.mxu0 0.0
    %3903 = vmatpush2.msra.mxu0 0.0
    %3904 = vmatprep.subr.mxu0 0.0
    %3905 = vmatpush2.msra.mxu0 0.0
    %3906 = vmatprep.subr.mxu0 0.0
    %3907 = vmatpush2.msra.mxu0 0.0
    %3908 = vmatprep.mubr.f32.mxu0 0.0
    %3909 = vmatmul.mubr.f32.gmra.mxu0 %v3577
    %v3910 = vpop.f32.mrf.mxu0
    %v3911 = vadd.f32 0.0, %v3910
    %v3912 = vpop.f32.mrf.mxu0
    %3913 = vdwg.mxu0
    %3915 = vrot.lane.b32.xlu0 %v3843, 32
    %v3916 = vpop.permute.xlu0 %3915
    %v3917 = vsel %vm53, %v3916, 0
    %3919 = vmatprep.subr.mxu0 0.0
    %3920 = vmatpush1.msra.mxu0 0.0
    %3921 = vmatprep.subr.mxu0 0.0
    %3922 = vmatpush1.msra.mxu0 0.0
    %3923 = vmatprep.subr.mxu0 0.0
    %3924 = vmatpush1.msra.mxu0 0.0
    %3925 = vmatprep.subr.mxu0 0.0
    %3926 = vmatpush1.msra.mxu0 0.0
    %3927 = vmatprep.subr.mxu0 0.0
    %3928 = vmatpush1.msra.mxu0 0.0
    %3929 = vmatprep.subr.mxu0 0.0
    %3930 = vmatpush1.msra.mxu0 0.0
    %3931 = vmatprep.subr.mxu0 0.0
    %3932 = vmatpush1.msra.mxu0 0.0
    %3933 = vmatprep.subr.mxu0 0.0
    %3934 = vmatpush1.msra.mxu0 0.0
    %3935 = vmatprep.subr.mxu0 0.0
    %3936 = vmatpush1.msra.mxu0 0.0
    %3937 = vmatprep.subr.mxu0 0.0
    %3938 = vmatpush1.msra.mxu0 0.0
    %3939 = vmatprep.subr.mxu0 0.0
    %3940 = vmatpush1.msra.mxu0 0.0
    %3941 = vmatprep.subr.mxu0 0.0
    %3942 = vmatpush1.msra.mxu0 0.0
    %3943 = vmatprep.subr.mxu0 0.0
    %3944 = vmatpush1.msra.mxu0 %v37
    %3945 = vmatprep.subr.mxu0 0.0
    %3946 = vmatpush1.msra.mxu0 %v36
    %3947 = vmatprep.subr.mxu0 0.0
    %3948 = vmatpush1.msra.mxu0 %v35
    %3949 = vmatprep.subr.mxu0 0.0
    %3950 = vmatpush1.msra.mxu0 %v34
    %3951 = vmatprep.subr.mxu0 0.0
    %3952 = vmatpush2.msra.mxu0 0.0
    %3953 = vmatprep.subr.mxu0 0.0
    %3954 = vmatpush2.msra.mxu0 0.0
    %3955 = vmatprep.subr.mxu0 0.0
    %3956 = vmatpush2.msra.mxu0 0.0
    %3957 = vmatprep.subr.mxu0 0.0
    %3958 = vmatpush2.msra.mxu0 0.0
    %3959 = vmatprep.subr.mxu0 0.0
    %3960 = vmatpush2.msra.mxu0 0.0
    %3961 = vmatprep.subr.mxu0 0.0
    %3962 = vmatpush2.msra.mxu0 0.0
    %3963 = vmatprep.subr.mxu0 0.0
    %3964 = vmatpush2.msra.mxu0 0.0
    %3965 = vmatprep.subr.mxu0 0.0
    %3966 = vmatpush2.msra.mxu0 0.0
    %3967 = vmatprep.subr.mxu0 0.0
    %3968 = vmatpush2.msra.mxu0 0.0
    %3969 = vmatprep.subr.mxu0 0.0
    %3970 = vmatpush2.msra.mxu0 0.0
    %3971 = vmatprep.subr.mxu0 0.0
    %3972 = vmatpush2.msra.mxu0 0.0
    %3973 = vmatprep.subr.mxu0 0.0
    %3974 = vmatpush2.msra.mxu0 0.0
    %3975 = vmatprep.subr.mxu0 0.0
    %3976 = vmatpush2.msra.mxu0 0.0
    %3977 = vmatprep.subr.mxu0 0.0
    %3978 = vmatpush2.msra.mxu0 0.0
    %3979 = vmatprep.subr.mxu0 0.0
    %3980 = vmatpush2.msra.mxu0 0.0
    %3981 = vmatprep.subr.mxu0 0.0
    %3982 = vmatpush2.msra.mxu0 0.0
    %3983 = vmatprep.mubr.f32.mxu0 0.0
    %3984 = vmatmul.mubr.f32.gmra.mxu0 %v3917
    %v3985 = vpop.f32.mrf.mxu0
    %v3986 = vadd.f32 %v3911, %v3985
    %v3987 = vpop.f32.mrf.mxu0
    %3988 = vdwg.mxu0
    %v3989 = vadd.f32 %v3986, %v381
    %v3990 = vxor.u32 %v3989, 2147483648
    %v3991 = vmul.f32 %v3990, 1.442695
    %v3992 = vpow.pop %v3991
    %v3993 = vadd.f32 %v3992, 1.0
    %v3994 = vrcp.pop %v3993
    %v3995 = vmul.f32 1.0, %v3994
    %v3996 = vtanh.pop %v3989
    %v3997 = vmul.f32 %v3995, %v3492
    %3999 = vrot.lane.b32.xlu0 %v3996, 64
    %v4000 = vpop.permute.xlu0 %3999
    %v4002 = vmul.f32 %v3995, %v4000
    %4004 = vrot.lane.b32.xlu0 %v4002, 32
    %v4005 = vpop.permute.xlu0 %4004
    %v4007 = vadd.f32 %v3997, %v4005
    %v4008 = vtanh.pop %v4007
    %4010 = vrot.lane.b32.xlu0 %v4008, 64
    %v4011 = vpop.permute.xlu0 %4010
    %v4013 = vmul.f32 %v3995, %v4011
    %4015 = vrot.lane.b32.xlu0 %v3673, 32
    %v4016 = vpop.permute.xlu0 %4015
    %v4017 = vsel %vm53, %v4016, 0
    %4019 = vmatprep.subr.mxu0 0.0
    %4020 = vmatpush1.msra.mxu0 0.0
    %4021 = vmatprep.subr.mxu0 0.0
    %4022 = vmatpush1.msra.mxu0 0.0
    %4023 = vmatprep.subr.mxu0 0.0
    %4024 = vmatpush1.msra.mxu0 0.0
    %4025 = vmatprep.subr.mxu0 0.0
    %4026 = vmatpush1.msra.mxu0 0.0
    %4027 = vmatprep.subr.mxu0 0.0
    %4028 = vmatpush1.msra.mxu0 0.0
    %4029 = vmatprep.subr.mxu0 0.0
    %4030 = vmatpush1.msra.mxu0 0.0
    %4031 = vmatprep.subr.mxu0 0.0
    %4032 = vmatpush1.msra.mxu0 0.0
    %4033 = vmatprep.subr.mxu0 0.0
    %4034 = vmatpush1.msra.mxu0 0.0
    %4035 = vmatprep.subr.mxu0 0.0
    %4036 = vmatpush1.msra.mxu0 0.0
    %4037 = vmatprep.subr.mxu0 0.0
    %4038 = vmatpush1.msra.mxu0 0.0
    %4039 = vmatprep.subr.mxu0 0.0
    %4040 = vmatpush1.msra.mxu0 0.0
    %4041 = vmatprep.subr.mxu0 0.0
    %4042 = vmatpush1.msra.mxu0 0.0
    %4043 = vmatprep.subr.mxu0 0.0
    %4044 = vmatpush1.msra.mxu0 %v49
    %4045 = vmatprep.subr.mxu0 0.0
    %4046 = vmatpush1.msra.mxu0 %v48
    %4047 = vmatprep.subr.mxu0 0.0
    %4048 = vmatpush1.msra.mxu0 %v47
    %4049 = vmatprep.subr.mxu0 0.0
    %4050 = vmatpush1.msra.mxu0 %v46
    %4051 = vmatprep.subr.mxu0 0.0
    %4052 = vmatpush2.msra.mxu0 0.0
    %4053 = vmatprep.subr.mxu0 0.0
    %4054 = vmatpush2.msra.mxu0 0.0
    %4055 = vmatprep.subr.mxu0 0.0
    %4056 = vmatpush2.msra.mxu0 0.0
    %4057 = vmatprep.subr.mxu0 0.0
    %4058 = vmatpush2.msra.mxu0 0.0
    %4059 = vmatprep.subr.mxu0 0.0
    %4060 = vmatpush2.msra.mxu0 0.0
    %4061 = vmatprep.subr.mxu0 0.0
    %4062 = vmatpush2.msra.mxu0 0.0
    %4063 = vmatprep.subr.mxu0 0.0
    %4064 = vmatpush2.msra.mxu0 0.0
    %4065 = vmatprep.subr.mxu0 0.0
    %4066 = vmatpush2.msra.mxu0 0.0
    %4067 = vmatprep.subr.mxu0 0.0
    %4068 = vmatpush2.msra.mxu0 0.0
    %4069 = vmatprep.subr.mxu0 0.0
    %4070 = vmatpush2.msra.mxu0 0.0
    %4071 = vmatprep.subr.mxu0 0.0
    %4072 = vmatpush2.msra.mxu0 0.0
    %4073 = vmatprep.subr.mxu0 0.0
    %4074 = vmatpush2.msra.mxu0 0.0
    %4075 = vmatprep.subr.mxu0 0.0
    %4076 = vmatpush2.msra.mxu0 0.0
    %4077 = vmatprep.subr.mxu0 0.0
    %4078 = vmatpush2.msra.mxu0 0.0
    %4079 = vmatprep.subr.mxu0 0.0
    %4080 = vmatpush2.msra.mxu0 0.0
    %4081 = vmatprep.subr.mxu0 0.0
    %4082 = vmatpush2.msra.mxu0 0.0
    %4083 = vmatprep.mubr.f32.mxu0 0.0
    %4084 = vmatmul.mubr.f32.gmra.mxu0 %v4017
    %v4085 = vpop.f32.mrf.mxu0
    %v4086 = vadd.f32 0.0, %v4085
    %v4087 = vpop.f32.mrf.mxu0
    %4088 = vdwg.mxu0
    %4090 = vrot.lane.b32.xlu0 %v4013, 32
    %v4091 = vpop.permute.xlu0 %4090
    %v4092 = vsel %vm53, %v4091, 0
    %4094 = vmatprep.subr.mxu0 0.0
    %4095 = vmatpush1.msra.mxu0 0.0
    %4096 = vmatprep.subr.mxu0 0.0
    %4097 = vmatpush1.msra.mxu0 0.0
    %4098 = vmatprep.subr.mxu0 0.0
    %4099 = vmatpush1.msra.mxu0 0.0
    %4100 = vmatprep.subr.mxu0 0.0
    %4101 = vmatpush1.msra.mxu0 0.0
    %4102 = vmatprep.subr.mxu0 0.0
    %4103 = vmatpush1.msra.mxu0 0.0
    %4104 = vmatprep.subr.mxu0 0.0
    %4105 = vmatpush1.msra.mxu0 0.0
    %4106 = vmatprep.subr.mxu0 0.0
    %4107 = vmatpush1.msra.mxu0 0.0
    %4108 = vmatprep.subr.mxu0 0.0
    %4109 = vmatpush1.msra.mxu0 0.0
    %4110 = vmatprep.subr.mxu0 0.0
    %4111 = vmatpush1.msra.mxu0 0.0
    %4112 = vmatprep.subr.mxu0 0.0
    %4113 = vmatpush1.msra.mxu0 0.0
    %4114 = vmatprep.subr.mxu0 0.0
    %4115 = vmatpush1.msra.mxu0 0.0
    %4116 = vmatprep.subr.mxu0 0.0
    %4117 = vmatpush1.msra.mxu0 0.0
    %4118 = vmatprep.subr.mxu0 0.0
    %4119 = vmatpush1.msra.mxu0 %v41
    %4120 = vmatprep.subr.mxu0 0.0
    %4121 = vmatpush1.msra.mxu0 %v40
    %4122 = vmatprep.subr.mxu0 0.0
    %4123 = vmatpush1.msra.mxu0 %v39
    %4124 = vmatprep.subr.mxu0 0.0
    %4125 = vmatpush1.msra.mxu0 %v38
    %4126 = vmatprep.subr.mxu0 0.0
    %4127 = vmatpush2.msra.mxu0 0.0
    %4128 = vmatprep.subr.mxu0 0.0
    %4129 = vmatpush2.msra.mxu0 0.0
    %4130 = vmatprep.subr.mxu0 0.0
    %4131 = vmatpush2.msra.mxu0 0.0
    %4132 = vmatprep.subr.mxu0 0.0
    %4133 = vmatpush2.msra.mxu0 0.0
    %4134 = vmatprep.subr.mxu0 0.0
    %4135 = vmatpush2.msra.mxu0 0.0
    %4136 = vmatprep.subr.mxu0 0.0
    %4137 = vmatpush2.msra.mxu0 0.0
    %4138 = vmatprep.subr.mxu0 0.0
    %4139 = vmatpush2.msra.mxu0 0.0
    %4140 = vmatprep.subr.mxu0 0.0
    %4141 = vmatpush2.msra.mxu0 0.0
    %4142 = vmatprep.subr.mxu0 0.0
    %4143 = vmatpush2.msra.mxu0 0.0
    %4144 = vmatprep.subr.mxu0 0.0
    %4145 = vmatpush2.msra.mxu0 0.0
    %4146 = vmatprep.subr.mxu0 0.0
    %4147 = vmatpush2.msra.mxu0 0.0
    %4148 = vmatprep.subr.mxu0 0.0
    %4149 = vmatpush2.msra.mxu0 0.0
    %4150 = vmatprep.subr.mxu0 0.0
    %4151 = vmatpush2.msra.mxu0 0.0
    %4152 = vmatprep.subr.mxu0 0.0
    %4153 = vmatpush2.msra.mxu0 0.0
    %4154 = vmatprep.subr.mxu0 0.0
    %4155 = vmatpush2.msra.mxu0 0.0
    %4156 = vmatprep.subr.mxu0 0.0
    %4157 = vmatpush2.msra.mxu0 0.0
    %4158 = vmatprep.mubr.f32.mxu0 0.0
    %4159 = vmatmul.mubr.f32.gmra.mxu0 %v4092
    %v4160 = vpop.f32.mrf.mxu0
    %v4161 = vadd.f32 %v4086, %v4160
    %v4162 = vpop.f32.mrf.mxu0
    %4163 = vdwg.mxu0
    %v4164 = vadd.f32 %v4161, %v557
    %v4165 = vxor.u32 %v4164, 2147483648
    %v4166 = vmul.f32 %v4165, 1.442695
    %v4167 = vpow.pop %v4166
    %v4168 = vadd.f32 %v4167, 1.0
    %v4169 = vrcp.pop %v4168
    %v4170 = vmul.f32 1.0, %v4169
    %v4171 = vtanh.pop %v4164
    %v4172 = vmul.f32 %v4170, %v3667
    %4174 = vrot.lane.b32.xlu0 %v4171, 64
    %v4175 = vpop.permute.xlu0 %4174
    %v4177 = vmul.f32 %v4170, %v4175
    %4179 = vrot.lane.b32.xlu0 %v4177, 32
    %v4180 = vpop.permute.xlu0 %4179
    %v4182 = vadd.f32 %v4172, %v4180
    %v4183 = vtanh.pop %v4182
    %4185 = vrot.lane.b32.xlu0 %v4183, 64
    %v4186 = vpop.permute.xlu0 %4185
    %v4188 = vmul.f32 %v4170, %v4186
    %4190 = vrot.lane.b32.xlu0 %v4188, 32
    %v4191 = vpop.permute.xlu0 %4190
    %vm4193 = vcmask 254976
    %4194 = vst.msk [vmem:[#allocation2] sm:$0x3] %vm4193, %v4191
    // Predicated region
    $region30: #{lstm_forward.1} parent=1 // pred_check
      _
    $region31: #{lstm_forward.1} parent=1 // pred_check_branch
      %4196 = sbr.rel (0) target = $region33
    $region32: #{lstm_forward.1} parent=1 // pred_region
      %s4198 = ssub.s32 32, 32
      %4199 = vsyncadd [#allocation3], %s4198
      %s4201 = sshll.u32 [#allocation2], 4
      %s4202 = int_to_ptr.vmem [resolvable:$true] %s4201
      %4204 = dma.vmem_to_hbm [thread:$0]  %s4202, 32, %s7, [#allocation3]
    $region33: #{lstm_forward.1} parent=1 // pred_fallthru
      _
    // Predicated region
    $region34: #{lstm_forward.1} parent=1 // pred_check
      _
    $region35: #{lstm_forward.1} parent=1 // pred_check_branch
      %4206 = sbr.rel (0) target = $region37
    $region36: #{lstm_forward.1} parent=1 // pred_region
      %4207 = dma.done [#allocation3], 32
    $region37: #{lstm_forward.1} parent=1 // pred_fallthru
      _
    %4208 = vsyncpa [#allocation3], 1

</llo_original>
